<compile_context>
chip_gen: v7x
topology: tpu7x:2x2x1
jax: 0.10.0
libtpu: 0.0.40
codegen_flags: <defaults>
</compile_context>

<pallas_src>
import functools

import jax
import jax.numpy as jnp
from jax.experimental import pallas as pl
from jax.experimental.pallas import tpu as pltpu


# --------------------------- in-kernel helpers ------------------------------
def _nchw_to_nhwc(x):
    """(nb, C, H, W) -> (nb, H, W, C) via per-channel slices + one lane concat.

    C is small for this micro-op, so this is a handful of pieces done entirely
    in VMEM — no HBM pass, no reliance on a generic rank-4 transpose lowering.
    """
    nb, c, h, w = x.shape
    planes = [x[:, ci, :, :].reshape(nb, h, w, 1) for ci in range(c)]
    return planes[0] if c == 1 else jnp.concatenate(planes, axis=-1)


def _pad_hw(x, *, pad_top, pad_bot, pad_right):
    """Zero-pad H (outer axis 1) and optionally W (axis 2) of an NHWC block."""
    nb, h, w, c = x.shape
    if pad_top or pad_bot:
        parts = []
        if pad_top:
            parts.append(jnp.zeros((nb, pad_top, w, c), x.dtype))
        parts.append(x)
        if pad_bot:
            parts.append(jnp.zeros((nb, pad_bot, w, c), x.dtype))
        x = jnp.concatenate(parts, axis=1)
    if pad_right:
        x = jnp.concatenate(
            [x, jnp.zeros((nb, x.shape[1], pad_right, c), x.dtype)], axis=2)
    return x


def _im2col(x, kh, kw, stride, ho, wo):
    """x: (nb, Hp, Wp, C) padded NHWC block, Hp >= kh-1+stride*ho, Wp >= kw-1+stride*wo.

    Returns (nb, ho, wo, kh*kw*C) with the K axis ordered (dy, dx, c) — the
    same ordering the wrapper uses when flattening the combined weight.
    """
    nb, _, _, c = x.shape
    taps = []
    for dy in range(kh):
        for dx in range(kw):
            if stride == 1:
                taps.append(x[:, dy:dy + ho, dx:dx + wo, :])
            else:
                # H is an outer axis in NHWC -> a strided slice there is cheap.
                # W (sublane axis): take a contiguous slab and drop the unwanted
                # phases via a static reshape + index (bounds exact thanks to
                # the extended padding).
                s = x[:, dy:dy + stride * (ho - 1) + 1:stride,
                      dx:dx + stride * wo, :]
                s = s.reshape(nb, ho, wo, stride, c)[:, :, :, 0, :]
                taps.append(s)
    return jnp.concatenate(taps, axis=-1)


# ------------------------------ kernel body ---------------------------------
def _sepconv_kernel(x_ref, wc1_ref, b1_ref, wc2_ref, b2_ref, o_ref, *,
                    kh, kw, stride, pad, h1, w1, h2, w2, act_dtype):
    """Processes a block of `nb` batch elements.

    x_ref  : (nb, Cin, H, W)  f32       raw NCHW input block (no wrapper transpose)
    wc1_ref: (kh*kw*Cin, Cin)  bf16/f32 combined dw1*pw1*bn1_scale weight
    b1_ref : (1, Cin)          f32      bn1 shift
    wc2_ref: (kh*kw*Cin, Cout) bf16/f32 combined dw2*pw2*bn2_scale weight
    b2_ref : (1, Cout)         f32      bn2 shift
    o_ref  : (nb, Cout, h2*w2) f32      channel-major output block
    """
    nb, cin, H, W = x_ref.shape
    kk = kh * kw

    # ---- ReLU on the raw NCHW block (f32, VPU); cast to the activation dtype
    #      BEFORE any expansion so im2col & friends are half-width on v6e/v7x.
    x = jnp.maximum(x_ref[...], 0.0).astype(act_dtype)       # (nb, Cin, H, W)

    # ---- NCHW -> NHWC done per-block in VMEM (tiny relayout, no HBM pass) ---
    x = _nchw_to_nhwc(x)                                      # (nb, H, W, Cin)

    # ---- stage-1 zero padding, in-register (pad=(p,0): height only; width is
    #      padded only by the stride slack needed for exact slice bounds) -----
    hp1 = (kh - 1) + stride * h1
    wp1 = (kw - 1) + stride * w1
    x = _pad_hw(x, pad_top=pad, pad_bot=hp1 - pad - H,
                pad_right=max(wp1 - W, 0))

    # ---- stage 1: fused depthwise + pointwise + BN1-scale as one MXU matmul -
    p1 = _im2col(x, kh, kw, stride, h1, w1)                   # (nb,h1,w1,kk*cin)
    y1 = jnp.dot(p1.reshape(nb * h1 * w1, kk * cin).astype(wc1_ref.dtype),
                 wc1_ref[...], preferred_element_type=jnp.float32)
    y1 = jnp.maximum(y1 + b1_ref[...], 0.0)                   # BN1 shift + ReLU (f32)

    # ---- stage 2 (stride 1): same fusion; cast mid activation before expansion
    m = _pad_hw(y1.astype(act_dtype).reshape(nb, h1, w1, cin),
                pad_top=pad, pad_bot=pad, pad_right=0)
    p2 = _im2col(m, kh, kw, 1, h2, w2)                        # (nb,h2,w2,kk*cin)
    y2 = jnp.dot(p2.reshape(nb * h2 * w2, kk * cin).astype(wc2_ref.dtype),
                 wc2_ref[...], preferred_element_type=jnp.float32)
    y2 = y2 + b2_ref[...]                                     # BN2 shift

    # ---- channel-major store: lane axis = h2*w2 (mostly unmasked vst) -------
    cout = o_ref.shape[1]
    o_ref[...] = jnp.transpose(
        y2.reshape(nb, h2 * w2, cout), (0, 2, 1)).astype(o_ref.dtype)


# ----------------------- generation-aware sizing -----------------------------
def _tpu_memory_model():
    """Best-effort (vmem_capacity_bytes, is_v5e) for tiling decisions."""
    kind = ""
    try:
        kind = jax.devices()[0].device_kind.lower()
    except Exception:
        pass
    vmem = None
    try:
        info = pltpu.get_tpu_info()
        vmem = int(getattr(info, "vmem_capacity_bytes", 0)) or None
    except Exception:
        vmem = None
    if vmem is None:
        # v7x: 64 MiB / TensorCore; v5e / v6e: 128 MiB.  Be conservative.
        vmem = (64 << 20) if "7" in kind else (128 << 20)
    is_v5e = ("v5e" in kind) or ("v5 lite" in kind) or ("v5lite" in kind)
    return vmem, is_v5e


def _per_image_live_bytes(Cin, Cout, H, W, kh, kw, stride, pad,
                          h1, w1, h2, w2, act_bytes):
    """Conservative per-image VMEM live-set estimate: a SUM of the kernel
    intermediates plus the double-buffered BlockSpec I/O buffers (not a max)."""
    f32 = 4
    kk = kh * kw
    hp1 = (kh - 1) + stride * h1
    wp1 = max((kw - 1) + stride * w1, W)
    hp2 = h1 + 2 * pad
    extra_cast = 2 if act_bytes == 4 else 0       # bf16 copy made at the dot (v5e path)
    work = (
        f32 * Cin * H * W                          # ReLU'd NCHW block (f32)
        + act_bytes * Cin * H * W                  # act-dtype copy of it
        + act_bytes * Cin * hp1 * wp1              # NHWC + padded stage-1 input
        + (act_bytes + extra_cast) * h1 * w1 * kk * Cin   # p1 im2col (+ dot cast)
        + f32 * h1 * w1 * Cin * 2                  # y1 (+ biased/ReLU copy)
        + act_bytes * hp2 * w1 * Cin               # padded stage-2 input
        + (act_bytes + extra_cast) * h2 * w2 * kk * Cin   # p2 im2col (+ dot cast)
        + f32 * h2 * w2 * Cout * 2                 # y2 (+ transposed copy)
    )
    io = 2 * f32 * Cin * H * W + 2 * f32 * Cout * h2 * w2   # 2x-buffered in/out blocks
    return work + io


# ------------------------------- wrapper ------------------------------------
def sepconv_forward(x_nchw, params, *, kernel_size, stride, padding, eps=1e-5,
                    weight_dtype=jnp.bfloat16):
    """Pallas SepConv forward. x_nchw: (N, Cin, H, W). Returns (N, Cout, H2, W2)."""
    if isinstance(kernel_size, tuple):
        kh, kw = kernel_size
    else:
        kh = kw = int(kernel_size)
    pad = int(padding)
    stride = int(stride)

    N, Cin, H, W = x_nchw.shape
    Cout = params["pw2"].shape[0]
    kk = kh * kw

    h1 = (H + 2 * pad - kh) // stride + 1
    w1 = (W - kw) // stride + 1
    h2 = h1 + 2 * pad - kh + 1
    w2 = w1 - kw + 1

    # No wrapper-side layout change: the NCHW block is handed to the kernel
    # as-is and the tiny per-block relayout happens in VMEM.
    x = x_nchw.astype(jnp.float32)

    # ---- fold depthwise * pointwise * BN-scale into a single (K, C) weight.
    #      Product is computed in f32 and rounded to weight_dtype exactly once.
    s1 = params["bn1_gamma"] / jnp.sqrt(params["bn1_var"] + eps)
    b1 = (params["bn1_beta"] - params["bn1_mean"] * s1).reshape(1, Cin)
    b1 = b1.astype(jnp.float32)
    s2 = params["bn2_gamma"] / jnp.sqrt(params["bn2_var"] + eps)
    b2 = (params["bn2_beta"] - params["bn2_mean"] * s2).reshape(1, Cout)
    b2 = b2.astype(jnp.float32)

    dw1 = params["dw1"][:, 0]                     # (Cin, kh, kw)
    pw1 = params["pw1"][:, :, 0, 0]               # (Cin_out, Cin_in)
    wc1 = jnp.einsum("chw,oc->hwco", dw1, pw1 * s1[:, None])
    wc1 = wc1.reshape(kk * Cin, Cin).astype(weight_dtype)

    dw2 = params["dw2"][:, 0]                     # (Cin, kh, kw)
    pw2 = params["pw2"][:, :, 0, 0]               # (Cout, Cin)
    wc2 = jnp.einsum("chw,oc->hwco", dw2, pw2 * s2[:, None])
    wc2 = wc2.reshape(kk * Cin, Cout).astype(weight_dtype)

    # ---- generation-aware activation dtype, batch block and VMEM limit ------
    vmem_cap, is_v5e = _tpu_memory_model()
    act_dtype = jnp.float32 if is_v5e else jnp.bfloat16   # v5e packed-bf16 caveat
    act_bytes = 4 if is_v5e else 2

    per_img = _per_image_live_bytes(Cin, Cout, H, W, kh, kw, stride, pad,
                                    h1, w1, h2, w2, act_bytes)
    w_itemsize = 2 if weight_dtype == jnp.bfloat16 else 4
    weight_bytes = 2 * w_itemsize * (kk * Cin * Cin + kk * Cin * Cout) \
        + 2 * 4 * (Cin + Cout)
    budget = max(vmem_cap // 4, 8 << 20)          # v7x: ~16 MiB; v5e/v6e: ~32 MiB

    # At least min(N, 2) grid steps so v7x's two TensorCores both get work
    # (and the BlockSpec pipeline has something to overlap on v5e/v6e).
    min_steps = min(N, 2)
    nb = 1
    for d in range(1, N + 1):
        if N % d:
            continue
        if (N // d) < min_steps:
            break
        if d * per_img + weight_bytes <= budget:
            nb = d

    need = nb * per_img + weight_bytes
    vmem_limit = int(min(max(2 * need + (4 << 20), 32 << 20),
                         int(0.9 * vmem_cap)))

    cost = pl.CostEstimate(
        flops=int(2 * N * kk * Cin * (h1 * w1 * Cin + h2 * w2 * Cout)),
        transcendentals=0,
        bytes_accessed=int(4 * N * (Cin * H * W + Cout * h2 * w2)
                           + w_itemsize * kk * Cin * (Cin + Cout)
                           + 4 * (Cin + Cout)))

    kernel = functools.partial(
        _sepconv_kernel, kh=kh, kw=kw, stride=stride, pad=pad,
        h1=h1, w1=w1, h2=h2, w2=w2, act_dtype=act_dtype)

    out = pl.pallas_call(
        kernel,
        out_shape=jax.ShapeDtypeStruct((N, Cout, h2 * w2), jnp.float32),
        grid_spec=pltpu.PrefetchScalarGridSpec(
            num_scalar_prefetch=0,
            grid=(N // nb,),
            in_specs=[
                pl.BlockSpec((nb, Cin, H, W), lambda n: (n, 0, 0, 0)),
                # Constant index maps: weights/biases DMA once, stay resident.
                pl.BlockSpec((kk * Cin, Cin), lambda n: (0, 0)),
                pl.BlockSpec((1, Cin), lambda n: (0, 0)),
                pl.BlockSpec((kk * Cin, Cout), lambda n: (0, 0)),
                pl.BlockSpec((1, Cout), lambda n: (0, 0)),
            ],
            out_specs=pl.BlockSpec((nb, Cout, h2 * w2), lambda n: (n, 0, 0)),
        ),
        compiler_params=pltpu.CompilerParams(
            dimension_semantics=("parallel",),
            vmem_limit_bytes=vmem_limit),
        cost_estimate=cost,
    )(x, wc1, b1, wc2, b2)

    # Channel-major kernel output -> NCHW is just a reshape (no transpose pass).
    return out.reshape(N, Cout, h2, w2)


# -------------------------- pure-JAX reference -------------------------------
def sepconv_reference(x, params, *, kernel_size, stride, padding, eps=1e-5):
    if isinstance(kernel_size, tuple):
        kh, kw = kernel_size
    else:
        kh = kw = int(kernel_size)

    def dwconv(y, w, s):
        return jax.lax.conv_general_dilated(
            y, w, (s, s), ((padding, padding), (0, 0)),
            dimension_numbers=("NCHW", "OIHW", "NCHW"),
            feature_group_count=y.shape[1])

    def pwconv(y, w):
        return jax.lax.conv_general_dilated(
            y, w, (1, 1), ((0, 0), (0, 0)),
            dimension_numbers=("NCHW", "OIHW", "NCHW"))

    def bn(y, g, b, m, v):
        inv = g / jnp.sqrt(v + eps)
        return y * inv[None, :, None, None] + (b - m * inv)[None, :, None, None]

    y = jnp.maximum(x, 0.0)
    y = dwconv(y, params["dw1"], stride)
    y = pwconv(y, params["pw1"])
    y = bn(y, params["bn1_gamma"], params["bn1_beta"],
           params["bn1_mean"], params["bn1_var"])
    y = jnp.maximum(y, 0.0)
    y = dwconv(y, params["dw2"], 1)
    y = pwconv(y, params["pw2"])
    y = bn(y, params["bn2_gamma"], params["bn2_beta"],
           params["bn2_mean"], params["bn2_var"])
    return y


def make_params(key, C_in, C_out, kh, kw):
    ks = jax.random.split(key, 12)
    return {
        "dw1": 0.2 * jax.random.normal(ks[0], (C_in, 1, kh, kw), jnp.float32),
        "pw1": 0.2 * jax.random.normal(ks[1], (C_in, C_in, 1, 1), jnp.float32),
        "dw2": 0.2 * jax.random.normal(ks[2], (C_in, 1, kh, kw), jnp.float32),
        "pw2": 0.2 * jax.random.normal(ks[3], (C_out, C_in, 1, 1), jnp.float32),
        "bn1_gamma": 1.0 + 0.1 * jax.random.normal(ks[4], (C_in,), jnp.float32),
        "bn1_beta": 0.1 * jax.random.normal(ks[5], (C_in,), jnp.float32),
        "bn1_mean": 0.1 * jax.random.normal(ks[6], (C_in,), jnp.float32),
        "bn1_var": jax.random.uniform(ks[7], (C_in,), jnp.float32, 0.5, 1.5),
        "bn2_gamma": 1.0 + 0.1 * jax.random.normal(ks[8], (C_out,), jnp.float32),
        "bn2_beta": 0.1 * jax.random.normal(ks[9], (C_out,), jnp.float32),
        "bn2_mean": 0.1 * jax.random.normal(ks[10], (C_out,), jnp.float32),
        "bn2_var": jax.random.uniform(ks[11], (C_out,), jnp.float32, 0.5, 1.5),
    }


if __name__ == "__main__":
    key = jax.random.PRNGKey(0)
    kx, kp = jax.random.split(key)

    N, C_in, H, W = 2, 4, 16, 16
    C_out = 8
    kernel_size, stride, padding = 3, 1, 1   # pad=(1,0): height padded, width not

    x = jax.random.normal(kx, (N, C_in, H, W), jnp.float32)
    params = make_params(kp, C_in, C_out, kernel_size, kernel_size)

    out = sepconv_forward(x, params, kernel_size=kernel_size,
                          stride=stride, padding=padding)
    out = jax.block_until_ready(out)

    ref = sepconv_reference(x, params, kernel_size=kernel_size,
                            stride=stride, padding=padding)
    ref = jax.block_until_ready(ref)

    assert out.shape == ref.shape, (out.shape, ref.shape)
    max_err = float(jnp.max(jnp.abs(out - ref)))
    # bf16 MXU operands (f32 accumulation) vs the f32 reference -> relaxed tol.
    if not jnp.allclose(out, ref, rtol=2e-2, atol=2e-2):
        raise AssertionError(f"Pallas SepConv mismatch vs reference, max|err|={max_err}")

    print("KERNEL_OK")
</pallas_src>

<mosaic_0001>
module attributes {stable_mosaic.version = 11 : i64} {
  func.func @_sepconv_kernel(%arg0: i32, %arg1: memref<1x4x16x16xf32, #tpu.memory_space<vmem>>, %arg2: memref<36x4xbf16, #tpu.memory_space<vmem>>, %arg3: memref<1x4xf32, #tpu.memory_space<vmem>>, %arg4: memref<36x8xbf16, #tpu.memory_space<vmem>>, %arg5: memref<1x8xf32, #tpu.memory_space<vmem>>, %arg6: memref<1x8x192xf32, #tpu.memory_space<vmem>>) attributes {dimension_semantics = [#tpu.dimension_semantics<parallel>], iteration_bounds = array<i64: 2>, scalar_prefetch = 0 : i64, scratch_operands = 0 : i64, tpu.core_type = #tpu.core_type<tc>, window_params = [{transform_indices = @transform_0, window_bounds = array<i64: 1, 4, 16, 16>}, {pipeline_mode = #tpu.pipeline_mode<synchronous>, transform_indices = @transform_1, window_bounds = array<i64: 36, 4>}, {pipeline_mode = #tpu.pipeline_mode<synchronous>, transform_indices = @transform_2, window_bounds = array<i64: 1, 4>}, {pipeline_mode = #tpu.pipeline_mode<synchronous>, transform_indices = @transform_3, window_bounds = array<i64: 36, 8>}, {pipeline_mode = #tpu.pipeline_mode<synchronous>, transform_indices = @transform_4, window_bounds = array<i64: 1, 8>}, {transform_indices = @transform_5, window_bounds = array<i64: 1, 8, 192>}]} {
    %c0 = arith.constant 0 : index
    %c0_0 = arith.constant 0 : index
    %c0_1 = arith.constant 0 : index
    %c0_2 = arith.constant 0 : index
    %0 = vector.load %arg1[%c0, %c0_0, %c0_1, %c0_2] : memref<1x4x16x16xf32, #tpu.memory_space<vmem>>, vector<1x4x16x16xf32>
    %cst = arith.constant 0.000000e+00 : f32
    %1 = vector.broadcast %cst : f32 to vector<1x4x16x16xf32>
    %2 = arith.maximumf %0, %1 : vector<1x4x16x16xf32>
    %3 = arith.truncf %2 : vector<1x4x16x16xf32> to vector<1x4x16x16xbf16>
    %4 = vector.extract_strided_slice %3 {offsets = [0, 0, 0, 0], sizes = [1, 1, 16, 16], strides = [1, 1, 1, 1]} : vector<1x4x16x16xbf16> to vector<1x1x16x16xbf16>
    %5 = vector.shape_cast %4 : vector<1x1x16x16xbf16> to vector<1x16x16xbf16>
    %6 = vector.shape_cast %5 : vector<1x16x16xbf16> to vector<1x16x16x1xbf16>
    %7 = vector.extract_strided_slice %3 {offsets = [0, 1, 0, 0], sizes = [1, 1, 16, 16], strides = [1, 1, 1, 1]} : vector<1x4x16x16xbf16> to vector<1x1x16x16xbf16>
    %8 = vector.shape_cast %7 : vector<1x1x16x16xbf16> to vector<1x16x16xbf16>
    %9 = vector.shape_cast %8 : vector<1x16x16xbf16> to vector<1x16x16x1xbf16>
    %10 = vector.extract_strided_slice %3 {offsets = [0, 2, 0, 0], sizes = [1, 1, 16, 16], strides = [1, 1, 1, 1]} : vector<1x4x16x16xbf16> to vector<1x1x16x16xbf16>
    %11 = vector.shape_cast %10 : vector<1x1x16x16xbf16> to vector<1x16x16xbf16>
    %12 = vector.shape_cast %11 : vector<1x16x16xbf16> to vector<1x16x16x1xbf16>
    %13 = vector.extract_strided_slice %3 {offsets = [0, 3, 0, 0], sizes = [1, 1, 16, 16], strides = [1, 1, 1, 1]} : vector<1x4x16x16xbf16> to vector<1x1x16x16xbf16>
    %14 = vector.shape_cast %13 : vector<1x1x16x16xbf16> to vector<1x16x16xbf16>
    %15 = vector.shape_cast %14 : vector<1x16x16xbf16> to vector<1x16x16x1xbf16>
    %16 = tpu.concatenate %6, %9, %12, %15 in 3 : vector<1x16x16x1xbf16>, vector<1x16x16x1xbf16>, vector<1x16x16x1xbf16>, vector<1x16x16x1xbf16> -> vector<1x16x16x4xbf16>
    %cst_3 = arith.constant 0.000000e+00 : bf16
    %17 = vector.broadcast %cst_3 : bf16 to vector<1x1x16x4xbf16>
    %cst_4 = arith.constant 0.000000e+00 : bf16
    %18 = vector.broadcast %cst_4 : bf16 to vector<1x1x16x4xbf16>
    %19 = tpu.concatenate %17, %16, %18 in 1 : vector<1x1x16x4xbf16>, vector<1x16x16x4xbf16>, vector<1x1x16x4xbf16> -> vector<1x18x16x4xbf16>
    %20 = vector.extract_strided_slice %19 {offsets = [0, 0, 0, 0], sizes = [1, 16, 14, 4], strides = [1, 1, 1, 1]} : vector<1x18x16x4xbf16> to vector<1x16x14x4xbf16>
    %21 = vector.extract_strided_slice %19 {offsets = [0, 0, 1, 0], sizes = [1, 16, 14, 4], strides = [1, 1, 1, 1]} : vector<1x18x16x4xbf16> to vector<1x16x14x4xbf16>
    %22 = vector.extract_strided_slice %19 {offsets = [0, 0, 2, 0], sizes = [1, 16, 14, 4], strides = [1, 1, 1, 1]} : vector<1x18x16x4xbf16> to vector<1x16x14x4xbf16>
    %23 = vector.extract_strided_slice %19 {offsets = [0, 1, 0, 0], sizes = [1, 16, 14, 4], strides = [1, 1, 1, 1]} : vector<1x18x16x4xbf16> to vector<1x16x14x4xbf16>
    %24 = vector.extract_strided_slice %19 {offsets = [0, 1, 1, 0], sizes = [1, 16, 14, 4], strides = [1, 1, 1, 1]} : vector<1x18x16x4xbf16> to vector<1x16x14x4xbf16>
    %25 = vector.extract_strided_slice %19 {offsets = [0, 1, 2, 0], sizes = [1, 16, 14, 4], strides = [1, 1, 1, 1]} : vector<1x18x16x4xbf16> to vector<1x16x14x4xbf16>
    %26 = vector.extract_strided_slice %19 {offsets = [0, 2, 0, 0], sizes = [1, 16, 14, 4], strides = [1, 1, 1, 1]} : vector<1x18x16x4xbf16> to vector<1x16x14x4xbf16>
    %27 = vector.extract_strided_slice %19 {offsets = [0, 2, 1, 0], sizes = [1, 16, 14, 4], strides = [1, 1, 1, 1]} : vector<1x18x16x4xbf16> to vector<1x16x14x4xbf16>
    %28 = vector.extract_strided_slice %19 {offsets = [0, 2, 2, 0], sizes = [1, 16, 14, 4], strides = [1, 1, 1, 1]} : vector<1x18x16x4xbf16> to vector<1x16x14x4xbf16>
    %29 = tpu.concatenate %20, %21, %22, %23, %24, %25, %26, %27, %28 in 3 : vector<1x16x14x4xbf16>, vector<1x16x14x4xbf16>, vector<1x16x14x4xbf16>, vector<1x16x14x4xbf16>, vector<1x16x14x4xbf16>, vector<1x16x14x4xbf16>, vector<1x16x14x4xbf16>, vector<1x16x14x4xbf16>, vector<1x16x14x4xbf16> -> vector<1x16x14x36xbf16>
    %30 = vector.shape_cast %29 : vector<1x16x14x36xbf16> to vector<224x36xbf16>
    %c0_5 = arith.constant 0 : index
    %c0_6 = arith.constant 0 : index
    %31 = vector.load %arg2[%c0_5, %c0_6] : memref<36x4xbf16, #tpu.memory_space<vmem>>, vector<36x4xbf16>
    %cst_7 = arith.constant dense<0.000000e+00> : vector<224x4xf32>
    %32 = tpu.matmul %30, %31, %cst_7 {dimension_numbers = #tpu.dot_dimension_numbers<[1], [0], [0], [1], [0, 0, 1, 1], [], []>} : vector<224x36xbf16>, vector<36x4xbf16>, vector<224x4xf32> -> vector<224x4xf32>
    %c0_8 = arith.constant 0 : index
    %c0_9 = arith.constant 0 : index
    %33 = vector.load %arg3[%c0_8, %c0_9] : memref<1x4xf32, #tpu.memory_space<vmem>>, vector<1x4xf32>
    %34 = vector.broadcast %33 : vector<1x4xf32> to vector<224x4xf32>
    %35 = arith.addf %32, %34 : vector<224x4xf32>
    %cst_10 = arith.constant 0.000000e+00 : f32
    %36 = vector.broadcast %cst_10 : f32 to vector<224x4xf32>
    %37 = arith.maximumf %35, %36 : vector<224x4xf32>
    %38 = arith.truncf %37 : vector<224x4xf32> to vector<224x4xbf16>
    %39 = vector.shape_cast %38 : vector<224x4xbf16> to vector<1x16x14x4xbf16>
    %cst_11 = arith.constant 0.000000e+00 : bf16
    %40 = vector.broadcast %cst_11 : bf16 to vector<1x1x14x4xbf16>
    %cst_12 = arith.constant 0.000000e+00 : bf16
    %41 = vector.broadcast %cst_12 : bf16 to vector<1x1x14x4xbf16>
    %42 = tpu.concatenate %40, %39, %41 in 1 : vector<1x1x14x4xbf16>, vector<1x16x14x4xbf16>, vector<1x1x14x4xbf16> -> vector<1x18x14x4xbf16>
    %43 = vector.extract_strided_slice %42 {offsets = [0, 0, 0, 0], sizes = [1, 16, 12, 4], strides = [1, 1, 1, 1]} : vector<1x18x14x4xbf16> to vector<1x16x12x4xbf16>
    %44 = vector.extract_strided_slice %42 {offsets = [0, 0, 1, 0], sizes = [1, 16, 12, 4], strides = [1, 1, 1, 1]} : vector<1x18x14x4xbf16> to vector<1x16x12x4xbf16>
    %45 = vector.extract_strided_slice %42 {offsets = [0, 0, 2, 0], sizes = [1, 16, 12, 4], strides = [1, 1, 1, 1]} : vector<1x18x14x4xbf16> to vector<1x16x12x4xbf16>
    %46 = vector.extract_strided_slice %42 {offsets = [0, 1, 0, 0], sizes = [1, 16, 12, 4], strides = [1, 1, 1, 1]} : vector<1x18x14x4xbf16> to vector<1x16x12x4xbf16>
    %47 = vector.extract_strided_slice %42 {offsets = [0, 1, 1, 0], sizes = [1, 16, 12, 4], strides = [1, 1, 1, 1]} : vector<1x18x14x4xbf16> to vector<1x16x12x4xbf16>
    %48 = vector.extract_strided_slice %42 {offsets = [0, 1, 2, 0], sizes = [1, 16, 12, 4], strides = [1, 1, 1, 1]} : vector<1x18x14x4xbf16> to vector<1x16x12x4xbf16>
    %49 = vector.extract_strided_slice %42 {offsets = [0, 2, 0, 0], sizes = [1, 16, 12, 4], strides = [1, 1, 1, 1]} : vector<1x18x14x4xbf16> to vector<1x16x12x4xbf16>
    %50 = vector.extract_strided_slice %42 {offsets = [0, 2, 1, 0], sizes = [1, 16, 12, 4], strides = [1, 1, 1, 1]} : vector<1x18x14x4xbf16> to vector<1x16x12x4xbf16>
    %51 = vector.extract_strided_slice %42 {offsets = [0, 2, 2, 0], sizes = [1, 16, 12, 4], strides = [1, 1, 1, 1]} : vector<1x18x14x4xbf16> to vector<1x16x12x4xbf16>
    %52 = tpu.concatenate %43, %44, %45, %46, %47, %48, %49, %50, %51 in 3 : vector<1x16x12x4xbf16>, vector<1x16x12x4xbf16>, vector<1x16x12x4xbf16>, vector<1x16x12x4xbf16>, vector<1x16x12x4xbf16>, vector<1x16x12x4xbf16>, vector<1x16x12x4xbf16>, vector<1x16x12x4xbf16>, vector<1x16x12x4xbf16> -> vector<1x16x12x36xbf16>
    %53 = vector.shape_cast %52 : vector<1x16x12x36xbf16> to vector<192x36xbf16>
    %c0_13 = arith.constant 0 : index
    %c0_14 = arith.constant 0 : index
    %54 = vector.load %arg4[%c0_13, %c0_14] : memref<36x8xbf16, #tpu.memory_space<vmem>>, vector<36x8xbf16>
    %cst_15 = arith.constant dense<0.000000e+00> : vector<192x8xf32>
    %55 = tpu.matmul %53, %54, %cst_15 {dimension_numbers = #tpu.dot_dimension_numbers<[1], [0], [0], [1], [0, 0, 1, 1], [], []>} : vector<192x36xbf16>, vector<36x8xbf16>, vector<192x8xf32> -> vector<192x8xf32>
    %c0_16 = arith.constant 0 : index
    %c0_17 = arith.constant 0 : index
    %56 = vector.load %arg5[%c0_16, %c0_17] : memref<1x8xf32, #tpu.memory_space<vmem>>, vector<1x8xf32>
    %57 = vector.broadcast %56 : vector<1x8xf32> to vector<192x8xf32>
    %58 = arith.addf %55, %57 : vector<192x8xf32>
    %59 = vector.shape_cast %58 : vector<192x8xf32> to vector<1x192x8xf32>
    %60 = tpu.transpose %59, [0, 2, 1] : vector<1x192x8xf32> -> vector<1x8x192xf32>
    %c0_18 = arith.constant 0 : index
    %c0_19 = arith.constant 0 : index
    %c0_20 = arith.constant 0 : index
    %61 = vector.load %arg6[%c0_18, %c0_19, %c0_20] : memref<1x8x192xf32, #tpu.memory_space<vmem>>, vector<1x8x192xf32>
    tpu.vector_store %arg6[%c0_18, %c0_19, %c0_20], %60 {strides = array<i32>} : memref<1x8x192xf32, #tpu.memory_space<vmem>>, vector<1x8x192xf32>,
    return
  }
  func.func @transform_0(%arg0: i32) -> (i32, i32, i32, i32) {
    %c0_i32 = arith.constant 0 : i32
    %c0_i32_0 = arith.constant 0 : i32
    %c0_i32_1 = arith.constant 0 : i32
    %c0_i32_2 = arith.constant 0 : i32
    return %arg0, %c0_i32, %c0_i32_0, %c0_i32_1 : i32, i32, i32, i32
  }
  func.func @transform_1(%arg0: i32) -> (i32, i32) {
    %c0_i32 = arith.constant 0 : i32
    %c0_i32_0 = arith.constant 0 : i32
    %c0_i32_1 = arith.constant 0 : i32
    return %c0_i32, %c0_i32_0 : i32, i32
  }
  func.func @transform_2(%arg0: i32) -> (i32, i32) {
    %c0_i32 = arith.constant 0 : i32
    %c0_i32_0 = arith.constant 0 : i32
    %c0_i32_1 = arith.constant 0 : i32
    return %c0_i32, %c0_i32_0 : i32, i32
  }
  func.func @transform_3(%arg0: i32) -> (i32, i32) {
    %c0_i32 = arith.constant 0 : i32
    %c0_i32_0 = arith.constant 0 : i32
    %c0_i32_1 = arith.constant 0 : i32
    return %c0_i32, %c0_i32_0 : i32, i32
  }
  func.func @transform_4(%arg0: i32) -> (i32, i32) {
    %c0_i32 = arith.constant 0 : i32
    %c0_i32_0 = arith.constant 0 : i32
    %c0_i32_1 = arith.constant 0 : i32
    return %c0_i32, %c0_i32_0 : i32, i32
  }
  func.func @transform_5(%arg0: i32) -> (i32, i32, i32) {
    %c0_i32 = arith.constant 0 : i32
    %c0_i32_0 = arith.constant 0 : i32
    %c0_i32_1 = arith.constant 0 : i32
    return %arg0, %c0_i32, %c0_i32_0 : i32, i32, i32
  }
}

</mosaic_0001>

<llo_original>
// kernel: tpu_custom_call.1
$region0: #{tpu_custom_call.1}
  #allocation0 [shape = 'u32[]', space=smem, size = 0x4, offset = 0x4, fixed_abs, tag = 'smem constant byte address 0x4 - core index']
  #allocation1 [shape = 'u32[144,128]{1,0:T(1,128)}', space=vmem, size = 0x12000, scoped, tag = 'internal scratch']
  %s0 = inlined_call_operand.hbm [shape: f32[2,4,16,16], index: 0, kind: input, shape index: {}]
  %s1 = inlined_call_operand.vmem [shape: bf16[36,4], index: 1, kind: input, shape index: {}]
  %s2 = inlined_call_operand.vmem [shape: f32[1,4], index: 2, kind: input, shape index: {}]
  %s3 = inlined_call_operand.vmem [shape: bf16[36,8], index: 3, kind: input, shape index: {}]
  %s4 = inlined_call_operand.vmem [shape: f32[1,8], index: 4, kind: input, shape index: {}]
  %s5 = inlined_call_operand.hbm [shape: f32[2,8,192], index: 5, kind: output, shape index: {}]
  %s6 = sld [smem:[#allocation0]]
  $region57: #{tpu_custom_call.1} parent=0
    _
  %s8 = ssub.s32 1, %s6
  %s9 = scalar_select 0, %s8, %s6
  $region1: #{tpu_custom_call.1} parent=0
    #allocation2 [shape = 'u8[65536]{0}', space=vmem, size = 0x10000, scoped, tag = 'input window, operand 0']
    #allocation3 [shape = 's32[2]{0}', space=sflag, size = 0x8, scoped, tag = 'scoped memory for tpu_custom_call.1']
    #allocation4 [shape = 's32[2]{0}', space=sflag, size = 0x8, scoped, tag = 'scoped memory for tpu_custom_call.1']
    #allocation5 [shape = 'u8[16384]{0}', space=vmem, size = 0x4000, scoped, tag = 'output window, operand 0']
    %10 = vsyncpa [#allocation3], 0
    %s11 = scalar_lea.sflag [#allocation3], 1
    %12 = vsyncpa %s11, 0
    %13 = vsyncpa [#allocation4], 0
    %s14 = scalar_lea.sflag [#allocation4], 1
    %15 = vsyncpa %s14, 0
    loop: start=0, step=1, limit=4
    $region2: #{tpu_custom_call.1} parent=1 // loop_pre_header
      _
    $region3: #{tpu_custom_call.1} parent=1 // loop_header
      %s17 = sphi 0, %s21
      %p18 = scmp.ge.s32.totalorder %s17, 4
      %s27 = sphi 0, %s29
      %s30 = sphi 0, %s27
      %s31 = sphi 0, %s30
      %s47 = sphi 0, %s31
      %s51 = sphi 0, %s51
      %s53 = sphi 0, %s51
      %s54 = sphi 0, %s53
      %s68 = sphi 0, %s54
      %s72 = sphi 0, %s72
      %s74 = sphi 0, %s72
      %s75 = sphi 0, %s74
      %s89 = sphi 0, %s75
      %s93 = sphi 0, %s93
      %s95 = sphi 0, %s93
      %s96 = sphi 0, %s95
      %s110 = sphi 0, %s96
      %s114 = sphi 0, %s114
      %s116 = sphi 0, %s114
      %s117 = sphi 0, %s116
      %s131 = sphi 0, %s117
      %s137 = sphi 0, %s139
      %s140 = sphi 0, %s137
      %s141 = sphi 0, %s140
      %s157 = sphi 0, %s141
    $region4: #{tpu_custom_call.1} parent=1 // loop_header_branch
      %20 = sbr.rel (%p18) target = $region8
    $region5: #{tpu_custom_call.1} parent=1 // loop_body
      %s22 = ssub.s32 %s17, 1
      %s23 = ssub.s32 %s17, 2
      %s24 = sadd.s32 %s17, 1
      %s25 = ssub.s32 %s17, %s24
      %p26 = scmp.eq.s32.totalorder %s25, 0
      %s28 = sadd.s32 %s27, 1
      %s29 = scalar_select %p26, %s27, %s28
      %p32 = pneg %p26
      %p33 = scmp.eq.s32.totalorder %s17, 1
      %p34 = por %p32, %p33
      %p35 = scmp.ne.s32.totalorder %s27, %s30
      %p36 = scmp.eq.s32.totalorder %s17, 0
      %p37 = por %p35, %p36
      %p38 = scmp.ne.s32.totalorder %s27, %s30
      %p39 = scmp.eq.s32.totalorder %s22, 1
      %p40 = por %p38, %p39
      %p41 = scmp.ne.s32.totalorder %s30, %s31
      %p42 = scmp.eq.s32.totalorder %s22, 0
      %p43 = por %p41, %p42
      %p44 = scmp.ne.s32.totalorder %s30, %s31
      %p45 = scmp.eq.s32.totalorder %s23, 1
      %p46 = por %p44, %p45
      %p48 = scmp.ne.s32.totalorder %s31, %s47
      %p49 = scmp.eq.s32.totalorder %s23, 0
      %p50 = por %p48, %p49
      %s52 = sadd.s32 %s51, 1
      %p55 = scmp.eq.s32.totalorder %s17, 1
      %p56 = scmp.ne.s32.totalorder %s51, %s53
      %p57 = scmp.eq.s32.totalorder %s17, 0
      %p58 = por %p56, %p57
      %p59 = scmp.ne.s32.totalorder %s51, %s53
      %p60 = scmp.eq.s32.totalorder %s22, 1
      %p61 = por %p59, %p60
      %p62 = scmp.ne.s32.totalorder %s53, %s54
      %p63 = scmp.eq.s32.totalorder %s22, 0
      %p64 = por %p62, %p63
      %p65 = scmp.ne.s32.totalorder %s53, %s54
      %p66 = scmp.eq.s32.totalorder %s23, 1
      %p67 = por %p65, %p66
      %p69 = scmp.ne.s32.totalorder %s54, %s68
      %p70 = scmp.eq.s32.totalorder %s23, 0
      %p71 = por %p69, %p70
      %s73 = sadd.s32 %s72, 1
      %p76 = scmp.eq.s32.totalorder %s17, 1
      %p77 = scmp.ne.s32.totalorder %s72, %s74
      %p78 = scmp.eq.s32.totalorder %s17, 0
      %p79 = por %p77, %p78
      %p80 = scmp.ne.s32.totalorder %s72, %s74
      %p81 = scmp.eq.s32.totalorder %s22, 1
      %p82 = por %p80, %p81
      %p83 = scmp.ne.s32.totalorder %s74, %s75
      %p84 = scmp.eq.s32.totalorder %s22, 0
      %p85 = por %p83, %p84
      %p86 = scmp.ne.s32.totalorder %s74, %s75
      %p87 = scmp.eq.s32.totalorder %s23, 1
      %p88 = por %p86, %p87
      %p90 = scmp.ne.s32.totalorder %s75, %s89
      %p91 = scmp.eq.s32.totalorder %s23, 0
      %p92 = por %p90, %p91
      %s94 = sadd.s32 %s93, 1
      %p97 = scmp.eq.s32.totalorder %s17, 1
      %p98 = scmp.ne.s32.totalorder %s93, %s95
      %p99 = scmp.eq.s32.totalorder %s17, 0
      %p100 = por %p98, %p99
      %p101 = scmp.ne.s32.totalorder %s93, %s95
      %p102 = scmp.eq.s32.totalorder %s22, 1
      %p103 = por %p101, %p102
      %p104 = scmp.ne.s32.totalorder %s95, %s96
      %p105 = scmp.eq.s32.totalorder %s22, 0
      %p106 = por %p104, %p105
      %p107 = scmp.ne.s32.totalorder %s95, %s96
      %p108 = scmp.eq.s32.totalorder %s23, 1
      %p109 = por %p107, %p108
      %p111 = scmp.ne.s32.totalorder %s96, %s110
      %p112 = scmp.eq.s32.totalorder %s23, 0
      %p113 = por %p111, %p112
      %s115 = sadd.s32 %s114, 1
      %p118 = scmp.eq.s32.totalorder %s17, 1
      %p119 = scmp.ne.s32.totalorder %s114, %s116
      %p120 = scmp.eq.s32.totalorder %s17, 0
      %p121 = por %p119, %p120
      %p122 = scmp.ne.s32.totalorder %s114, %s116
      %p123 = scmp.eq.s32.totalorder %s22, 1
      %p124 = por %p122, %p123
      %p125 = scmp.ne.s32.totalorder %s116, %s117
      %p126 = scmp.eq.s32.totalorder %s22, 0
      %p127 = por %p125, %p126
      %p128 = scmp.ne.s32.totalorder %s116, %s117
      %p129 = scmp.eq.s32.totalorder %s23, 1
      %p130 = por %p128, %p129
      %p132 = scmp.ne.s32.totalorder %s117, %s131
      %p133 = scmp.eq.s32.totalorder %s23, 0
      %p134 = por %p132, %p133
      %s135 = ssub.s32 %s17, %s24
      %p136 = scmp.eq.s32.totalorder %s135, 0
      %s138 = sadd.s32 %s137, 1
      %s139 = scalar_select %p136, %s137, %s138
      %p142 = pneg %p136
      %p143 = scmp.eq.s32.totalorder %s17, 1
      %p144 = por %p142, %p143
      %p145 = scmp.ne.s32.totalorder %s137, %s140
      %p146 = scmp.eq.s32.totalorder %s17, 0
      %p147 = por %p145, %p146
      %p148 = scmp.ne.s32.totalorder %s137, %s140
      %p149 = scmp.eq.s32.totalorder %s22, 1
      %p150 = por %p148, %p149
      %p151 = scmp.ne.s32.totalorder %s140, %s141
      %p152 = scmp.eq.s32.totalorder %s22, 0
      %p153 = por %p151, %p152
      %p154 = scmp.ne.s32.totalorder %s140, %s141
      %p155 = scmp.eq.s32.totalorder %s23, 1
      %p156 = por %p154, %p155
      %p158 = scmp.ne.s32.totalorder %s141, %s157
      %p159 = scmp.eq.s32.totalorder %s23, 0
      %p160 = por %p158, %p159
      %p161 = scmp.le.s32.totalorder 1, %s17
      %p162 = scmp.lt.s32.totalorder %s17, 3
      %p163 = pnand %p161, %p162
      %p164 = pneg %p163
      // Predicated region
      $region9: #{tpu_custom_call.1} parent=5 // pred_check
        _
      $region10: #{tpu_custom_call.1} parent=5 // pred_check_branch
        %166 = sbr.rel (%p163) target = $region12
      $region11: #{tpu_custom_call.1} parent=5 // pred_region
        %s167 = ssub.s32 %s17, 1
        // Predicated region
        $region13: #{tpu_custom_call.1} parent=11 // pred_check
          %p168 = pneg %p64
        $region14: #{tpu_custom_call.1} parent=11 // pred_check_branch
          %170 = sbr.rel (%p168) target = $region16
        $region15: #{tpu_custom_call.1} parent=11 // pred_region
          _
        $region16: #{tpu_custom_call.1} parent=11 // pred_fallthru
          _
        // Predicated region
        $region17: #{tpu_custom_call.1} parent=11 // pred_check
          %p171 = pneg %p85
        $region18: #{tpu_custom_call.1} parent=11 // pred_check_branch
          %173 = sbr.rel (%p171) target = $region20
        $region19: #{tpu_custom_call.1} parent=11 // pred_region
          _
        $region20: #{tpu_custom_call.1} parent=11 // pred_fallthru
          _
        // Predicated region
        $region21: #{tpu_custom_call.1} parent=11 // pred_check
          %p174 = pneg %p106
        $region22: #{tpu_custom_call.1} parent=11 // pred_check_branch
          %176 = sbr.rel (%p174) target = $region24
        $region23: #{tpu_custom_call.1} parent=11 // pred_region
          _
        $region24: #{tpu_custom_call.1} parent=11 // pred_fallthru
          _
        // Predicated region
        $region25: #{tpu_custom_call.1} parent=11 // pred_check
          %p177 = pneg %p127
        $region26: #{tpu_custom_call.1} parent=11 // pred_check_branch
          %179 = sbr.rel (%p177) target = $region28
        $region27: #{tpu_custom_call.1} parent=11 // pred_region
          _
        $region28: #{tpu_custom_call.1} parent=11 // pred_fallthru
          _
      $region12: #{tpu_custom_call.1} parent=5 // pred_fallthru
        _
      %p180 = scmp.lt.s32.totalorder %s17, 2
      // Predicated region
      $region29: #{tpu_custom_call.1} parent=5 // pred_check
        %p181 = pneg %p180
      $region30: #{tpu_custom_call.1} parent=5 // pred_check_branch
        %183 = sbr.rel (%p181) target = $region32
      $region31: #{tpu_custom_call.1} parent=5 // pred_region
        // Predicated region
        $region33: #{tpu_custom_call.1} parent=31 // pred_check
          %p184 = pneg %p37
        $region34: #{tpu_custom_call.1} parent=31 // pred_check_branch
          %186 = sbr.rel (%p184) target = $region36
        $region35: #{tpu_custom_call.1} parent=31 // pred_region
          %s187 = sand.u32 %s27, 1
          %s188 = scalar_lea.sflag [#allocation3], %s187
          %s189 = sand.u32 %s27, 1
          %s190 = smul.addr %s189, 64
          %s191 = scalar_lea.vmem [#allocation2], %s190
          %s193 = ssub.s32 1024, 1024
          %194 = vsyncadd %s188, %s193
          %s195 = smul.addr %s17, 8
          %s196 = smul.addr %s195, 128
          %s197 = scalar_lea.hbm %s0, %s196
          %s198 = sshll.u32 %s191, 4
          %s199 = int_to_ptr.vmem [resolvable:$true] %s198
          %204 = dma.hbm_to_vmem [thread:$0]  %s197, 1024, %s199, %s188, 128, 128, 8
        $region36: #{tpu_custom_call.1} parent=31 // pred_fallthru
          _
      $region32: #{tpu_custom_call.1} parent=5 // pred_fallthru
        _
      %p205 = scmp.le.s32.totalorder 1, %s17
      %p206 = scmp.lt.s32.totalorder %s17, 3
      %p207 = pnand %p205, %p206
      %p208 = pneg %p207
      // Predicated region
      $region37: #{tpu_custom_call.1} parent=5 // pred_check
        _
      $region38: #{tpu_custom_call.1} parent=5 // pred_check_branch
        %210 = sbr.rel (%p207) target = $region40
      $region39: #{tpu_custom_call.1} parent=5 // pred_region
        %s211 = ssub.s32 %s17, 1
        %s212 = sand.u32 %s30, 1
        %s213 = scalar_lea.sflag [#allocation3], %s212
        %s214 = sand.u32 %s30, 1
        %s215 = smul.addr %s214, 64
        %s216 = scalar_lea.vmem [#allocation2], %s215
        // Predicated region
        $region41: #{tpu_custom_call.1} parent=39 // pred_check
          %p217 = pneg %p43
        $region42: #{tpu_custom_call.1} parent=39 // pred_check_branch
          %219 = sbr.rel (%p217) target = $region44
        $region43: #{tpu_custom_call.1} parent=39 // pred_region
          %220 = dma.done %s213, 1024
        $region44: #{tpu_custom_call.1} parent=39 // pred_fallthru
          _
        %s221 = sand.u32 %s30, 1
        %s222 = scalar_lea.sflag [#allocation3], %s221
        %s223 = sand.u32 %s30, 1
        %s224 = smul.addr %s223, 64
        %s225 = scalar_lea.vmem [#allocation2], %s224
        %p226 = pneg %p43
        %p227 = pneg %p40
        %p228 = pneg %p64
        %p229 = pneg %p61
        %p230 = pneg %p85
        %p231 = pneg %p82
        %p232 = pneg %p106
        %p233 = pneg %p103
        %p234 = pneg %p127
        %p235 = pneg %p124
        %p236 = pneg %p153
        %p237 = pneg %p150
        %s238 = sand.u32 %s140, 1
        %s239 = scalar_lea.sflag [#allocation4], %s238
        %s240 = sand.u32 %s140, 1
        %s241 = smul.addr %s240, 16
        %s242 = scalar_lea.vmem [#allocation5], %s241
        %v244 = vld [vmem:[%s216] sm:$0xff]
        %v245 = vld [vmem:[%s216 + $0x8] sm:$0xff]
        %v246 = vld [vmem:[%s216 + $0x10] sm:$0xff]
        %v247 = vld [vmem:[%s216 + $0x18] sm:$0xff]
        %v248 = vld [vmem:[%s216 + $0x20] sm:$0xff]
        %v249 = vld [vmem:[%s216 + $0x28] sm:$0xff]
        %v250 = vld [vmem:[%s216 + $0x30] sm:$0xff]
        %v251 = vld [vmem:[%s216 + $0x38] sm:$0xff]
        %v252 = vmax.f32 %v244, 0.0
        %v253 = vmax.f32 %v245, 0.0
        %v254 = vmax.f32 %v246, 0.0
        %v255 = vmax.f32 %v247, 0.0
        %v256 = vmax.f32 %v248, 0.0
        %v257 = vmax.f32 %v249, 0.0
        %v258 = vmax.f32 %v250, 0.0
        %v259 = vmax.f32 %v251, 0.0
        %v260 = vpack.c.bf16 %v253, %v252
        %v261 = vpack.c.bf16 %v255, %v254
        %v262 = vpack.c.bf16 %v257, %v256
        %v263 = vpack.c.bf16 %v259, %v258
        %v265 = vpack.i.b16 %v260, %v260
        %v267 = vlaneseq
        %v268 = vshrl.u32 %v267, 7
        %v269 = vsub.s32 0, %v268
        %v270 = vrot.slane %v265, %v269
        %272 = vbcast.lane.c.b16.xlu0 %v270, 256
        %v273 = vpop.permute.xlu0 %272
        %v274 = vshrl.u32 %v260, 16
        %v275 = vpack.i.b16 %v274, %v274
        %v277 = vlaneseq
        %v278 = vshrl.u32 %v277, 7
        %v279 = vsub.s32 0, %v278
        %v280 = vrot.slane %v275, %v279
        %282 = vbcast.lane.c.b16.xlu0 %v280, 256
        %v283 = vpop.permute.xlu0 %282
        %v284 = vlaneseq
        %v285 = vshrl.u32 %v284, 7
        %v286 = vsub.s32 1, %v285
        %v287 = vrot.slane %v265, %v286
        %289 = vbcast.lane.c.b16.xlu0 %v287, 256
        %v290 = vpop.permute.xlu0 %289
        %v291 = vlaneseq
        %v292 = vshrl.u32 %v291, 7
        %v293 = vsub.s32 1, %v292
        %v294 = vrot.slane %v275, %v293
        %296 = vbcast.lane.c.b16.xlu0 %v294, 256
        %v297 = vpop.permute.xlu0 %296
        %v298 = vlaneseq
        %v299 = vshrl.u32 %v298, 7
        %v300 = vsub.s32 2, %v299
        %v301 = vrot.slane %v265, %v300
        %303 = vbcast.lane.c.b16.xlu0 %v301, 256
        %v304 = vpop.permute.xlu0 %303
        %v305 = vlaneseq
        %v306 = vshrl.u32 %v305, 7
        %v307 = vsub.s32 2, %v306
        %v308 = vrot.slane %v275, %v307
        %310 = vbcast.lane.c.b16.xlu0 %v308, 256
        %v311 = vpop.permute.xlu0 %310
        %v312 = vlaneseq
        %v313 = vshrl.u32 %v312, 7
        %v314 = vsub.s32 3, %v313
        %v315 = vrot.slane %v265, %v314
        %317 = vbcast.lane.c.b16.xlu0 %v315, 256
        %v318 = vpop.permute.xlu0 %317
        %v319 = vlaneseq
        %v320 = vshrl.u32 %v319, 7
        %v321 = vsub.s32 3, %v320
        %v322 = vrot.slane %v275, %v321
        %324 = vbcast.lane.c.b16.xlu0 %v322, 256
        %v325 = vpop.permute.xlu0 %324
        %v326 = vlaneseq
        %v327 = vshrl.u32 %v326, 7
        %v328 = vsub.s32 4, %v327
        %v329 = vrot.slane %v265, %v328
        %331 = vbcast.lane.c.b16.xlu0 %v329, 256
        %v332 = vpop.permute.xlu0 %331
        %v333 = vlaneseq
        %v334 = vshrl.u32 %v333, 7
        %v335 = vsub.s32 4, %v334
        %v336 = vrot.slane %v275, %v335
        %338 = vbcast.lane.c.b16.xlu0 %v336, 256
        %v339 = vpop.permute.xlu0 %338
        %v340 = vlaneseq
        %v341 = vshrl.u32 %v340, 7
        %v342 = vsub.s32 5, %v341
        %v343 = vrot.slane %v265, %v342
        %345 = vbcast.lane.c.b16.xlu0 %v343, 256
        %v346 = vpop.permute.xlu0 %345
        %v347 = vlaneseq
        %v348 = vshrl.u32 %v347, 7
        %v349 = vsub.s32 5, %v348
        %v350 = vrot.slane %v275, %v349
        %352 = vbcast.lane.c.b16.xlu0 %v350, 256
        %v353 = vpop.permute.xlu0 %352
        %v354 = vlaneseq
        %v355 = vshrl.u32 %v354, 7
        %v356 = vsub.s32 6, %v355
        %v357 = vrot.slane %v265, %v356
        %359 = vbcast.lane.c.b16.xlu0 %v357, 256
        %v360 = vpop.permute.xlu0 %359
        %v361 = vlaneseq
        %v362 = vshrl.u32 %v361, 7
        %v363 = vsub.s32 6, %v362
        %v364 = vrot.slane %v275, %v363
        %366 = vbcast.lane.c.b16.xlu0 %v364, 256
        %v367 = vpop.permute.xlu0 %366
        %v368 = vlaneseq
        %v369 = vshrl.u32 %v368, 7
        %v370 = vsub.s32 7, %v369
        %v371 = vrot.slane %v265, %v370
        %373 = vbcast.lane.c.b16.xlu0 %v371, 256
        %v374 = vpop.permute.xlu0 %373
        %v375 = vlaneseq
        %v376 = vshrl.u32 %v375, 7
        %v377 = vsub.s32 7, %v376
        %v378 = vrot.slane %v275, %v377
        %380 = vbcast.lane.c.b16.xlu0 %v378, 256
        %v381 = vpop.permute.xlu0 %380
        %v383 = vpack.i.b16 %v261, %v261
        %v385 = vlaneseq
        %v386 = vshrl.u32 %v385, 7
        %v387 = vsub.s32 0, %v386
        %v388 = vrot.slane %v383, %v387
        %390 = vbcast.lane.c.b16.xlu0 %v388, 256
        %v391 = vpop.permute.xlu0 %390
        %v392 = vshrl.u32 %v261, 16
        %v393 = vpack.i.b16 %v392, %v392
        %v395 = vlaneseq
        %v396 = vshrl.u32 %v395, 7
        %v397 = vsub.s32 0, %v396
        %v398 = vrot.slane %v393, %v397
        %400 = vbcast.lane.c.b16.xlu0 %v398, 256
        %v401 = vpop.permute.xlu0 %400
        %v402 = vlaneseq
        %v403 = vshrl.u32 %v402, 7
        %v404 = vsub.s32 1, %v403
        %v405 = vrot.slane %v383, %v404
        %407 = vbcast.lane.c.b16.xlu0 %v405, 256
        %v408 = vpop.permute.xlu0 %407
        %v409 = vlaneseq
        %v410 = vshrl.u32 %v409, 7
        %v411 = vsub.s32 1, %v410
        %v412 = vrot.slane %v393, %v411
        %414 = vbcast.lane.c.b16.xlu0 %v412, 256
        %v415 = vpop.permute.xlu0 %414
        %v416 = vlaneseq
        %v417 = vshrl.u32 %v416, 7
        %v418 = vsub.s32 2, %v417
        %v419 = vrot.slane %v383, %v418
        %421 = vbcast.lane.c.b16.xlu0 %v419, 256
        %v422 = vpop.permute.xlu0 %421
        %v423 = vlaneseq
        %v424 = vshrl.u32 %v423, 7
        %v425 = vsub.s32 2, %v424
        %v426 = vrot.slane %v393, %v425
        %428 = vbcast.lane.c.b16.xlu0 %v426, 256
        %v429 = vpop.permute.xlu0 %428
        %v430 = vlaneseq
        %v431 = vshrl.u32 %v430, 7
        %v432 = vsub.s32 3, %v431
        %v433 = vrot.slane %v383, %v432
        %435 = vbcast.lane.c.b16.xlu0 %v433, 256
        %v436 = vpop.permute.xlu0 %435
        %v437 = vlaneseq
        %v438 = vshrl.u32 %v437, 7
        %v439 = vsub.s32 3, %v438
        %v440 = vrot.slane %v393, %v439
        %442 = vbcast.lane.c.b16.xlu0 %v440, 256
        %v443 = vpop.permute.xlu0 %442
        %v444 = vlaneseq
        %v445 = vshrl.u32 %v444, 7
        %v446 = vsub.s32 4, %v445
        %v447 = vrot.slane %v383, %v446
        %449 = vbcast.lane.c.b16.xlu0 %v447, 256
        %v450 = vpop.permute.xlu0 %449
        %v451 = vlaneseq
        %v452 = vshrl.u32 %v451, 7
        %v453 = vsub.s32 4, %v452
        %v454 = vrot.slane %v393, %v453
        %456 = vbcast.lane.c.b16.xlu0 %v454, 256
        %v457 = vpop.permute.xlu0 %456
        %v458 = vlaneseq
        %v459 = vshrl.u32 %v458, 7
        %v460 = vsub.s32 5, %v459
        %v461 = vrot.slane %v383, %v460
        %463 = vbcast.lane.c.b16.xlu0 %v461, 256
        %v464 = vpop.permute.xlu0 %463
        %v465 = vlaneseq
        %v466 = vshrl.u32 %v465, 7
        %v467 = vsub.s32 5, %v466
        %v468 = vrot.slane %v393, %v467
        %470 = vbcast.lane.c.b16.xlu0 %v468, 256
        %v471 = vpop.permute.xlu0 %470
        %v472 = vlaneseq
        %v473 = vshrl.u32 %v472, 7
        %v474 = vsub.s32 6, %v473
        %v475 = vrot.slane %v383, %v474
        %477 = vbcast.lane.c.b16.xlu0 %v475, 256
        %v478 = vpop.permute.xlu0 %477
        %v479 = vlaneseq
        %v480 = vshrl.u32 %v479, 7
        %v481 = vsub.s32 6, %v480
        %v482 = vrot.slane %v393, %v481
        %484 = vbcast.lane.c.b16.xlu0 %v482, 256
        %v485 = vpop.permute.xlu0 %484
        %v486 = vlaneseq
        %v487 = vshrl.u32 %v486, 7
        %v488 = vsub.s32 7, %v487
        %v489 = vrot.slane %v383, %v488
        %491 = vbcast.lane.c.b16.xlu0 %v489, 256
        %v492 = vpop.permute.xlu0 %491
        %v493 = vlaneseq
        %v494 = vshrl.u32 %v493, 7
        %v495 = vsub.s32 7, %v494
        %v496 = vrot.slane %v393, %v495
        %498 = vbcast.lane.c.b16.xlu0 %v496, 256
        %v499 = vpop.permute.xlu0 %498
        %v501 = vpack.i.b16 %v262, %v262
        %v503 = vlaneseq
        %v504 = vshrl.u32 %v503, 7
        %v505 = vsub.s32 0, %v504
        %v506 = vrot.slane %v501, %v505
        %508 = vbcast.lane.c.b16.xlu0 %v506, 256
        %v509 = vpop.permute.xlu0 %508
        %v510 = vshrl.u32 %v262, 16
        %v511 = vpack.i.b16 %v510, %v510
        %v513 = vlaneseq
        %v514 = vshrl.u32 %v513, 7
        %v515 = vsub.s32 0, %v514
        %v516 = vrot.slane %v511, %v515
        %518 = vbcast.lane.c.b16.xlu0 %v516, 256
        %v519 = vpop.permute.xlu0 %518
        %v520 = vlaneseq
        %v521 = vshrl.u32 %v520, 7
        %v522 = vsub.s32 1, %v521
        %v523 = vrot.slane %v501, %v522
        %525 = vbcast.lane.c.b16.xlu0 %v523, 256
        %v526 = vpop.permute.xlu0 %525
        %v527 = vlaneseq
        %v528 = vshrl.u32 %v527, 7
        %v529 = vsub.s32 1, %v528
        %v530 = vrot.slane %v511, %v529
        %532 = vbcast.lane.c.b16.xlu0 %v530, 256
        %v533 = vpop.permute.xlu0 %532
        %v534 = vlaneseq
        %v535 = vshrl.u32 %v534, 7
        %v536 = vsub.s32 2, %v535
        %v537 = vrot.slane %v501, %v536
        %539 = vbcast.lane.c.b16.xlu0 %v537, 256
        %v540 = vpop.permute.xlu0 %539
        %v541 = vlaneseq
        %v542 = vshrl.u32 %v541, 7
        %v543 = vsub.s32 2, %v542
        %v544 = vrot.slane %v511, %v543
        %546 = vbcast.lane.c.b16.xlu0 %v544, 256
        %v547 = vpop.permute.xlu0 %546
        %v548 = vlaneseq
        %v549 = vshrl.u32 %v548, 7
        %v550 = vsub.s32 3, %v549
        %v551 = vrot.slane %v501, %v550
        %553 = vbcast.lane.c.b16.xlu0 %v551, 256
        %v554 = vpop.permute.xlu0 %553
        %v555 = vlaneseq
        %v556 = vshrl.u32 %v555, 7
        %v557 = vsub.s32 3, %v556
        %v558 = vrot.slane %v511, %v557
        %560 = vbcast.lane.c.b16.xlu0 %v558, 256
        %v561 = vpop.permute.xlu0 %560
        %v562 = vlaneseq
        %v563 = vshrl.u32 %v562, 7
        %v564 = vsub.s32 4, %v563
        %v565 = vrot.slane %v501, %v564
        %567 = vbcast.lane.c.b16.xlu0 %v565, 256
        %v568 = vpop.permute.xlu0 %567
        %v569 = vlaneseq
        %v570 = vshrl.u32 %v569, 7
        %v571 = vsub.s32 4, %v570
        %v572 = vrot.slane %v511, %v571
        %574 = vbcast.lane.c.b16.xlu0 %v572, 256
        %v575 = vpop.permute.xlu0 %574
        %v576 = vlaneseq
        %v577 = vshrl.u32 %v576, 7
        %v578 = vsub.s32 5, %v577
        %v579 = vrot.slane %v501, %v578
        %581 = vbcast.lane.c.b16.xlu0 %v579, 256
        %v582 = vpop.permute.xlu0 %581
        %v583 = vlaneseq
        %v584 = vshrl.u32 %v583, 7
        %v585 = vsub.s32 5, %v584
        %v586 = vrot.slane %v511, %v585
        %588 = vbcast.lane.c.b16.xlu0 %v586, 256
        %v589 = vpop.permute.xlu0 %588
        %v590 = vlaneseq
        %v591 = vshrl.u32 %v590, 7
        %v592 = vsub.s32 6, %v591
        %v593 = vrot.slane %v501, %v592
        %595 = vbcast.lane.c.b16.xlu0 %v593, 256
        %v596 = vpop.permute.xlu0 %595
        %v597 = vlaneseq
        %v598 = vshrl.u32 %v597, 7
        %v599 = vsub.s32 6, %v598
        %v600 = vrot.slane %v511, %v599
        %602 = vbcast.lane.c.b16.xlu0 %v600, 256
        %v603 = vpop.permute.xlu0 %602
        %v604 = vlaneseq
        %v605 = vshrl.u32 %v604, 7
        %v606 = vsub.s32 7, %v605
        %v607 = vrot.slane %v501, %v606
        %609 = vbcast.lane.c.b16.xlu0 %v607, 256
        %v610 = vpop.permute.xlu0 %609
        %v611 = vlaneseq
        %v612 = vshrl.u32 %v611, 7
        %v613 = vsub.s32 7, %v612
        %v614 = vrot.slane %v511, %v613
        %616 = vbcast.lane.c.b16.xlu0 %v614, 256
        %v617 = vpop.permute.xlu0 %616
        %v619 = vpack.i.b16 %v263, %v263
        %v621 = vlaneseq
        %v622 = vshrl.u32 %v621, 7
        %v623 = vsub.s32 0, %v622
        %v624 = vrot.slane %v619, %v623
        %626 = vbcast.lane.c.b16.xlu0 %v624, 256
        %v627 = vpop.permute.xlu0 %626
        %v628 = vshrl.u32 %v263, 16
        %v629 = vpack.i.b16 %v628, %v628
        %v631 = vlaneseq
        %v632 = vshrl.u32 %v631, 7
        %v633 = vsub.s32 0, %v632
        %v634 = vrot.slane %v629, %v633
        %636 = vbcast.lane.c.b16.xlu0 %v634, 256
        %v637 = vpop.permute.xlu0 %636
        %v638 = vlaneseq
        %v639 = vshrl.u32 %v638, 7
        %v640 = vsub.s32 1, %v639
        %v641 = vrot.slane %v619, %v640
        %643 = vbcast.lane.c.b16.xlu0 %v641, 256
        %v644 = vpop.permute.xlu0 %643
        %v645 = vlaneseq
        %v646 = vshrl.u32 %v645, 7
        %v647 = vsub.s32 1, %v646
        %v648 = vrot.slane %v629, %v647
        %650 = vbcast.lane.c.b16.xlu0 %v648, 256
        %v651 = vpop.permute.xlu0 %650
        %v652 = vlaneseq
        %v653 = vshrl.u32 %v652, 7
        %v654 = vsub.s32 2, %v653
        %v655 = vrot.slane %v619, %v654
        %657 = vbcast.lane.c.b16.xlu0 %v655, 256
        %v658 = vpop.permute.xlu0 %657
        %v659 = vlaneseq
        %v660 = vshrl.u32 %v659, 7
        %v661 = vsub.s32 2, %v660
        %v662 = vrot.slane %v629, %v661
        %664 = vbcast.lane.c.b16.xlu0 %v662, 256
        %v665 = vpop.permute.xlu0 %664
        %v666 = vlaneseq
        %v667 = vshrl.u32 %v666, 7
        %v668 = vsub.s32 3, %v667
        %v669 = vrot.slane %v619, %v668
        %671 = vbcast.lane.c.b16.xlu0 %v669, 256
        %v672 = vpop.permute.xlu0 %671
        %v673 = vlaneseq
        %v674 = vshrl.u32 %v673, 7
        %v675 = vsub.s32 3, %v674
        %v676 = vrot.slane %v629, %v675
        %678 = vbcast.lane.c.b16.xlu0 %v676, 256
        %v679 = vpop.permute.xlu0 %678
        %v680 = vlaneseq
        %v681 = vshrl.u32 %v680, 7
        %v682 = vsub.s32 4, %v681
        %v683 = vrot.slane %v619, %v682
        %685 = vbcast.lane.c.b16.xlu0 %v683, 256
        %v686 = vpop.permute.xlu0 %685
        %v687 = vlaneseq
        %v688 = vshrl.u32 %v687, 7
        %v689 = vsub.s32 4, %v688
        %v690 = vrot.slane %v629, %v689
        %692 = vbcast.lane.c.b16.xlu0 %v690, 256
        %v693 = vpop.permute.xlu0 %692
        %v694 = vlaneseq
        %v695 = vshrl.u32 %v694, 7
        %v696 = vsub.s32 5, %v695
        %v697 = vrot.slane %v619, %v696
        %699 = vbcast.lane.c.b16.xlu0 %v697, 256
        %v700 = vpop.permute.xlu0 %699
        %v701 = vlaneseq
        %v702 = vshrl.u32 %v701, 7
        %v703 = vsub.s32 5, %v702
        %v704 = vrot.slane %v629, %v703
        %706 = vbcast.lane.c.b16.xlu0 %v704, 256
        %v707 = vpop.permute.xlu0 %706
        %v708 = vlaneseq
        %v709 = vshrl.u32 %v708, 7
        %v710 = vsub.s32 6, %v709
        %v711 = vrot.slane %v619, %v710
        %713 = vbcast.lane.c.b16.xlu0 %v711, 256
        %v714 = vpop.permute.xlu0 %713
        %v715 = vlaneseq
        %v716 = vshrl.u32 %v715, 7
        %v717 = vsub.s32 6, %v716
        %v718 = vrot.slane %v629, %v717
        %720 = vbcast.lane.c.b16.xlu0 %v718, 256
        %v721 = vpop.permute.xlu0 %720
        %v722 = vlaneseq
        %v723 = vshrl.u32 %v722, 7
        %v724 = vsub.s32 7, %v723
        %v725 = vrot.slane %v619, %v724
        %727 = vbcast.lane.c.b16.xlu0 %v725, 256
        %v728 = vpop.permute.xlu0 %727
        %v729 = vlaneseq
        %v730 = vshrl.u32 %v729, 7
        %v731 = vsub.s32 7, %v730
        %v732 = vrot.slane %v629, %v731
        %734 = vbcast.lane.c.b16.xlu0 %v732, 256
        %v735 = vpop.permute.xlu0 %734
        %vm736 = vcmask 7168
        %v739 = vsel %vm736, %v273, %v391
        %v742 = vsel %vm736, %v283, %v401
        %v745 = vsel %vm736, %v290, %v408
        %v748 = vsel %vm736, %v297, %v415
        %v751 = vsel %vm736, %v304, %v422
        %v754 = vsel %vm736, %v311, %v429
        %v757 = vsel %vm736, %v318, %v436
        %v760 = vsel %vm736, %v325, %v443
        %v763 = vsel %vm736, %v332, %v450
        %v766 = vsel %vm736, %v339, %v457
        %v769 = vsel %vm736, %v346, %v464
        %v772 = vsel %vm736, %v353, %v471
        %v775 = vsel %vm736, %v360, %v478
        %v778 = vsel %vm736, %v367, %v485
        %v781 = vsel %vm736, %v374, %v492
        %v784 = vsel %vm736, %v381, %v499
        %vm785 = vcmask 15360
        %v787 = vsel %vm785, %v739, %v509
        %v789 = vsel %vm785, %v742, %v519
        %v791 = vsel %vm785, %v745, %v526
        %v793 = vsel %vm785, %v748, %v533
        %v795 = vsel %vm785, %v751, %v540
        %v797 = vsel %vm785, %v754, %v547
        %v799 = vsel %vm785, %v757, %v554
        %v801 = vsel %vm785, %v760, %v561
        %v803 = vsel %vm785, %v763, %v568
        %v805 = vsel %vm785, %v766, %v575
        %v807 = vsel %vm785, %v769, %v582
        %v809 = vsel %vm785, %v772, %v589
        %v811 = vsel %vm785, %v775, %v596
        %v813 = vsel %vm785, %v778, %v603
        %v815 = vsel %vm785, %v781, %v610
        %v817 = vsel %vm785, %v784, %v617
        %vm818 = vcmask 23552
        %v820 = vsel %vm818, %v787, %v627
        %v822 = vsel %vm818, %v789, %v637
        %v824 = vsel %vm818, %v791, %v644
        %v826 = vsel %vm818, %v793, %v651
        %v828 = vsel %vm818, %v795, %v658
        %v830 = vsel %vm818, %v797, %v665
        %v832 = vsel %vm818, %v799, %v672
        %v834 = vsel %vm818, %v801, %v679
        %v836 = vsel %vm818, %v803, %v686
        %v838 = vsel %vm818, %v805, %v693
        %v840 = vsel %vm818, %v807, %v700
        %v842 = vsel %vm818, %v809, %v707
        %v844 = vsel %vm818, %v811, %v714
        %v846 = vsel %vm818, %v813, %v721
        %v848 = vsel %vm818, %v815, %v728
        %v850 = vsel %vm818, %v817, %v735
        %v852 = vshrl.u32 0, 16
        %v854 = vshll.u32 0, 16
        %v856 = vrot.slane %v854, 1
        %v857 = vor.u32 %v852, %v856
        %v858 = vshrl.u32 %v820, 16
        %v860 = vshll.u32 %v820, 16
        %v862 = vrot.slane %v860, 1
        %v863 = vor.u32 %v858, %v862
        %v864 = vshrl.u32 %v822, 16
        %v866 = vshll.u32 %v822, 16
        %v868 = vrot.slane %v866, 1
        %v869 = vor.u32 %v864, %v868
        %v870 = vshrl.u32 %v824, 16
        %v872 = vshll.u32 %v824, 16
        %v874 = vrot.slane %v872, 1
        %v875 = vor.u32 %v870, %v874
        %v876 = vshrl.u32 %v826, 16
        %v878 = vshll.u32 %v826, 16
        %v880 = vrot.slane %v878, 1
        %v881 = vor.u32 %v876, %v880
        %v882 = vshrl.u32 %v828, 16
        %v884 = vshll.u32 %v828, 16
        %v886 = vrot.slane %v884, 1
        %v887 = vor.u32 %v882, %v886
        %v888 = vshrl.u32 %v830, 16
        %v890 = vshll.u32 %v830, 16
        %v892 = vrot.slane %v890, 1
        %v893 = vor.u32 %v888, %v892
        %v894 = vshrl.u32 %v832, 16
        %v896 = vshll.u32 %v832, 16
        %v898 = vrot.slane %v896, 1
        %v899 = vor.u32 %v894, %v898
        %v900 = vshrl.u32 %v834, 16
        %v902 = vshll.u32 %v834, 16
        %v904 = vrot.slane %v902, 1
        %v905 = vor.u32 %v900, %v904
        %v906 = vshrl.u32 %v836, 16
        %v908 = vshll.u32 %v836, 16
        %v910 = vrot.slane %v908, 1
        %v911 = vor.u32 %v906, %v910
        %v912 = vshrl.u32 %v838, 16
        %v914 = vshll.u32 %v838, 16
        %v916 = vrot.slane %v914, 1
        %v917 = vor.u32 %v912, %v916
        %v918 = vshrl.u32 %v840, 16
        %v920 = vshll.u32 %v840, 16
        %v922 = vrot.slane %v920, 1
        %v923 = vor.u32 %v918, %v922
        %v924 = vshrl.u32 %v842, 16
        %v926 = vshll.u32 %v842, 16
        %v928 = vrot.slane %v926, 1
        %v929 = vor.u32 %v924, %v928
        %v930 = vshrl.u32 %v844, 16
        %v932 = vshll.u32 %v844, 16
        %v934 = vrot.slane %v932, 1
        %v935 = vor.u32 %v930, %v934
        %v936 = vshrl.u32 %v846, 16
        %v938 = vshll.u32 %v846, 16
        %v940 = vrot.slane %v938, 1
        %v941 = vor.u32 %v936, %v940
        %v942 = vshrl.u32 %v848, 16
        %v944 = vshll.u32 %v848, 16
        %v946 = vrot.slane %v944, 1
        %v947 = vor.u32 %v942, %v946
        %948 = vrot.lane.b32.xlu0 %v857, 4
        %v949 = vpop.permute.xlu0 %948
        %950 = vrot.lane.b32.xlu0 %v863, 4
        %v951 = vpop.permute.xlu0 %950
        %952 = vrot.lane.b32.xlu0 %v869, 4
        %v953 = vpop.permute.xlu0 %952
        %954 = vrot.lane.b32.xlu0 %v875, 4
        %v955 = vpop.permute.xlu0 %954
        %956 = vrot.lane.b32.xlu0 %v881, 4
        %v957 = vpop.permute.xlu0 %956
        %958 = vrot.lane.b32.xlu0 %v887, 4
        %v959 = vpop.permute.xlu0 %958
        %960 = vrot.lane.b32.xlu0 %v893, 4
        %v961 = vpop.permute.xlu0 %960
        %962 = vrot.lane.b32.xlu0 %v899, 4
        %v963 = vpop.permute.xlu0 %962
        %964 = vrot.lane.b32.xlu0 %v905, 4
        %v965 = vpop.permute.xlu0 %964
        %966 = vrot.lane.b32.xlu0 %v911, 4
        %v967 = vpop.permute.xlu0 %966
        %968 = vrot.lane.b32.xlu0 %v917, 4
        %v969 = vpop.permute.xlu0 %968
        %970 = vrot.lane.b32.xlu0 %v923, 4
        %v971 = vpop.permute.xlu0 %970
        %972 = vrot.lane.b32.xlu0 %v929, 4
        %v973 = vpop.permute.xlu0 %972
        %974 = vrot.lane.b32.xlu0 %v935, 4
        %v975 = vpop.permute.xlu0 %974
        %976 = vrot.lane.b32.xlu0 %v941, 4
        %v977 = vpop.permute.xlu0 %976
        %978 = vrot.lane.b32.xlu0 %v947, 4
        %v979 = vpop.permute.xlu0 %978
        %v996 = vrot.slane 0, 1
        %v997 = vrot.slane %v820, 1
        %v998 = vrot.slane %v822, 1
        %v999 = vrot.slane %v824, 1
        %v1000 = vrot.slane %v826, 1
        %v1001 = vrot.slane %v828, 1
        %v1002 = vrot.slane %v830, 1
        %v1003 = vrot.slane %v832, 1
        %v1004 = vrot.slane %v834, 1
        %v1005 = vrot.slane %v836, 1
        %v1006 = vrot.slane %v838, 1
        %v1007 = vrot.slane %v840, 1
        %v1008 = vrot.slane %v842, 1
        %v1009 = vrot.slane %v844, 1
        %v1010 = vrot.slane %v846, 1
        %v1011 = vrot.slane %v848, 1
        %1012 = vrot.lane.b32.xlu0 %v996, 8
        %v1013 = vpop.permute.xlu0 %1012
        %1014 = vrot.lane.b32.xlu0 %v997, 8
        %v1015 = vpop.permute.xlu0 %1014
        %1016 = vrot.lane.b32.xlu0 %v998, 8
        %v1017 = vpop.permute.xlu0 %1016
        %1018 = vrot.lane.b32.xlu0 %v999, 8
        %v1019 = vpop.permute.xlu0 %1018
        %1020 = vrot.lane.b32.xlu0 %v1000, 8
        %v1021 = vpop.permute.xlu0 %1020
        %1022 = vrot.lane.b32.xlu0 %v1001, 8
        %v1023 = vpop.permute.xlu0 %1022
        %1024 = vrot.lane.b32.xlu0 %v1002, 8
        %v1025 = vpop.permute.xlu0 %1024
        %1026 = vrot.lane.b32.xlu0 %v1003, 8
        %v1027 = vpop.permute.xlu0 %1026
        %1028 = vrot.lane.b32.xlu0 %v1004, 8
        %v1029 = vpop.permute.xlu0 %1028
        %1030 = vrot.lane.b32.xlu0 %v1005, 8
        %v1031 = vpop.permute.xlu0 %1030
        %1032 = vrot.lane.b32.xlu0 %v1006, 8
        %v1033 = vpop.permute.xlu0 %1032
        %1034 = vrot.lane.b32.xlu0 %v1007, 8
        %v1035 = vpop.permute.xlu0 %1034
        %1036 = vrot.lane.b32.xlu0 %v1008, 8
        %v1037 = vpop.permute.xlu0 %1036
        %1038 = vrot.lane.b32.xlu0 %v1009, 8
        %v1039 = vpop.permute.xlu0 %1038
        %1040 = vrot.lane.b32.xlu0 %v1010, 8
        %v1041 = vpop.permute.xlu0 %1040
        %1042 = vrot.lane.b32.xlu0 %v1011, 8
        %v1043 = vpop.permute.xlu0 %1042
        %1045 = vrot.lane.b32.xlu0 %v820, 12
        %v1046 = vpop.permute.xlu0 %1045
        %1047 = vrot.lane.b32.xlu0 %v822, 12
        %v1048 = vpop.permute.xlu0 %1047
        %1049 = vrot.lane.b32.xlu0 %v824, 12
        %v1050 = vpop.permute.xlu0 %1049
        %1051 = vrot.lane.b32.xlu0 %v826, 12
        %v1052 = vpop.permute.xlu0 %1051
        %1053 = vrot.lane.b32.xlu0 %v828, 12
        %v1054 = vpop.permute.xlu0 %1053
        %1055 = vrot.lane.b32.xlu0 %v830, 12
        %v1056 = vpop.permute.xlu0 %1055
        %1057 = vrot.lane.b32.xlu0 %v832, 12
        %v1058 = vpop.permute.xlu0 %1057
        %1059 = vrot.lane.b32.xlu0 %v834, 12
        %v1060 = vpop.permute.xlu0 %1059
        %1061 = vrot.lane.b32.xlu0 %v836, 12
        %v1062 = vpop.permute.xlu0 %1061
        %1063 = vrot.lane.b32.xlu0 %v838, 12
        %v1064 = vpop.permute.xlu0 %1063
        %1065 = vrot.lane.b32.xlu0 %v840, 12
        %v1066 = vpop.permute.xlu0 %1065
        %1067 = vrot.lane.b32.xlu0 %v842, 12
        %v1068 = vpop.permute.xlu0 %1067
        %1069 = vrot.lane.b32.xlu0 %v844, 12
        %v1070 = vpop.permute.xlu0 %1069
        %1071 = vrot.lane.b32.xlu0 %v846, 12
        %v1072 = vpop.permute.xlu0 %1071
        %1073 = vrot.lane.b32.xlu0 %v848, 12
        %v1074 = vpop.permute.xlu0 %1073
        %1075 = vrot.lane.b32.xlu0 %v850, 12
        %v1076 = vpop.permute.xlu0 %1075
        %v1077 = vshrl.u32 %v850, 16
        %v1079 = vshll.u32 %v850, 16
        %v1081 = vrot.slane %v1079, 1
        %v1082 = vor.u32 %v1077, %v1081
        %1083 = vrot.lane.b32.xlu0 %v863, 16
        %v1084 = vpop.permute.xlu0 %1083
        %1085 = vrot.lane.b32.xlu0 %v869, 16
        %v1086 = vpop.permute.xlu0 %1085
        %1087 = vrot.lane.b32.xlu0 %v875, 16
        %v1088 = vpop.permute.xlu0 %1087
        %1089 = vrot.lane.b32.xlu0 %v881, 16
        %v1090 = vpop.permute.xlu0 %1089
        %1091 = vrot.lane.b32.xlu0 %v887, 16
        %v1092 = vpop.permute.xlu0 %1091
        %1093 = vrot.lane.b32.xlu0 %v893, 16
        %v1094 = vpop.permute.xlu0 %1093
        %1095 = vrot.lane.b32.xlu0 %v899, 16
        %v1096 = vpop.permute.xlu0 %1095
        %1097 = vrot.lane.b32.xlu0 %v905, 16
        %v1098 = vpop.permute.xlu0 %1097
        %1099 = vrot.lane.b32.xlu0 %v911, 16
        %v1100 = vpop.permute.xlu0 %1099
        %1101 = vrot.lane.b32.xlu0 %v917, 16
        %v1102 = vpop.permute.xlu0 %1101
        %1103 = vrot.lane.b32.xlu0 %v923, 16
        %v1104 = vpop.permute.xlu0 %1103
        %1105 = vrot.lane.b32.xlu0 %v929, 16
        %v1106 = vpop.permute.xlu0 %1105
        %1107 = vrot.lane.b32.xlu0 %v935, 16
        %v1108 = vpop.permute.xlu0 %1107
        %1109 = vrot.lane.b32.xlu0 %v941, 16
        %v1110 = vpop.permute.xlu0 %1109
        %1111 = vrot.lane.b32.xlu0 %v947, 16
        %v1112 = vpop.permute.xlu0 %1111
        %1113 = vrot.lane.b32.xlu0 %v1082, 16
        %v1114 = vpop.permute.xlu0 %1113
        %v1115 = vrot.slane %v850, 1
        %1116 = vrot.lane.b32.xlu0 %v997, 20
        %v1117 = vpop.permute.xlu0 %1116
        %1118 = vrot.lane.b32.xlu0 %v998, 20
        %v1119 = vpop.permute.xlu0 %1118
        %1120 = vrot.lane.b32.xlu0 %v999, 20
        %v1121 = vpop.permute.xlu0 %1120
        %1122 = vrot.lane.b32.xlu0 %v1000, 20
        %v1123 = vpop.permute.xlu0 %1122
        %1124 = vrot.lane.b32.xlu0 %v1001, 20
        %v1125 = vpop.permute.xlu0 %1124
        %1126 = vrot.lane.b32.xlu0 %v1002, 20
        %v1127 = vpop.permute.xlu0 %1126
        %1128 = vrot.lane.b32.xlu0 %v1003, 20
        %v1129 = vpop.permute.xlu0 %1128
        %1130 = vrot.lane.b32.xlu0 %v1004, 20
        %v1131 = vpop.permute.xlu0 %1130
        %1132 = vrot.lane.b32.xlu0 %v1005, 20
        %v1133 = vpop.permute.xlu0 %1132
        %1134 = vrot.lane.b32.xlu0 %v1006, 20
        %v1135 = vpop.permute.xlu0 %1134
        %1136 = vrot.lane.b32.xlu0 %v1007, 20
        %v1137 = vpop.permute.xlu0 %1136
        %1138 = vrot.lane.b32.xlu0 %v1008, 20
        %v1139 = vpop.permute.xlu0 %1138
        %1140 = vrot.lane.b32.xlu0 %v1009, 20
        %v1141 = vpop.permute.xlu0 %1140
        %1142 = vrot.lane.b32.xlu0 %v1010, 20
        %v1143 = vpop.permute.xlu0 %1142
        %1144 = vrot.lane.b32.xlu0 %v1011, 20
        %v1145 = vpop.permute.xlu0 %1144
        %1146 = vrot.lane.b32.xlu0 %v1115, 20
        %v1147 = vpop.permute.xlu0 %1146
        %1148 = vrot.lane.b32.xlu0 %v822, 24
        %v1149 = vpop.permute.xlu0 %1148
        %1150 = vrot.lane.b32.xlu0 %v824, 24
        %v1151 = vpop.permute.xlu0 %1150
        %1152 = vrot.lane.b32.xlu0 %v826, 24
        %v1153 = vpop.permute.xlu0 %1152
        %1154 = vrot.lane.b32.xlu0 %v828, 24
        %v1155 = vpop.permute.xlu0 %1154
        %1156 = vrot.lane.b32.xlu0 %v830, 24
        %v1157 = vpop.permute.xlu0 %1156
        %1158 = vrot.lane.b32.xlu0 %v832, 24
        %v1159 = vpop.permute.xlu0 %1158
        %1160 = vrot.lane.b32.xlu0 %v834, 24
        %v1161 = vpop.permute.xlu0 %1160
        %1162 = vrot.lane.b32.xlu0 %v836, 24
        %v1163 = vpop.permute.xlu0 %1162
        %1164 = vrot.lane.b32.xlu0 %v838, 24
        %v1165 = vpop.permute.xlu0 %1164
        %1166 = vrot.lane.b32.xlu0 %v840, 24
        %v1167 = vpop.permute.xlu0 %1166
        %1168 = vrot.lane.b32.xlu0 %v842, 24
        %v1169 = vpop.permute.xlu0 %1168
        %1170 = vrot.lane.b32.xlu0 %v844, 24
        %v1171 = vpop.permute.xlu0 %1170
        %1172 = vrot.lane.b32.xlu0 %v846, 24
        %v1173 = vpop.permute.xlu0 %1172
        %1174 = vrot.lane.b32.xlu0 %v848, 24
        %v1175 = vpop.permute.xlu0 %1174
        %1176 = vrot.lane.b32.xlu0 %v850, 24
        %v1177 = vpop.permute.xlu0 %1176
        %1178 = vrot.lane.b32.xlu0 0, 24
        %v1179 = vpop.permute.xlu0 %1178
        %1180 = vrot.lane.b32.xlu0 %v869, 28
        %v1181 = vpop.permute.xlu0 %1180
        %1182 = vrot.lane.b32.xlu0 %v875, 28
        %v1183 = vpop.permute.xlu0 %1182
        %1184 = vrot.lane.b32.xlu0 %v881, 28
        %v1185 = vpop.permute.xlu0 %1184
        %1186 = vrot.lane.b32.xlu0 %v887, 28
        %v1187 = vpop.permute.xlu0 %1186
        %1188 = vrot.lane.b32.xlu0 %v893, 28
        %v1189 = vpop.permute.xlu0 %1188
        %1190 = vrot.lane.b32.xlu0 %v899, 28
        %v1191 = vpop.permute.xlu0 %1190
        %1192 = vrot.lane.b32.xlu0 %v905, 28
        %v1193 = vpop.permute.xlu0 %1192
        %1194 = vrot.lane.b32.xlu0 %v911, 28
        %v1195 = vpop.permute.xlu0 %1194
        %1196 = vrot.lane.b32.xlu0 %v917, 28
        %v1197 = vpop.permute.xlu0 %1196
        %1198 = vrot.lane.b32.xlu0 %v923, 28
        %v1199 = vpop.permute.xlu0 %1198
        %1200 = vrot.lane.b32.xlu0 %v929, 28
        %v1201 = vpop.permute.xlu0 %1200
        %1202 = vrot.lane.b32.xlu0 %v935, 28
        %v1203 = vpop.permute.xlu0 %1202
        %1204 = vrot.lane.b32.xlu0 %v941, 28
        %v1205 = vpop.permute.xlu0 %1204
        %1206 = vrot.lane.b32.xlu0 %v947, 28
        %v1207 = vpop.permute.xlu0 %1206
        %1208 = vrot.lane.b32.xlu0 %v1082, 28
        %v1209 = vpop.permute.xlu0 %1208
        %1210 = vrot.lane.b32.xlu0 %v857, 28
        %v1211 = vpop.permute.xlu0 %1210
        %1212 = vrot.lane.b32.xlu0 %v998, 32
        %v1213 = vpop.permute.xlu0 %1212
        %1214 = vrot.lane.b32.xlu0 %v999, 32
        %v1215 = vpop.permute.xlu0 %1214
        %1216 = vrot.lane.b32.xlu0 %v1000, 32
        %v1217 = vpop.permute.xlu0 %1216
        %1218 = vrot.lane.b32.xlu0 %v1001, 32
        %v1219 = vpop.permute.xlu0 %1218
        %1220 = vrot.lane.b32.xlu0 %v1002, 32
        %v1221 = vpop.permute.xlu0 %1220
        %1222 = vrot.lane.b32.xlu0 %v1003, 32
        %v1223 = vpop.permute.xlu0 %1222
        %1224 = vrot.lane.b32.xlu0 %v1004, 32
        %v1225 = vpop.permute.xlu0 %1224
        %1226 = vrot.lane.b32.xlu0 %v1005, 32
        %v1227 = vpop.permute.xlu0 %1226
        %1228 = vrot.lane.b32.xlu0 %v1006, 32
        %v1229 = vpop.permute.xlu0 %1228
        %1230 = vrot.lane.b32.xlu0 %v1007, 32
        %v1231 = vpop.permute.xlu0 %1230
        %1232 = vrot.lane.b32.xlu0 %v1008, 32
        %v1233 = vpop.permute.xlu0 %1232
        %1234 = vrot.lane.b32.xlu0 %v1009, 32
        %v1235 = vpop.permute.xlu0 %1234
        %1236 = vrot.lane.b32.xlu0 %v1010, 32
        %v1237 = vpop.permute.xlu0 %1236
        %1238 = vrot.lane.b32.xlu0 %v1011, 32
        %v1239 = vpop.permute.xlu0 %1238
        %1240 = vrot.lane.b32.xlu0 %v1115, 32
        %v1241 = vpop.permute.xlu0 %1240
        %1242 = vrot.lane.b32.xlu0 %v996, 32
        %v1243 = vpop.permute.xlu0 %1242
        %vm1244 = vcmask 31744
        %v1246 = vsel %vm1244, 0, %v949
        %v1248 = vsel %vm1244, %v820, %v951
        %v1250 = vsel %vm1244, %v822, %v953
        %v1252 = vsel %vm1244, %v824, %v955
        %v1254 = vsel %vm1244, %v826, %v957
        %v1256 = vsel %vm1244, %v828, %v959
        %v1258 = vsel %vm1244, %v830, %v961
        %v1260 = vsel %vm1244, %v832, %v963
        %v1262 = vsel %vm1244, %v834, %v965
        %v1264 = vsel %vm1244, %v836, %v967
        %v1266 = vsel %vm1244, %v838, %v969
        %v1268 = vsel %vm1244, %v840, %v971
        %v1270 = vsel %vm1244, %v842, %v973
        %v1272 = vsel %vm1244, %v844, %v975
        %v1274 = vsel %vm1244, %v846, %v977
        %v1276 = vsel %vm1244, %v848, %v979
        %vm1277 = vcmask 64512
        %v1279 = vsel %vm1277, %v1246, %v1013
        %v1281 = vsel %vm1277, %v1248, %v1015
        %v1283 = vsel %vm1277, %v1250, %v1017
        %v1285 = vsel %vm1277, %v1252, %v1019
        %v1287 = vsel %vm1277, %v1254, %v1021
        %v1289 = vsel %vm1277, %v1256, %v1023
        %v1291 = vsel %vm1277, %v1258, %v1025
        %v1293 = vsel %vm1277, %v1260, %v1027
        %v1295 = vsel %vm1277, %v1262, %v1029
        %v1297 = vsel %vm1277, %v1264, %v1031
        %v1299 = vsel %vm1277, %v1266, %v1033
        %v1301 = vsel %vm1277, %v1268, %v1035
        %v1303 = vsel %vm1277, %v1270, %v1037
        %v1305 = vsel %vm1277, %v1272, %v1039
        %v1307 = vsel %vm1277, %v1274, %v1041
        %v1309 = vsel %vm1277, %v1276, %v1043
        %vm1310 = vcmask 97280
        %v1312 = vsel %vm1310, %v1279, %v1046
        %v1314 = vsel %vm1310, %v1281, %v1048
        %v1316 = vsel %vm1310, %v1283, %v1050
        %v1318 = vsel %vm1310, %v1285, %v1052
        %v1320 = vsel %vm1310, %v1287, %v1054
        %v1322 = vsel %vm1310, %v1289, %v1056
        %v1324 = vsel %vm1310, %v1291, %v1058
        %v1326 = vsel %vm1310, %v1293, %v1060
        %v1328 = vsel %vm1310, %v1295, %v1062
        %v1330 = vsel %vm1310, %v1297, %v1064
        %v1332 = vsel %vm1310, %v1299, %v1066
        %v1334 = vsel %vm1310, %v1301, %v1068
        %v1336 = vsel %vm1310, %v1303, %v1070
        %v1338 = vsel %vm1310, %v1305, %v1072
        %v1340 = vsel %vm1310, %v1307, %v1074
        %v1342 = vsel %vm1310, %v1309, %v1076
        %vm1343 = vcmask 130048
        %v1345 = vsel %vm1343, %v1312, %v1084
        %v1347 = vsel %vm1343, %v1314, %v1086
        %v1349 = vsel %vm1343, %v1316, %v1088
        %v1351 = vsel %vm1343, %v1318, %v1090
        %v1353 = vsel %vm1343, %v1320, %v1092
        %v1355 = vsel %vm1343, %v1322, %v1094
        %v1357 = vsel %vm1343, %v1324, %v1096
        %v1359 = vsel %vm1343, %v1326, %v1098
        %v1361 = vsel %vm1343, %v1328, %v1100
        %v1363 = vsel %vm1343, %v1330, %v1102
        %v1365 = vsel %vm1343, %v1332, %v1104
        %v1367 = vsel %vm1343, %v1334, %v1106
        %v1369 = vsel %vm1343, %v1336, %v1108
        %v1371 = vsel %vm1343, %v1338, %v1110
        %v1373 = vsel %vm1343, %v1340, %v1112
        %v1375 = vsel %vm1343, %v1342, %v1114
        %vm1376 = vcmask 162816
        %v1378 = vsel %vm1376, %v1345, %v1117
        %v1380 = vsel %vm1376, %v1347, %v1119
        %v1382 = vsel %vm1376, %v1349, %v1121
        %v1384 = vsel %vm1376, %v1351, %v1123
        %v1386 = vsel %vm1376, %v1353, %v1125
        %v1388 = vsel %vm1376, %v1355, %v1127
        %v1390 = vsel %vm1376, %v1357, %v1129
        %v1392 = vsel %vm1376, %v1359, %v1131
        %v1394 = vsel %vm1376, %v1361, %v1133
        %v1396 = vsel %vm1376, %v1363, %v1135
        %v1398 = vsel %vm1376, %v1365, %v1137
        %v1400 = vsel %vm1376, %v1367, %v1139
        %v1402 = vsel %vm1376, %v1369, %v1141
        %v1404 = vsel %vm1376, %v1371, %v1143
        %v1406 = vsel %vm1376, %v1373, %v1145
        %v1408 = vsel %vm1376, %v1375, %v1147
        %vm1409 = vcmask 195584
        %v1411 = vsel %vm1409, %v1378, %v1149
        %v1413 = vsel %vm1409, %v1380, %v1151
        %v1415 = vsel %vm1409, %v1382, %v1153
        %v1417 = vsel %vm1409, %v1384, %v1155
        %v1419 = vsel %vm1409, %v1386, %v1157
        %v1421 = vsel %vm1409, %v1388, %v1159
        %v1423 = vsel %vm1409, %v1390, %v1161
        %v1425 = vsel %vm1409, %v1392, %v1163
        %v1427 = vsel %vm1409, %v1394, %v1165
        %v1429 = vsel %vm1409, %v1396, %v1167
        %v1431 = vsel %vm1409, %v1398, %v1169
        %v1433 = vsel %vm1409, %v1400, %v1171
        %v1435 = vsel %vm1409, %v1402, %v1173
        %v1437 = vsel %vm1409, %v1404, %v1175
        %v1439 = vsel %vm1409, %v1406, %v1177
        %v1441 = vsel %vm1409, %v1408, %v1179
        %vm1442 = vcmask 228352
        %v1444 = vsel %vm1442, %v1411, %v1181
        %v1446 = vsel %vm1442, %v1413, %v1183
        %v1448 = vsel %vm1442, %v1415, %v1185
        %v1450 = vsel %vm1442, %v1417, %v1187
        %v1452 = vsel %vm1442, %v1419, %v1189
        %v1454 = vsel %vm1442, %v1421, %v1191
        %v1456 = vsel %vm1442, %v1423, %v1193
        %v1458 = vsel %vm1442, %v1425, %v1195
        %v1460 = vsel %vm1442, %v1427, %v1197
        %v1462 = vsel %vm1442, %v1429, %v1199
        %v1464 = vsel %vm1442, %v1431, %v1201
        %v1466 = vsel %vm1442, %v1433, %v1203
        %v1468 = vsel %vm1442, %v1435, %v1205
        %v1470 = vsel %vm1442, %v1437, %v1207
        %v1472 = vsel %vm1442, %v1439, %v1209
        %v1474 = vsel %vm1442, %v1441, %v1211
        %vm1475 = vcmask 261120
        %v1477 = vsel %vm1475, %v1444, %v1213
        %v1479 = vsel %vm1475, %v1446, %v1215
        %v1481 = vsel %vm1475, %v1448, %v1217
        %v1483 = vsel %vm1475, %v1450, %v1219
        %v1485 = vsel %vm1475, %v1452, %v1221
        %v1487 = vsel %vm1475, %v1454, %v1223
        %v1489 = vsel %vm1475, %v1456, %v1225
        %v1491 = vsel %vm1475, %v1458, %v1227
        %v1493 = vsel %vm1475, %v1460, %v1229
        %v1495 = vsel %vm1475, %v1462, %v1231
        %v1497 = vsel %vm1475, %v1464, %v1233
        %v1499 = vsel %vm1475, %v1466, %v1235
        %v1501 = vsel %vm1475, %v1468, %v1237
        %v1503 = vsel %vm1475, %v1470, %v1239
        %v1505 = vsel %vm1475, %v1472, %v1241
        %v1507 = vsel %vm1475, %v1474, %v1243
        %v1524 = vcombine.high %v1477, %v1477
        %v1526 = vunpack.c.l.s4 1966171168
        %v1527 = vunpack.c.0.s8 %v1526
        %v1528 = vlaneseq
        %v1529 = vshrl.u32 %v1528, 7
        %v1530 = vsub.s32 %v1527, %v1529
        %v1531 = vrot.slane %v1477, %v1530
        %v1533 = vunpack.c.l.s4 1966171168
        %v1534 = vunpack.c.0.s8 %v1533
        %v1535 = vlaneseq
        %v1536 = vshrl.u32 %v1535, 7
        %v1537 = vsub.s32 %v1534, %v1536
        %v1538 = vrot.slane %v1524, %v1537
        %v1539 = vcombine.high %v1531, %v1531
        %v1540 = vcombine.high %v1538, %v1538
        %v1542 = vunpack.c.l.s4 1966171168
        %v1543 = vunpack.c.0.s8 %v1542
        %v1544 = vlaneseq
        %v1545 = vshrl.u32 %v1544, 7
        %v1546 = vsub.s32 %v1543, %v1545
        %v1547 = vrot.slane %v1531, %v1546
        %v1549 = vunpack.c.l.s4 1966171168
        %v1550 = vunpack.c.0.s8 %v1549
        %v1551 = vlaneseq
        %v1552 = vshrl.u32 %v1551, 7
        %v1553 = vsub.s32 %v1550, %v1552
        %v1554 = vrot.slane %v1538, %v1553
        %v1556 = vunpack.c.l.s4 1966171168
        %v1557 = vunpack.c.0.s8 %v1556
        %v1558 = vlaneseq
        %v1559 = vshrl.u32 %v1558, 7
        %v1560 = vsub.s32 %v1557, %v1559
        %v1561 = vrot.slane %v1539, %v1560
        %v1563 = vunpack.c.l.s4 1966171168
        %v1564 = vunpack.c.0.s8 %v1563
        %v1565 = vlaneseq
        %v1566 = vshrl.u32 %v1565, 7
        %v1567 = vsub.s32 %v1564, %v1566
        %v1568 = vrot.slane %v1540, %v1567
        %v1569 = vcombine.high %v1547, %v1547
        %v1570 = vcombine.high %v1554, %v1554
        %v1571 = vcombine.high %v1561, %v1561
        %v1572 = vcombine.high %v1479, %v1479
        %v1574 = vunpack.c.l.s4 1966171168
        %v1575 = vunpack.c.0.s8 %v1574
        %v1576 = vlaneseq
        %v1577 = vshrl.u32 %v1576, 7
        %v1578 = vsub.s32 %v1575, %v1577
        %v1579 = vrot.slane %v1479, %v1578
        %v1581 = vunpack.c.l.s4 1966171168
        %v1582 = vunpack.c.0.s8 %v1581
        %v1583 = vlaneseq
        %v1584 = vshrl.u32 %v1583, 7
        %v1585 = vsub.s32 %v1582, %v1584
        %v1586 = vrot.slane %v1572, %v1585
        %v1587 = vcombine.high %v1579, %v1579
        %v1588 = vcombine.high %v1586, %v1586
        %v1590 = vunpack.c.l.s4 1966171168
        %v1591 = vunpack.c.0.s8 %v1590
        %v1592 = vlaneseq
        %v1593 = vshrl.u32 %v1592, 7
        %v1594 = vsub.s32 %v1591, %v1593
        %v1595 = vrot.slane %v1579, %v1594
        %v1597 = vunpack.c.l.s4 1966171168
        %v1598 = vunpack.c.0.s8 %v1597
        %v1599 = vlaneseq
        %v1600 = vshrl.u32 %v1599, 7
        %v1601 = vsub.s32 %v1598, %v1600
        %v1602 = vrot.slane %v1586, %v1601
        %v1604 = vunpack.c.l.s4 1966171168
        %v1605 = vunpack.c.0.s8 %v1604
        %v1606 = vlaneseq
        %v1607 = vshrl.u32 %v1606, 7
        %v1608 = vsub.s32 %v1605, %v1607
        %v1609 = vrot.slane %v1587, %v1608
        %v1611 = vunpack.c.l.s4 1966171168
        %v1612 = vunpack.c.0.s8 %v1611
        %v1613 = vlaneseq
        %v1614 = vshrl.u32 %v1613, 7
        %v1615 = vsub.s32 %v1612, %v1614
        %v1616 = vrot.slane %v1588, %v1615
        %v1617 = vcombine.high %v1595, %v1595
        %v1618 = vcombine.high %v1602, %v1602
        %v1619 = vcombine.high %v1609, %v1609
        %v1620 = vcombine.high %v1481, %v1481
        %v1622 = vunpack.c.l.s4 1966171168
        %v1623 = vunpack.c.0.s8 %v1622
        %v1624 = vlaneseq
        %v1625 = vshrl.u32 %v1624, 7
        %v1626 = vsub.s32 %v1623, %v1625
        %v1627 = vrot.slane %v1481, %v1626
        %v1629 = vunpack.c.l.s4 1966171168
        %v1630 = vunpack.c.0.s8 %v1629
        %v1631 = vlaneseq
        %v1632 = vshrl.u32 %v1631, 7
        %v1633 = vsub.s32 %v1630, %v1632
        %v1634 = vrot.slane %v1620, %v1633
        %v1635 = vcombine.high %v1627, %v1627
        %v1636 = vcombine.high %v1634, %v1634
        %v1638 = vunpack.c.l.s4 1966171168
        %v1639 = vunpack.c.0.s8 %v1638
        %v1640 = vlaneseq
        %v1641 = vshrl.u32 %v1640, 7
        %v1642 = vsub.s32 %v1639, %v1641
        %v1643 = vrot.slane %v1627, %v1642
        %v1645 = vunpack.c.l.s4 1966171168
        %v1646 = vunpack.c.0.s8 %v1645
        %v1647 = vlaneseq
        %v1648 = vshrl.u32 %v1647, 7
        %v1649 = vsub.s32 %v1646, %v1648
        %v1650 = vrot.slane %v1634, %v1649
        %v1652 = vunpack.c.l.s4 1966171168
        %v1653 = vunpack.c.0.s8 %v1652
        %v1654 = vlaneseq
        %v1655 = vshrl.u32 %v1654, 7
        %v1656 = vsub.s32 %v1653, %v1655
        %v1657 = vrot.slane %v1635, %v1656
        %v1659 = vunpack.c.l.s4 1966171168
        %v1660 = vunpack.c.0.s8 %v1659
        %v1661 = vlaneseq
        %v1662 = vshrl.u32 %v1661, 7
        %v1663 = vsub.s32 %v1660, %v1662
        %v1664 = vrot.slane %v1636, %v1663
        %v1665 = vcombine.high %v1643, %v1643
        %v1666 = vcombine.high %v1650, %v1650
        %v1667 = vcombine.high %v1657, %v1657
        %v1668 = vcombine.high %v1483, %v1483
        %v1670 = vunpack.c.l.s4 1966171168
        %v1671 = vunpack.c.0.s8 %v1670
        %v1672 = vlaneseq
        %v1673 = vshrl.u32 %v1672, 7
        %v1674 = vsub.s32 %v1671, %v1673
        %v1675 = vrot.slane %v1483, %v1674
        %v1677 = vunpack.c.l.s4 1966171168
        %v1678 = vunpack.c.0.s8 %v1677
        %v1679 = vlaneseq
        %v1680 = vshrl.u32 %v1679, 7
        %v1681 = vsub.s32 %v1678, %v1680
        %v1682 = vrot.slane %v1668, %v1681
        %v1683 = vcombine.high %v1675, %v1675
        %v1684 = vcombine.high %v1682, %v1682
        %v1686 = vunpack.c.l.s4 1966171168
        %v1687 = vunpack.c.0.s8 %v1686
        %v1688 = vlaneseq
        %v1689 = vshrl.u32 %v1688, 7
        %v1690 = vsub.s32 %v1687, %v1689
        %v1691 = vrot.slane %v1675, %v1690
        %v1693 = vunpack.c.l.s4 1966171168
        %v1694 = vunpack.c.0.s8 %v1693
        %v1695 = vlaneseq
        %v1696 = vshrl.u32 %v1695, 7
        %v1697 = vsub.s32 %v1694, %v1696
        %v1698 = vrot.slane %v1682, %v1697
        %v1700 = vunpack.c.l.s4 1966171168
        %v1701 = vunpack.c.0.s8 %v1700
        %v1702 = vlaneseq
        %v1703 = vshrl.u32 %v1702, 7
        %v1704 = vsub.s32 %v1701, %v1703
        %v1705 = vrot.slane %v1683, %v1704
        %v1707 = vunpack.c.l.s4 1966171168
        %v1708 = vunpack.c.0.s8 %v1707
        %v1709 = vlaneseq
        %v1710 = vshrl.u32 %v1709, 7
        %v1711 = vsub.s32 %v1708, %v1710
        %v1712 = vrot.slane %v1684, %v1711
        %v1713 = vcombine.high %v1691, %v1691
        %v1714 = vcombine.high %v1698, %v1698
        %v1715 = vcombine.high %v1705, %v1705
        %v1716 = vcombine.high %v1485, %v1485
        %v1718 = vunpack.c.l.s4 1966171168
        %v1719 = vunpack.c.0.s8 %v1718
        %v1720 = vlaneseq
        %v1721 = vshrl.u32 %v1720, 7
        %v1722 = vsub.s32 %v1719, %v1721
        %v1723 = vrot.slane %v1485, %v1722
        %v1725 = vunpack.c.l.s4 1966171168
        %v1726 = vunpack.c.0.s8 %v1725
        %v1727 = vlaneseq
        %v1728 = vshrl.u32 %v1727, 7
        %v1729 = vsub.s32 %v1726, %v1728
        %v1730 = vrot.slane %v1716, %v1729
        %v1731 = vcombine.high %v1723, %v1723
        %v1732 = vcombine.high %v1730, %v1730
        %v1734 = vunpack.c.l.s4 1966171168
        %v1735 = vunpack.c.0.s8 %v1734
        %v1736 = vlaneseq
        %v1737 = vshrl.u32 %v1736, 7
        %v1738 = vsub.s32 %v1735, %v1737
        %v1739 = vrot.slane %v1723, %v1738
        %v1741 = vunpack.c.l.s4 1966171168
        %v1742 = vunpack.c.0.s8 %v1741
        %v1743 = vlaneseq
        %v1744 = vshrl.u32 %v1743, 7
        %v1745 = vsub.s32 %v1742, %v1744
        %v1746 = vrot.slane %v1730, %v1745
        %v1748 = vunpack.c.l.s4 1966171168
        %v1749 = vunpack.c.0.s8 %v1748
        %v1750 = vlaneseq
        %v1751 = vshrl.u32 %v1750, 7
        %v1752 = vsub.s32 %v1749, %v1751
        %v1753 = vrot.slane %v1731, %v1752
        %v1755 = vunpack.c.l.s4 1966171168
        %v1756 = vunpack.c.0.s8 %v1755
        %v1757 = vlaneseq
        %v1758 = vshrl.u32 %v1757, 7
        %v1759 = vsub.s32 %v1756, %v1758
        %v1760 = vrot.slane %v1732, %v1759
        %v1761 = vcombine.high %v1739, %v1739
        %v1762 = vcombine.high %v1746, %v1746
        %v1763 = vcombine.high %v1753, %v1753
        %v1764 = vcombine.high %v1487, %v1487
        %v1766 = vunpack.c.l.s4 1966171168
        %v1767 = vunpack.c.0.s8 %v1766
        %v1768 = vlaneseq
        %v1769 = vshrl.u32 %v1768, 7
        %v1770 = vsub.s32 %v1767, %v1769
        %v1771 = vrot.slane %v1487, %v1770
        %v1773 = vunpack.c.l.s4 1966171168
        %v1774 = vunpack.c.0.s8 %v1773
        %v1775 = vlaneseq
        %v1776 = vshrl.u32 %v1775, 7
        %v1777 = vsub.s32 %v1774, %v1776
        %v1778 = vrot.slane %v1764, %v1777
        %v1779 = vcombine.high %v1771, %v1771
        %v1780 = vcombine.high %v1778, %v1778
        %v1782 = vunpack.c.l.s4 1966171168
        %v1783 = vunpack.c.0.s8 %v1782
        %v1784 = vlaneseq
        %v1785 = vshrl.u32 %v1784, 7
        %v1786 = vsub.s32 %v1783, %v1785
        %v1787 = vrot.slane %v1771, %v1786
        %v1789 = vunpack.c.l.s4 1966171168
        %v1790 = vunpack.c.0.s8 %v1789
        %v1791 = vlaneseq
        %v1792 = vshrl.u32 %v1791, 7
        %v1793 = vsub.s32 %v1790, %v1792
        %v1794 = vrot.slane %v1778, %v1793
        %v1796 = vunpack.c.l.s4 1966171168
        %v1797 = vunpack.c.0.s8 %v1796
        %v1798 = vlaneseq
        %v1799 = vshrl.u32 %v1798, 7
        %v1800 = vsub.s32 %v1797, %v1799
        %v1801 = vrot.slane %v1779, %v1800
        %v1803 = vunpack.c.l.s4 1966171168
        %v1804 = vunpack.c.0.s8 %v1803
        %v1805 = vlaneseq
        %v1806 = vshrl.u32 %v1805, 7
        %v1807 = vsub.s32 %v1804, %v1806
        %v1808 = vrot.slane %v1780, %v1807
        %v1809 = vcombine.high %v1787, %v1787
        %v1810 = vcombine.high %v1794, %v1794
        %v1811 = vcombine.high %v1801, %v1801
        %v1812 = vcombine.high %v1489, %v1489
        %v1814 = vunpack.c.l.s4 1966171168
        %v1815 = vunpack.c.0.s8 %v1814
        %v1816 = vlaneseq
        %v1817 = vshrl.u32 %v1816, 7
        %v1818 = vsub.s32 %v1815, %v1817
        %v1819 = vrot.slane %v1489, %v1818
        %v1821 = vunpack.c.l.s4 1966171168
        %v1822 = vunpack.c.0.s8 %v1821
        %v1823 = vlaneseq
        %v1824 = vshrl.u32 %v1823, 7
        %v1825 = vsub.s32 %v1822, %v1824
        %v1826 = vrot.slane %v1812, %v1825
        %v1827 = vcombine.high %v1819, %v1819
        %v1828 = vcombine.high %v1826, %v1826
        %v1830 = vunpack.c.l.s4 1966171168
        %v1831 = vunpack.c.0.s8 %v1830
        %v1832 = vlaneseq
        %v1833 = vshrl.u32 %v1832, 7
        %v1834 = vsub.s32 %v1831, %v1833
        %v1835 = vrot.slane %v1819, %v1834
        %v1837 = vunpack.c.l.s4 1966171168
        %v1838 = vunpack.c.0.s8 %v1837
        %v1839 = vlaneseq
        %v1840 = vshrl.u32 %v1839, 7
        %v1841 = vsub.s32 %v1838, %v1840
        %v1842 = vrot.slane %v1826, %v1841
        %v1844 = vunpack.c.l.s4 1966171168
        %v1845 = vunpack.c.0.s8 %v1844
        %v1846 = vlaneseq
        %v1847 = vshrl.u32 %v1846, 7
        %v1848 = vsub.s32 %v1845, %v1847
        %v1849 = vrot.slane %v1827, %v1848
        %v1851 = vunpack.c.l.s4 1966171168
        %v1852 = vunpack.c.0.s8 %v1851
        %v1853 = vlaneseq
        %v1854 = vshrl.u32 %v1853, 7
        %v1855 = vsub.s32 %v1852, %v1854
        %v1856 = vrot.slane %v1828, %v1855
        %v1857 = vcombine.high %v1835, %v1835
        %v1858 = vcombine.high %v1842, %v1842
        %v1859 = vcombine.high %v1849, %v1849
        %v1860 = vcombine.high %v1491, %v1491
        %v1862 = vunpack.c.l.s4 1966171168
        %v1863 = vunpack.c.0.s8 %v1862
        %v1864 = vlaneseq
        %v1865 = vshrl.u32 %v1864, 7
        %v1866 = vsub.s32 %v1863, %v1865
        %v1867 = vrot.slane %v1491, %v1866
        %v1869 = vunpack.c.l.s4 1966171168
        %v1870 = vunpack.c.0.s8 %v1869
        %v1871 = vlaneseq
        %v1872 = vshrl.u32 %v1871, 7
        %v1873 = vsub.s32 %v1870, %v1872
        %v1874 = vrot.slane %v1860, %v1873
        %v1875 = vcombine.high %v1867, %v1867
        %v1876 = vcombine.high %v1874, %v1874
        %v1878 = vunpack.c.l.s4 1966171168
        %v1879 = vunpack.c.0.s8 %v1878
        %v1880 = vlaneseq
        %v1881 = vshrl.u32 %v1880, 7
        %v1882 = vsub.s32 %v1879, %v1881
        %v1883 = vrot.slane %v1867, %v1882
        %v1885 = vunpack.c.l.s4 1966171168
        %v1886 = vunpack.c.0.s8 %v1885
        %v1887 = vlaneseq
        %v1888 = vshrl.u32 %v1887, 7
        %v1889 = vsub.s32 %v1886, %v1888
        %v1890 = vrot.slane %v1874, %v1889
        %v1892 = vunpack.c.l.s4 1966171168
        %v1893 = vunpack.c.0.s8 %v1892
        %v1894 = vlaneseq
        %v1895 = vshrl.u32 %v1894, 7
        %v1896 = vsub.s32 %v1893, %v1895
        %v1897 = vrot.slane %v1875, %v1896
        %v1899 = vunpack.c.l.s4 1966171168
        %v1900 = vunpack.c.0.s8 %v1899
        %v1901 = vlaneseq
        %v1902 = vshrl.u32 %v1901, 7
        %v1903 = vsub.s32 %v1900, %v1902
        %v1904 = vrot.slane %v1876, %v1903
        %v1905 = vcombine.high %v1883, %v1883
        %v1906 = vcombine.high %v1890, %v1890
        %v1907 = vcombine.high %v1897, %v1897
        %v1908 = vcombine.high %v1493, %v1493
        %v1910 = vunpack.c.l.s4 1966171168
        %v1911 = vunpack.c.0.s8 %v1910
        %v1912 = vlaneseq
        %v1913 = vshrl.u32 %v1912, 7
        %v1914 = vsub.s32 %v1911, %v1913
        %v1915 = vrot.slane %v1493, %v1914
        %v1917 = vunpack.c.l.s4 1966171168
        %v1918 = vunpack.c.0.s8 %v1917
        %v1919 = vlaneseq
        %v1920 = vshrl.u32 %v1919, 7
        %v1921 = vsub.s32 %v1918, %v1920
        %v1922 = vrot.slane %v1908, %v1921
        %v1923 = vcombine.high %v1915, %v1915
        %v1924 = vcombine.high %v1922, %v1922
        %v1926 = vunpack.c.l.s4 1966171168
        %v1927 = vunpack.c.0.s8 %v1926
        %v1928 = vlaneseq
        %v1929 = vshrl.u32 %v1928, 7
        %v1930 = vsub.s32 %v1927, %v1929
        %v1931 = vrot.slane %v1915, %v1930
        %v1933 = vunpack.c.l.s4 1966171168
        %v1934 = vunpack.c.0.s8 %v1933
        %v1935 = vlaneseq
        %v1936 = vshrl.u32 %v1935, 7
        %v1937 = vsub.s32 %v1934, %v1936
        %v1938 = vrot.slane %v1922, %v1937
        %v1940 = vunpack.c.l.s4 1966171168
        %v1941 = vunpack.c.0.s8 %v1940
        %v1942 = vlaneseq
        %v1943 = vshrl.u32 %v1942, 7
        %v1944 = vsub.s32 %v1941, %v1943
        %v1945 = vrot.slane %v1923, %v1944
        %v1947 = vunpack.c.l.s4 1966171168
        %v1948 = vunpack.c.0.s8 %v1947
        %v1949 = vlaneseq
        %v1950 = vshrl.u32 %v1949, 7
        %v1951 = vsub.s32 %v1948, %v1950
        %v1952 = vrot.slane %v1924, %v1951
        %v1953 = vcombine.high %v1931, %v1931
        %v1954 = vcombine.high %v1938, %v1938
        %v1955 = vcombine.high %v1945, %v1945
        %v1956 = vcombine.high %v1495, %v1495
        %v1958 = vunpack.c.l.s4 1966171168
        %v1959 = vunpack.c.0.s8 %v1958
        %v1960 = vlaneseq
        %v1961 = vshrl.u32 %v1960, 7
        %v1962 = vsub.s32 %v1959, %v1961
        %v1963 = vrot.slane %v1495, %v1962
        %v1965 = vunpack.c.l.s4 1966171168
        %v1966 = vunpack.c.0.s8 %v1965
        %v1967 = vlaneseq
        %v1968 = vshrl.u32 %v1967, 7
        %v1969 = vsub.s32 %v1966, %v1968
        %v1970 = vrot.slane %v1956, %v1969
        %v1971 = vcombine.high %v1963, %v1963
        %v1972 = vcombine.high %v1970, %v1970
        %v1974 = vunpack.c.l.s4 1966171168
        %v1975 = vunpack.c.0.s8 %v1974
        %v1976 = vlaneseq
        %v1977 = vshrl.u32 %v1976, 7
        %v1978 = vsub.s32 %v1975, %v1977
        %v1979 = vrot.slane %v1963, %v1978
        %v1981 = vunpack.c.l.s4 1966171168
        %v1982 = vunpack.c.0.s8 %v1981
        %v1983 = vlaneseq
        %v1984 = vshrl.u32 %v1983, 7
        %v1985 = vsub.s32 %v1982, %v1984
        %v1986 = vrot.slane %v1970, %v1985
        %v1988 = vunpack.c.l.s4 1966171168
        %v1989 = vunpack.c.0.s8 %v1988
        %v1990 = vlaneseq
        %v1991 = vshrl.u32 %v1990, 7
        %v1992 = vsub.s32 %v1989, %v1991
        %v1993 = vrot.slane %v1971, %v1992
        %v1995 = vunpack.c.l.s4 1966171168
        %v1996 = vunpack.c.0.s8 %v1995
        %v1997 = vlaneseq
        %v1998 = vshrl.u32 %v1997, 7
        %v1999 = vsub.s32 %v1996, %v1998
        %v2000 = vrot.slane %v1972, %v1999
        %v2001 = vcombine.high %v1979, %v1979
        %v2002 = vcombine.high %v1986, %v1986
        %v2003 = vcombine.high %v1993, %v1993
        %v2004 = vcombine.high %v1497, %v1497
        %v2006 = vunpack.c.l.s4 1966171168
        %v2007 = vunpack.c.0.s8 %v2006
        %v2008 = vlaneseq
        %v2009 = vshrl.u32 %v2008, 7
        %v2010 = vsub.s32 %v2007, %v2009
        %v2011 = vrot.slane %v1497, %v2010
        %v2013 = vunpack.c.l.s4 1966171168
        %v2014 = vunpack.c.0.s8 %v2013
        %v2015 = vlaneseq
        %v2016 = vshrl.u32 %v2015, 7
        %v2017 = vsub.s32 %v2014, %v2016
        %v2018 = vrot.slane %v2004, %v2017
        %v2019 = vcombine.high %v2011, %v2011
        %v2020 = vcombine.high %v2018, %v2018
        %v2022 = vunpack.c.l.s4 1966171168
        %v2023 = vunpack.c.0.s8 %v2022
        %v2024 = vlaneseq
        %v2025 = vshrl.u32 %v2024, 7
        %v2026 = vsub.s32 %v2023, %v2025
        %v2027 = vrot.slane %v2011, %v2026
        %v2029 = vunpack.c.l.s4 1966171168
        %v2030 = vunpack.c.0.s8 %v2029
        %v2031 = vlaneseq
        %v2032 = vshrl.u32 %v2031, 7
        %v2033 = vsub.s32 %v2030, %v2032
        %v2034 = vrot.slane %v2018, %v2033
        %v2036 = vunpack.c.l.s4 1966171168
        %v2037 = vunpack.c.0.s8 %v2036
        %v2038 = vlaneseq
        %v2039 = vshrl.u32 %v2038, 7
        %v2040 = vsub.s32 %v2037, %v2039
        %v2041 = vrot.slane %v2019, %v2040
        %v2043 = vunpack.c.l.s4 1966171168
        %v2044 = vunpack.c.0.s8 %v2043
        %v2045 = vlaneseq
        %v2046 = vshrl.u32 %v2045, 7
        %v2047 = vsub.s32 %v2044, %v2046
        %v2048 = vrot.slane %v2020, %v2047
        %v2049 = vcombine.high %v2027, %v2027
        %v2050 = vcombine.high %v2034, %v2034
        %v2051 = vcombine.high %v2041, %v2041
        %v2052 = vcombine.high %v1499, %v1499
        %v2054 = vunpack.c.l.s4 1966171168
        %v2055 = vunpack.c.0.s8 %v2054
        %v2056 = vlaneseq
        %v2057 = vshrl.u32 %v2056, 7
        %v2058 = vsub.s32 %v2055, %v2057
        %v2059 = vrot.slane %v1499, %v2058
        %v2061 = vunpack.c.l.s4 1966171168
        %v2062 = vunpack.c.0.s8 %v2061
        %v2063 = vlaneseq
        %v2064 = vshrl.u32 %v2063, 7
        %v2065 = vsub.s32 %v2062, %v2064
        %v2066 = vrot.slane %v2052, %v2065
        %v2067 = vcombine.high %v2059, %v2059
        %v2068 = vcombine.high %v2066, %v2066
        %v2070 = vunpack.c.l.s4 1966171168
        %v2071 = vunpack.c.0.s8 %v2070
        %v2072 = vlaneseq
        %v2073 = vshrl.u32 %v2072, 7
        %v2074 = vsub.s32 %v2071, %v2073
        %v2075 = vrot.slane %v2059, %v2074
        %v2077 = vunpack.c.l.s4 1966171168
        %v2078 = vunpack.c.0.s8 %v2077
        %v2079 = vlaneseq
        %v2080 = vshrl.u32 %v2079, 7
        %v2081 = vsub.s32 %v2078, %v2080
        %v2082 = vrot.slane %v2066, %v2081
        %v2084 = vunpack.c.l.s4 1966171168
        %v2085 = vunpack.c.0.s8 %v2084
        %v2086 = vlaneseq
        %v2087 = vshrl.u32 %v2086, 7
        %v2088 = vsub.s32 %v2085, %v2087
        %v2089 = vrot.slane %v2067, %v2088
        %v2091 = vunpack.c.l.s4 1966171168
        %v2092 = vunpack.c.0.s8 %v2091
        %v2093 = vlaneseq
        %v2094 = vshrl.u32 %v2093, 7
        %v2095 = vsub.s32 %v2092, %v2094
        %v2096 = vrot.slane %v2068, %v2095
        %v2097 = vcombine.high %v2075, %v2075
        %v2098 = vcombine.high %v2082, %v2082
        %v2099 = vcombine.high %v2089, %v2089
        %v2100 = vcombine.high %v1501, %v1501
        %v2102 = vunpack.c.l.s4 1966171168
        %v2103 = vunpack.c.0.s8 %v2102
        %v2104 = vlaneseq
        %v2105 = vshrl.u32 %v2104, 7
        %v2106 = vsub.s32 %v2103, %v2105
        %v2107 = vrot.slane %v1501, %v2106
        %v2109 = vunpack.c.l.s4 1966171168
        %v2110 = vunpack.c.0.s8 %v2109
        %v2111 = vlaneseq
        %v2112 = vshrl.u32 %v2111, 7
        %v2113 = vsub.s32 %v2110, %v2112
        %v2114 = vrot.slane %v2100, %v2113
        %v2115 = vcombine.high %v2107, %v2107
        %v2116 = vcombine.high %v2114, %v2114
        %v2118 = vunpack.c.l.s4 1966171168
        %v2119 = vunpack.c.0.s8 %v2118
        %v2120 = vlaneseq
        %v2121 = vshrl.u32 %v2120, 7
        %v2122 = vsub.s32 %v2119, %v2121
        %v2123 = vrot.slane %v2107, %v2122
        %v2125 = vunpack.c.l.s4 1966171168
        %v2126 = vunpack.c.0.s8 %v2125
        %v2127 = vlaneseq
        %v2128 = vshrl.u32 %v2127, 7
        %v2129 = vsub.s32 %v2126, %v2128
        %v2130 = vrot.slane %v2114, %v2129
        %v2132 = vunpack.c.l.s4 1966171168
        %v2133 = vunpack.c.0.s8 %v2132
        %v2134 = vlaneseq
        %v2135 = vshrl.u32 %v2134, 7
        %v2136 = vsub.s32 %v2133, %v2135
        %v2137 = vrot.slane %v2115, %v2136
        %v2139 = vunpack.c.l.s4 1966171168
        %v2140 = vunpack.c.0.s8 %v2139
        %v2141 = vlaneseq
        %v2142 = vshrl.u32 %v2141, 7
        %v2143 = vsub.s32 %v2140, %v2142
        %v2144 = vrot.slane %v2116, %v2143
        %v2145 = vcombine.high %v2123, %v2123
        %v2146 = vcombine.high %v2130, %v2130
        %v2147 = vcombine.high %v2137, %v2137
        %v2148 = vcombine.high %v1503, %v1503
        %v2150 = vunpack.c.l.s4 1966171168
        %v2151 = vunpack.c.0.s8 %v2150
        %v2152 = vlaneseq
        %v2153 = vshrl.u32 %v2152, 7
        %v2154 = vsub.s32 %v2151, %v2153
        %v2155 = vrot.slane %v1503, %v2154
        %v2157 = vunpack.c.l.s4 1966171168
        %v2158 = vunpack.c.0.s8 %v2157
        %v2159 = vlaneseq
        %v2160 = vshrl.u32 %v2159, 7
        %v2161 = vsub.s32 %v2158, %v2160
        %v2162 = vrot.slane %v2148, %v2161
        %v2163 = vcombine.high %v2155, %v2155
        %v2164 = vcombine.high %v2162, %v2162
        %v2166 = vunpack.c.l.s4 1966171168
        %v2167 = vunpack.c.0.s8 %v2166
        %v2168 = vlaneseq
        %v2169 = vshrl.u32 %v2168, 7
        %v2170 = vsub.s32 %v2167, %v2169
        %v2171 = vrot.slane %v2155, %v2170
        %v2173 = vunpack.c.l.s4 1966171168
        %v2174 = vunpack.c.0.s8 %v2173
        %v2175 = vlaneseq
        %v2176 = vshrl.u32 %v2175, 7
        %v2177 = vsub.s32 %v2174, %v2176
        %v2178 = vrot.slane %v2162, %v2177
        %v2180 = vunpack.c.l.s4 1966171168
        %v2181 = vunpack.c.0.s8 %v2180
        %v2182 = vlaneseq
        %v2183 = vshrl.u32 %v2182, 7
        %v2184 = vsub.s32 %v2181, %v2183
        %v2185 = vrot.slane %v2163, %v2184
        %v2187 = vunpack.c.l.s4 1966171168
        %v2188 = vunpack.c.0.s8 %v2187
        %v2189 = vlaneseq
        %v2190 = vshrl.u32 %v2189, 7
        %v2191 = vsub.s32 %v2188, %v2190
        %v2192 = vrot.slane %v2164, %v2191
        %v2193 = vcombine.high %v2171, %v2171
        %v2194 = vcombine.high %v2178, %v2178
        %v2195 = vcombine.high %v2185, %v2185
        %v2196 = vcombine.high %v1505, %v1505
        %v2198 = vunpack.c.l.s4 1966171168
        %v2199 = vunpack.c.0.s8 %v2198
        %v2200 = vlaneseq
        %v2201 = vshrl.u32 %v2200, 7
        %v2202 = vsub.s32 %v2199, %v2201
        %v2203 = vrot.slane %v1505, %v2202
        %v2205 = vunpack.c.l.s4 1966171168
        %v2206 = vunpack.c.0.s8 %v2205
        %v2207 = vlaneseq
        %v2208 = vshrl.u32 %v2207, 7
        %v2209 = vsub.s32 %v2206, %v2208
        %v2210 = vrot.slane %v2196, %v2209
        %v2211 = vcombine.high %v2203, %v2203
        %v2212 = vcombine.high %v2210, %v2210
        %v2214 = vunpack.c.l.s4 1966171168
        %v2215 = vunpack.c.0.s8 %v2214
        %v2216 = vlaneseq
        %v2217 = vshrl.u32 %v2216, 7
        %v2218 = vsub.s32 %v2215, %v2217
        %v2219 = vrot.slane %v2203, %v2218
        %v2221 = vunpack.c.l.s4 1966171168
        %v2222 = vunpack.c.0.s8 %v2221
        %v2223 = vlaneseq
        %v2224 = vshrl.u32 %v2223, 7
        %v2225 = vsub.s32 %v2222, %v2224
        %v2226 = vrot.slane %v2210, %v2225
        %v2228 = vunpack.c.l.s4 1966171168
        %v2229 = vunpack.c.0.s8 %v2228
        %v2230 = vlaneseq
        %v2231 = vshrl.u32 %v2230, 7
        %v2232 = vsub.s32 %v2229, %v2231
        %v2233 = vrot.slane %v2211, %v2232
        %v2235 = vunpack.c.l.s4 1966171168
        %v2236 = vunpack.c.0.s8 %v2235
        %v2237 = vlaneseq
        %v2238 = vshrl.u32 %v2237, 7
        %v2239 = vsub.s32 %v2236, %v2238
        %v2240 = vrot.slane %v2212, %v2239
        %v2241 = vcombine.high %v2219, %v2219
        %v2242 = vcombine.high %v2226, %v2226
        %v2243 = vcombine.high %v2233, %v2233
        %v2244 = vcombine.high %v1507, %v1507
        %v2246 = vunpack.c.l.s4 1966171168
        %v2247 = vunpack.c.0.s8 %v2246
        %v2248 = vlaneseq
        %v2249 = vshrl.u32 %v2248, 7
        %v2250 = vsub.s32 %v2247, %v2249
        %v2251 = vrot.slane %v1507, %v2250
        %v2253 = vunpack.c.l.s4 1966171168
        %v2254 = vunpack.c.0.s8 %v2253
        %v2255 = vlaneseq
        %v2256 = vshrl.u32 %v2255, 7
        %v2257 = vsub.s32 %v2254, %v2256
        %v2258 = vrot.slane %v2244, %v2257
        %v2259 = vcombine.high %v2251, %v2251
        %v2260 = vcombine.high %v2258, %v2258
        %v2262 = vunpack.c.l.s4 1966171168
        %v2263 = vunpack.c.0.s8 %v2262
        %v2264 = vlaneseq
        %v2265 = vshrl.u32 %v2264, 7
        %v2266 = vsub.s32 %v2263, %v2265
        %v2267 = vrot.slane %v2251, %v2266
        %v2269 = vunpack.c.l.s4 1966171168
        %v2270 = vunpack.c.0.s8 %v2269
        %v2271 = vlaneseq
        %v2272 = vshrl.u32 %v2271, 7
        %v2273 = vsub.s32 %v2270, %v2272
        %v2274 = vrot.slane %v2258, %v2273
        %v2276 = vunpack.c.l.s4 1966171168
        %v2277 = vunpack.c.0.s8 %v2276
        %v2278 = vlaneseq
        %v2279 = vshrl.u32 %v2278, 7
        %v2280 = vsub.s32 %v2277, %v2279
        %v2281 = vrot.slane %v2259, %v2280
        %v2283 = vunpack.c.l.s4 1966171168
        %v2284 = vunpack.c.0.s8 %v2283
        %v2285 = vlaneseq
        %v2286 = vshrl.u32 %v2285, 7
        %v2287 = vsub.s32 %v2284, %v2286
        %v2288 = vrot.slane %v2260, %v2287
        %v2289 = vcombine.high %v2267, %v2267
        %v2290 = vcombine.high %v2274, %v2274
        %v2291 = vcombine.high %v2281, %v2281
        %v2292 = vld [vmem:[%s1] sm:$0xf]
        %v2293 = vld [vmem:[%s1 + $0x4] sm:$0xf]
        %v2294 = vld [vmem:[%s1 + $0x8] sm:$0xf]
        %v2295 = vld [vmem:[%s1 + $0xc] sm:$0xf]
        %v2296 = vld [vmem:[%s1 + $0x10] sm:$0x3]
        %v2297 = vld [vmem:[%s2] sm:$0x1]
        %v2299 = vlaneseq
        %v2300 = vshrl.u32 %v2299, 7
        %v2301 = vsub.s32 0, %v2300
        %v2302 = vrot.slane %v2297, %v2301
        %v2304 = vcombine.low %v1547, %v1561
        %v2305 = vcombine.low %v1569, %v1571
        %v2306 = vcombine.low %v1554, %v1568
        %v2307 = vcombine.low %v1570, %v1595
        %v2309 = vunpack.c.l.s4 1966171168
        %v2310 = vunpack.c.0.s8 %v2309
        %v2311 = vlaneseq
        %v2312 = vshrl.u32 %v2311, 7
        %v2313 = vsub.s32 %v2310, %v2312
        %v2314 = vrot.slane %v2304, %v2313
        %v2316 = vunpack.c.l.s4 1966171168
        %v2317 = vunpack.c.0.s8 %v2316
        %v2318 = vlaneseq
        %v2319 = vshrl.u32 %v2318, 7
        %v2320 = vsub.s32 %v2317, %v2319
        %v2321 = vrot.slane %v2305, %v2320
        %v2323 = vunpack.c.l.s4 1966171168
        %v2324 = vunpack.c.0.s8 %v2323
        %v2325 = vlaneseq
        %v2326 = vshrl.u32 %v2325, 7
        %v2327 = vsub.s32 %v2324, %v2326
        %v2328 = vrot.slane %v2306, %v2327
        %v2330 = vunpack.c.l.s4 1966171168
        %v2331 = vunpack.c.0.s8 %v2330
        %v2332 = vlaneseq
        %v2333 = vshrl.u32 %v2332, 7
        %v2334 = vsub.s32 %v2331, %v2333
        %v2335 = vrot.slane %v2307, %v2334
        %v2336 = vcombine.low %v2314, %v2321
        %v2337 = vcombine.low %v2328, %v2335
        %v2339 = vunpack.c.l.s4 1966171168
        %v2340 = vunpack.c.0.s8 %v2339
        %v2341 = vlaneseq
        %v2342 = vshrl.u32 %v2341, 7
        %v2343 = vsub.s32 %v2340, %v2342
        %v2344 = vrot.slane %v2336, %v2343
        %v2346 = vunpack.c.l.s4 1966171168
        %v2347 = vunpack.c.0.s8 %v2346
        %v2348 = vlaneseq
        %v2349 = vshrl.u32 %v2348, 7
        %v2350 = vsub.s32 %v2347, %v2349
        %v2351 = vrot.slane %v2337, %v2350
        %v2352 = vcombine.low %v2344, %v2351
        %v2353 = vcombine.low %v1609, %v1617
        %v2354 = vcombine.low %v1619, %v1602
        %v2355 = vcombine.low %v1616, %v1618
        %v2356 = vcombine.low %v1643, %v1657
        %v2358 = vunpack.c.l.s4 1966171168
        %v2359 = vunpack.c.0.s8 %v2358
        %v2360 = vlaneseq
        %v2361 = vshrl.u32 %v2360, 7
        %v2362 = vsub.s32 %v2359, %v2361
        %v2363 = vrot.slane %v2353, %v2362
        %v2365 = vunpack.c.l.s4 1966171168
        %v2366 = vunpack.c.0.s8 %v2365
        %v2367 = vlaneseq
        %v2368 = vshrl.u32 %v2367, 7
        %v2369 = vsub.s32 %v2366, %v2368
        %v2370 = vrot.slane %v2354, %v2369
        %v2372 = vunpack.c.l.s4 1966171168
        %v2373 = vunpack.c.0.s8 %v2372
        %v2374 = vlaneseq
        %v2375 = vshrl.u32 %v2374, 7
        %v2376 = vsub.s32 %v2373, %v2375
        %v2377 = vrot.slane %v2355, %v2376
        %v2379 = vunpack.c.l.s4 1966171168
        %v2380 = vunpack.c.0.s8 %v2379
        %v2381 = vlaneseq
        %v2382 = vshrl.u32 %v2381, 7
        %v2383 = vsub.s32 %v2380, %v2382
        %v2384 = vrot.slane %v2356, %v2383
        %v2385 = vcombine.low %v2363, %v2370
        %v2386 = vcombine.low %v2377, %v2384
        %v2388 = vunpack.c.l.s4 1966171168
        %v2389 = vunpack.c.0.s8 %v2388
        %v2390 = vlaneseq
        %v2391 = vshrl.u32 %v2390, 7
        %v2392 = vsub.s32 %v2389, %v2391
        %v2393 = vrot.slane %v2385, %v2392
        %v2395 = vunpack.c.l.s4 1966171168
        %v2396 = vunpack.c.0.s8 %v2395
        %v2397 = vlaneseq
        %v2398 = vshrl.u32 %v2397, 7
        %v2399 = vsub.s32 %v2396, %v2398
        %v2400 = vrot.slane %v2386, %v2399
        %v2401 = vcombine.low %v2393, %v2400
        %v2402 = vcombine.low %v1665, %v1667
        %v2403 = vcombine.low %v1650, %v1664
        %v2404 = vcombine.low %v1666, %v1691
        %v2405 = vcombine.low %v1705, %v1713
        %v2407 = vunpack.c.l.s4 1966171168
        %v2408 = vunpack.c.0.s8 %v2407
        %v2409 = vlaneseq
        %v2410 = vshrl.u32 %v2409, 7
        %v2411 = vsub.s32 %v2408, %v2410
        %v2412 = vrot.slane %v2402, %v2411
        %v2414 = vunpack.c.l.s4 1966171168
        %v2415 = vunpack.c.0.s8 %v2414
        %v2416 = vlaneseq
        %v2417 = vshrl.u32 %v2416, 7
        %v2418 = vsub.s32 %v2415, %v2417
        %v2419 = vrot.slane %v2403, %v2418
        %v2421 = vunpack.c.l.s4 1966171168
        %v2422 = vunpack.c.0.s8 %v2421
        %v2423 = vlaneseq
        %v2424 = vshrl.u32 %v2423, 7
        %v2425 = vsub.s32 %v2422, %v2424
        %v2426 = vrot.slane %v2404, %v2425
        %v2428 = vunpack.c.l.s4 1966171168
        %v2429 = vunpack.c.0.s8 %v2428
        %v2430 = vlaneseq
        %v2431 = vshrl.u32 %v2430, 7
        %v2432 = vsub.s32 %v2429, %v2431
        %v2433 = vrot.slane %v2405, %v2432
        %v2434 = vcombine.low %v2412, %v2419
        %v2435 = vcombine.low %v2426, %v2433
        %v2437 = vunpack.c.l.s4 1966171168
        %v2438 = vunpack.c.0.s8 %v2437
        %v2439 = vlaneseq
        %v2440 = vshrl.u32 %v2439, 7
        %v2441 = vsub.s32 %v2438, %v2440
        %v2442 = vrot.slane %v2434, %v2441
        %v2444 = vunpack.c.l.s4 1966171168
        %v2445 = vunpack.c.0.s8 %v2444
        %v2446 = vlaneseq
        %v2447 = vshrl.u32 %v2446, 7
        %v2448 = vsub.s32 %v2445, %v2447
        %v2449 = vrot.slane %v2435, %v2448
        %v2450 = vcombine.low %v2442, %v2449
        %v2451 = vcombine.low %v1715, %v1698
        %v2452 = vcombine.low %v1712, %v1714
        %v2453 = vcombine.low %v1739, %v1753
        %v2454 = vcombine.low %v1761, %v1763
        %v2456 = vunpack.c.l.s4 1966171168
        %v2457 = vunpack.c.0.s8 %v2456
        %v2458 = vlaneseq
        %v2459 = vshrl.u32 %v2458, 7
        %v2460 = vsub.s32 %v2457, %v2459
        %v2461 = vrot.slane %v2451, %v2460
        %v2463 = vunpack.c.l.s4 1966171168
        %v2464 = vunpack.c.0.s8 %v2463
        %v2465 = vlaneseq
        %v2466 = vshrl.u32 %v2465, 7
        %v2467 = vsub.s32 %v2464, %v2466
        %v2468 = vrot.slane %v2452, %v2467
        %v2470 = vunpack.c.l.s4 1966171168
        %v2471 = vunpack.c.0.s8 %v2470
        %v2472 = vlaneseq
        %v2473 = vshrl.u32 %v2472, 7
        %v2474 = vsub.s32 %v2471, %v2473
        %v2475 = vrot.slane %v2453, %v2474
        %v2477 = vunpack.c.l.s4 1966171168
        %v2478 = vunpack.c.0.s8 %v2477
        %v2479 = vlaneseq
        %v2480 = vshrl.u32 %v2479, 7
        %v2481 = vsub.s32 %v2478, %v2480
        %v2482 = vrot.slane %v2454, %v2481
        %v2483 = vcombine.low %v2461, %v2468
        %v2484 = vcombine.low %v2475, %v2482
        %v2486 = vunpack.c.l.s4 1966171168
        %v2487 = vunpack.c.0.s8 %v2486
        %v2488 = vlaneseq
        %v2489 = vshrl.u32 %v2488, 7
        %v2490 = vsub.s32 %v2487, %v2489
        %v2491 = vrot.slane %v2483, %v2490
        %v2493 = vunpack.c.l.s4 1966171168
        %v2494 = vunpack.c.0.s8 %v2493
        %v2495 = vlaneseq
        %v2496 = vshrl.u32 %v2495, 7
        %v2497 = vsub.s32 %v2494, %v2496
        %v2498 = vrot.slane %v2484, %v2497
        %v2499 = vcombine.low %v2491, %v2498
        %v2500 = vcombine.low %v1746, %v1760
        %v2501 = vcombine.low %v1762, %v1787
        %v2502 = vcombine.low %v1801, %v1809
        %v2503 = vcombine.low %v1811, %v1794
        %v2505 = vunpack.c.l.s4 1966171168
        %v2506 = vunpack.c.0.s8 %v2505
        %v2507 = vlaneseq
        %v2508 = vshrl.u32 %v2507, 7
        %v2509 = vsub.s32 %v2506, %v2508
        %v2510 = vrot.slane %v2500, %v2509
        %v2512 = vunpack.c.l.s4 1966171168
        %v2513 = vunpack.c.0.s8 %v2512
        %v2514 = vlaneseq
        %v2515 = vshrl.u32 %v2514, 7
        %v2516 = vsub.s32 %v2513, %v2515
        %v2517 = vrot.slane %v2501, %v2516
        %v2519 = vunpack.c.l.s4 1966171168
        %v2520 = vunpack.c.0.s8 %v2519
        %v2521 = vlaneseq
        %v2522 = vshrl.u32 %v2521, 7
        %v2523 = vsub.s32 %v2520, %v2522
        %v2524 = vrot.slane %v2502, %v2523
        %v2526 = vunpack.c.l.s4 1966171168
        %v2527 = vunpack.c.0.s8 %v2526
        %v2528 = vlaneseq
        %v2529 = vshrl.u32 %v2528, 7
        %v2530 = vsub.s32 %v2527, %v2529
        %v2531 = vrot.slane %v2503, %v2530
        %v2532 = vcombine.low %v2510, %v2517
        %v2533 = vcombine.low %v2524, %v2531
        %v2535 = vunpack.c.l.s4 1966171168
        %v2536 = vunpack.c.0.s8 %v2535
        %v2537 = vlaneseq
        %v2538 = vshrl.u32 %v2537, 7
        %v2539 = vsub.s32 %v2536, %v2538
        %v2540 = vrot.slane %v2532, %v2539
        %v2542 = vunpack.c.l.s4 1966171168
        %v2543 = vunpack.c.0.s8 %v2542
        %v2544 = vlaneseq
        %v2545 = vshrl.u32 %v2544, 7
        %v2546 = vsub.s32 %v2543, %v2545
        %v2547 = vrot.slane %v2533, %v2546
        %v2548 = vcombine.low %v2540, %v2547
        %v2549 = vcombine.low %v1808, %v1810
        %v2550 = vcombine.low %v1835, %v1849
        %v2551 = vcombine.low %v1857, %v1859
        %v2552 = vcombine.low %v1842, %v1856
        %v2554 = vunpack.c.l.s4 1966171168
        %v2555 = vunpack.c.0.s8 %v2554
        %v2556 = vlaneseq
        %v2557 = vshrl.u32 %v2556, 7
        %v2558 = vsub.s32 %v2555, %v2557
        %v2559 = vrot.slane %v2549, %v2558
        %v2561 = vunpack.c.l.s4 1966171168
        %v2562 = vunpack.c.0.s8 %v2561
        %v2563 = vlaneseq
        %v2564 = vshrl.u32 %v2563, 7
        %v2565 = vsub.s32 %v2562, %v2564
        %v2566 = vrot.slane %v2550, %v2565
        %v2568 = vunpack.c.l.s4 1966171168
        %v2569 = vunpack.c.0.s8 %v2568
        %v2570 = vlaneseq
        %v2571 = vshrl.u32 %v2570, 7
        %v2572 = vsub.s32 %v2569, %v2571
        %v2573 = vrot.slane %v2551, %v2572
        %v2575 = vunpack.c.l.s4 1966171168
        %v2576 = vunpack.c.0.s8 %v2575
        %v2577 = vlaneseq
        %v2578 = vshrl.u32 %v2577, 7
        %v2579 = vsub.s32 %v2576, %v2578
        %v2580 = vrot.slane %v2552, %v2579
        %v2581 = vcombine.low %v2559, %v2566
        %v2582 = vcombine.low %v2573, %v2580
        %v2584 = vunpack.c.l.s4 1966171168
        %v2585 = vunpack.c.0.s8 %v2584
        %v2586 = vlaneseq
        %v2587 = vshrl.u32 %v2586, 7
        %v2588 = vsub.s32 %v2585, %v2587
        %v2589 = vrot.slane %v2581, %v2588
        %v2591 = vunpack.c.l.s4 1966171168
        %v2592 = vunpack.c.0.s8 %v2591
        %v2593 = vlaneseq
        %v2594 = vshrl.u32 %v2593, 7
        %v2595 = vsub.s32 %v2592, %v2594
        %v2596 = vrot.slane %v2582, %v2595
        %v2597 = vcombine.low %v2589, %v2596
        %v2598 = vcombine.low %v1858, %v1883
        %v2599 = vcombine.low %v1897, %v1905
        %v2600 = vcombine.low %v1907, %v1890
        %v2601 = vcombine.low %v1904, %v1906
        %v2603 = vunpack.c.l.s4 1966171168
        %v2604 = vunpack.c.0.s8 %v2603
        %v2605 = vlaneseq
        %v2606 = vshrl.u32 %v2605, 7
        %v2607 = vsub.s32 %v2604, %v2606
        %v2608 = vrot.slane %v2598, %v2607
        %v2610 = vunpack.c.l.s4 1966171168
        %v2611 = vunpack.c.0.s8 %v2610
        %v2612 = vlaneseq
        %v2613 = vshrl.u32 %v2612, 7
        %v2614 = vsub.s32 %v2611, %v2613
        %v2615 = vrot.slane %v2599, %v2614
        %v2617 = vunpack.c.l.s4 1966171168
        %v2618 = vunpack.c.0.s8 %v2617
        %v2619 = vlaneseq
        %v2620 = vshrl.u32 %v2619, 7
        %v2621 = vsub.s32 %v2618, %v2620
        %v2622 = vrot.slane %v2600, %v2621
        %v2624 = vunpack.c.l.s4 1966171168
        %v2625 = vunpack.c.0.s8 %v2624
        %v2626 = vlaneseq
        %v2627 = vshrl.u32 %v2626, 7
        %v2628 = vsub.s32 %v2625, %v2627
        %v2629 = vrot.slane %v2601, %v2628
        %v2630 = vcombine.low %v2608, %v2615
        %v2631 = vcombine.low %v2622, %v2629
        %v2633 = vunpack.c.l.s4 1966171168
        %v2634 = vunpack.c.0.s8 %v2633
        %v2635 = vlaneseq
        %v2636 = vshrl.u32 %v2635, 7
        %v2637 = vsub.s32 %v2634, %v2636
        %v2638 = vrot.slane %v2630, %v2637
        %v2640 = vunpack.c.l.s4 1966171168
        %v2641 = vunpack.c.0.s8 %v2640
        %v2642 = vlaneseq
        %v2643 = vshrl.u32 %v2642, 7
        %v2644 = vsub.s32 %v2641, %v2643
        %v2645 = vrot.slane %v2631, %v2644
        %v2646 = vcombine.low %v2638, %v2645
        %v2647 = vcombine.low %v1931, %v1945
        %v2648 = vcombine.low %v1953, %v1955
        %v2649 = vcombine.low %v1938, %v1952
        %v2650 = vcombine.low %v1954, %v1979
        %v2652 = vunpack.c.l.s4 1966171168
        %v2653 = vunpack.c.0.s8 %v2652
        %v2654 = vlaneseq
        %v2655 = vshrl.u32 %v2654, 7
        %v2656 = vsub.s32 %v2653, %v2655
        %v2657 = vrot.slane %v2647, %v2656
        %v2659 = vunpack.c.l.s4 1966171168
        %v2660 = vunpack.c.0.s8 %v2659
        %v2661 = vlaneseq
        %v2662 = vshrl.u32 %v2661, 7
        %v2663 = vsub.s32 %v2660, %v2662
        %v2664 = vrot.slane %v2648, %v2663
        %v2666 = vunpack.c.l.s4 1966171168
        %v2667 = vunpack.c.0.s8 %v2666
        %v2668 = vlaneseq
        %v2669 = vshrl.u32 %v2668, 7
        %v2670 = vsub.s32 %v2667, %v2669
        %v2671 = vrot.slane %v2649, %v2670
        %v2673 = vunpack.c.l.s4 1966171168
        %v2674 = vunpack.c.0.s8 %v2673
        %v2675 = vlaneseq
        %v2676 = vshrl.u32 %v2675, 7
        %v2677 = vsub.s32 %v2674, %v2676
        %v2678 = vrot.slane %v2650, %v2677
        %v2679 = vcombine.low %v2657, %v2664
        %v2680 = vcombine.low %v2671, %v2678
        %v2682 = vunpack.c.l.s4 1966171168
        %v2683 = vunpack.c.0.s8 %v2682
        %v2684 = vlaneseq
        %v2685 = vshrl.u32 %v2684, 7
        %v2686 = vsub.s32 %v2683, %v2685
        %v2687 = vrot.slane %v2679, %v2686
        %v2689 = vunpack.c.l.s4 1966171168
        %v2690 = vunpack.c.0.s8 %v2689
        %v2691 = vlaneseq
        %v2692 = vshrl.u32 %v2691, 7
        %v2693 = vsub.s32 %v2690, %v2692
        %v2694 = vrot.slane %v2680, %v2693
        %v2695 = vcombine.low %v2687, %v2694
        %v2696 = vcombine.low %v1993, %v2001
        %v2697 = vcombine.low %v2003, %v1986
        %v2698 = vcombine.low %v2000, %v2002
        %v2699 = vcombine.low %v2027, %v2041
        %v2701 = vunpack.c.l.s4 1966171168
        %v2702 = vunpack.c.0.s8 %v2701
        %v2703 = vlaneseq
        %v2704 = vshrl.u32 %v2703, 7
        %v2705 = vsub.s32 %v2702, %v2704
        %v2706 = vrot.slane %v2696, %v2705
        %v2708 = vunpack.c.l.s4 1966171168
        %v2709 = vunpack.c.0.s8 %v2708
        %v2710 = vlaneseq
        %v2711 = vshrl.u32 %v2710, 7
        %v2712 = vsub.s32 %v2709, %v2711
        %v2713 = vrot.slane %v2697, %v2712
        %v2715 = vunpack.c.l.s4 1966171168
        %v2716 = vunpack.c.0.s8 %v2715
        %v2717 = vlaneseq
        %v2718 = vshrl.u32 %v2717, 7
        %v2719 = vsub.s32 %v2716, %v2718
        %v2720 = vrot.slane %v2698, %v2719
        %v2722 = vunpack.c.l.s4 1966171168
        %v2723 = vunpack.c.0.s8 %v2722
        %v2724 = vlaneseq
        %v2725 = vshrl.u32 %v2724, 7
        %v2726 = vsub.s32 %v2723, %v2725
        %v2727 = vrot.slane %v2699, %v2726
        %v2728 = vcombine.low %v2706, %v2713
        %v2729 = vcombine.low %v2720, %v2727
        %v2731 = vunpack.c.l.s4 1966171168
        %v2732 = vunpack.c.0.s8 %v2731
        %v2733 = vlaneseq
        %v2734 = vshrl.u32 %v2733, 7
        %v2735 = vsub.s32 %v2732, %v2734
        %v2736 = vrot.slane %v2728, %v2735
        %v2738 = vunpack.c.l.s4 1966171168
        %v2739 = vunpack.c.0.s8 %v2738
        %v2740 = vlaneseq
        %v2741 = vshrl.u32 %v2740, 7
        %v2742 = vsub.s32 %v2739, %v2741
        %v2743 = vrot.slane %v2729, %v2742
        %v2744 = vcombine.low %v2736, %v2743
        %v2745 = vcombine.low %v2049, %v2051
        %v2746 = vcombine.low %v2034, %v2048
        %v2747 = vcombine.low %v2050, %v2075
        %v2748 = vcombine.low %v2089, %v2097
        %v2750 = vunpack.c.l.s4 1966171168
        %v2751 = vunpack.c.0.s8 %v2750
        %v2752 = vlaneseq
        %v2753 = vshrl.u32 %v2752, 7
        %v2754 = vsub.s32 %v2751, %v2753
        %v2755 = vrot.slane %v2745, %v2754
        %v2757 = vunpack.c.l.s4 1966171168
        %v2758 = vunpack.c.0.s8 %v2757
        %v2759 = vlaneseq
        %v2760 = vshrl.u32 %v2759, 7
        %v2761 = vsub.s32 %v2758, %v2760
        %v2762 = vrot.slane %v2746, %v2761
        %v2764 = vunpack.c.l.s4 1966171168
        %v2765 = vunpack.c.0.s8 %v2764
        %v2766 = vlaneseq
        %v2767 = vshrl.u32 %v2766, 7
        %v2768 = vsub.s32 %v2765, %v2767
        %v2769 = vrot.slane %v2747, %v2768
        %v2771 = vunpack.c.l.s4 1966171168
        %v2772 = vunpack.c.0.s8 %v2771
        %v2773 = vlaneseq
        %v2774 = vshrl.u32 %v2773, 7
        %v2775 = vsub.s32 %v2772, %v2774
        %v2776 = vrot.slane %v2748, %v2775
        %v2777 = vcombine.low %v2755, %v2762
        %v2778 = vcombine.low %v2769, %v2776
        %v2780 = vunpack.c.l.s4 1966171168
        %v2781 = vunpack.c.0.s8 %v2780
        %v2782 = vlaneseq
        %v2783 = vshrl.u32 %v2782, 7
        %v2784 = vsub.s32 %v2781, %v2783
        %v2785 = vrot.slane %v2777, %v2784
        %v2787 = vunpack.c.l.s4 1966171168
        %v2788 = vunpack.c.0.s8 %v2787
        %v2789 = vlaneseq
        %v2790 = vshrl.u32 %v2789, 7
        %v2791 = vsub.s32 %v2788, %v2790
        %v2792 = vrot.slane %v2778, %v2791
        %v2793 = vcombine.low %v2785, %v2792
        %v2794 = vcombine.low %v2099, %v2082
        %v2795 = vcombine.low %v2096, %v2098
        %v2796 = vcombine.low %v2123, %v2137
        %v2797 = vcombine.low %v2145, %v2147
        %v2799 = vunpack.c.l.s4 1966171168
        %v2800 = vunpack.c.0.s8 %v2799
        %v2801 = vlaneseq
        %v2802 = vshrl.u32 %v2801, 7
        %v2803 = vsub.s32 %v2800, %v2802
        %v2804 = vrot.slane %v2794, %v2803
        %v2806 = vunpack.c.l.s4 1966171168
        %v2807 = vunpack.c.0.s8 %v2806
        %v2808 = vlaneseq
        %v2809 = vshrl.u32 %v2808, 7
        %v2810 = vsub.s32 %v2807, %v2809
        %v2811 = vrot.slane %v2795, %v2810
        %v2813 = vunpack.c.l.s4 1966171168
        %v2814 = vunpack.c.0.s8 %v2813
        %v2815 = vlaneseq
        %v2816 = vshrl.u32 %v2815, 7
        %v2817 = vsub.s32 %v2814, %v2816
        %v2818 = vrot.slane %v2796, %v2817
        %v2820 = vunpack.c.l.s4 1966171168
        %v2821 = vunpack.c.0.s8 %v2820
        %v2822 = vlaneseq
        %v2823 = vshrl.u32 %v2822, 7
        %v2824 = vsub.s32 %v2821, %v2823
        %v2825 = vrot.slane %v2797, %v2824
        %v2826 = vcombine.low %v2804, %v2811
        %v2827 = vcombine.low %v2818, %v2825
        %v2829 = vunpack.c.l.s4 1966171168
        %v2830 = vunpack.c.0.s8 %v2829
        %v2831 = vlaneseq
        %v2832 = vshrl.u32 %v2831, 7
        %v2833 = vsub.s32 %v2830, %v2832
        %v2834 = vrot.slane %v2826, %v2833
        %v2836 = vunpack.c.l.s4 1966171168
        %v2837 = vunpack.c.0.s8 %v2836
        %v2838 = vlaneseq
        %v2839 = vshrl.u32 %v2838, 7
        %v2840 = vsub.s32 %v2837, %v2839
        %v2841 = vrot.slane %v2827, %v2840
        %v2842 = vcombine.low %v2834, %v2841
        %v2843 = vcombine.low %v2130, %v2144
        %v2844 = vcombine.low %v2146, %v2171
        %v2845 = vcombine.low %v2185, %v2193
        %v2846 = vcombine.low %v2195, %v2178
        %v2848 = vunpack.c.l.s4 1966171168
        %v2849 = vunpack.c.0.s8 %v2848
        %v2850 = vlaneseq
        %v2851 = vshrl.u32 %v2850, 7
        %v2852 = vsub.s32 %v2849, %v2851
        %v2853 = vrot.slane %v2843, %v2852
        %v2855 = vunpack.c.l.s4 1966171168
        %v2856 = vunpack.c.0.s8 %v2855
        %v2857 = vlaneseq
        %v2858 = vshrl.u32 %v2857, 7
        %v2859 = vsub.s32 %v2856, %v2858
        %v2860 = vrot.slane %v2844, %v2859
        %v2862 = vunpack.c.l.s4 1966171168
        %v2863 = vunpack.c.0.s8 %v2862
        %v2864 = vlaneseq
        %v2865 = vshrl.u32 %v2864, 7
        %v2866 = vsub.s32 %v2863, %v2865
        %v2867 = vrot.slane %v2845, %v2866
        %v2869 = vunpack.c.l.s4 1966171168
        %v2870 = vunpack.c.0.s8 %v2869
        %v2871 = vlaneseq
        %v2872 = vshrl.u32 %v2871, 7
        %v2873 = vsub.s32 %v2870, %v2872
        %v2874 = vrot.slane %v2846, %v2873
        %v2875 = vcombine.low %v2853, %v2860
        %v2876 = vcombine.low %v2867, %v2874
        %v2878 = vunpack.c.l.s4 1966171168
        %v2879 = vunpack.c.0.s8 %v2878
        %v2880 = vlaneseq
        %v2881 = vshrl.u32 %v2880, 7
        %v2882 = vsub.s32 %v2879, %v2881
        %v2883 = vrot.slane %v2875, %v2882
        %v2885 = vunpack.c.l.s4 1966171168
        %v2886 = vunpack.c.0.s8 %v2885
        %v2887 = vlaneseq
        %v2888 = vshrl.u32 %v2887, 7
        %v2889 = vsub.s32 %v2886, %v2888
        %v2890 = vrot.slane %v2876, %v2889
        %v2891 = vcombine.low %v2883, %v2890
        %v2892 = vcombine.low %v2192, %v2194
        %v2893 = vcombine.low %v2219, %v2233
        %v2894 = vcombine.low %v2241, %v2243
        %v2895 = vcombine.low %v2226, %v2240
        %v2897 = vunpack.c.l.s4 1966171168
        %v2898 = vunpack.c.0.s8 %v2897
        %v2899 = vlaneseq
        %v2900 = vshrl.u32 %v2899, 7
        %v2901 = vsub.s32 %v2898, %v2900
        %v2902 = vrot.slane %v2892, %v2901
        %v2904 = vunpack.c.l.s4 1966171168
        %v2905 = vunpack.c.0.s8 %v2904
        %v2906 = vlaneseq
        %v2907 = vshrl.u32 %v2906, 7
        %v2908 = vsub.s32 %v2905, %v2907
        %v2909 = vrot.slane %v2893, %v2908
        %v2911 = vunpack.c.l.s4 1966171168
        %v2912 = vunpack.c.0.s8 %v2911
        %v2913 = vlaneseq
        %v2914 = vshrl.u32 %v2913, 7
        %v2915 = vsub.s32 %v2912, %v2914
        %v2916 = vrot.slane %v2894, %v2915
        %v2918 = vunpack.c.l.s4 1966171168
        %v2919 = vunpack.c.0.s8 %v2918
        %v2920 = vlaneseq
        %v2921 = vshrl.u32 %v2920, 7
        %v2922 = vsub.s32 %v2919, %v2921
        %v2923 = vrot.slane %v2895, %v2922
        %v2924 = vcombine.low %v2902, %v2909
        %v2925 = vcombine.low %v2916, %v2923
        %v2927 = vunpack.c.l.s4 1966171168
        %v2928 = vunpack.c.0.s8 %v2927
        %v2929 = vlaneseq
        %v2930 = vshrl.u32 %v2929, 7
        %v2931 = vsub.s32 %v2928, %v2930
        %v2932 = vrot.slane %v2924, %v2931
        %v2934 = vunpack.c.l.s4 1966171168
        %v2935 = vunpack.c.0.s8 %v2934
        %v2936 = vlaneseq
        %v2937 = vshrl.u32 %v2936, 7
        %v2938 = vsub.s32 %v2935, %v2937
        %v2939 = vrot.slane %v2925, %v2938
        %v2940 = vcombine.low %v2932, %v2939
        %v2941 = vcombine.low %v2242, %v2267
        %v2942 = vcombine.low %v2281, %v2289
        %v2943 = vcombine.low %v2291, %v2274
        %v2944 = vcombine.low %v2288, %v2290
        %v2946 = vunpack.c.l.s4 1966171168
        %v2947 = vunpack.c.0.s8 %v2946
        %v2948 = vlaneseq
        %v2949 = vshrl.u32 %v2948, 7
        %v2950 = vsub.s32 %v2947, %v2949
        %v2951 = vrot.slane %v2941, %v2950
        %v2953 = vunpack.c.l.s4 1966171168
        %v2954 = vunpack.c.0.s8 %v2953
        %v2955 = vlaneseq
        %v2956 = vshrl.u32 %v2955, 7
        %v2957 = vsub.s32 %v2954, %v2956
        %v2958 = vrot.slane %v2942, %v2957
        %v2960 = vunpack.c.l.s4 1966171168
        %v2961 = vunpack.c.0.s8 %v2960
        %v2962 = vlaneseq
        %v2963 = vshrl.u32 %v2962, 7
        %v2964 = vsub.s32 %v2961, %v2963
        %v2965 = vrot.slane %v2943, %v2964
        %v2967 = vunpack.c.l.s4 1966171168
        %v2968 = vunpack.c.0.s8 %v2967
        %v2969 = vlaneseq
        %v2970 = vshrl.u32 %v2969, 7
        %v2971 = vsub.s32 %v2968, %v2970
        %v2972 = vrot.slane %v2944, %v2971
        %v2973 = vcombine.low %v2951, %v2958
        %v2974 = vcombine.low %v2965, %v2972
        %v2976 = vunpack.c.l.s4 1966171168
        %v2977 = vunpack.c.0.s8 %v2976
        %v2978 = vlaneseq
        %v2979 = vshrl.u32 %v2978, 7
        %v2980 = vsub.s32 %v2977, %v2979
        %v2981 = vrot.slane %v2973, %v2980
        %v2983 = vunpack.c.l.s4 1966171168
        %v2984 = vunpack.c.0.s8 %v2983
        %v2985 = vlaneseq
        %v2986 = vshrl.u32 %v2985, 7
        %v2987 = vsub.s32 %v2984, %v2986
        %v2988 = vrot.slane %v2974, %v2987
        %v2989 = vcombine.low %v2981, %v2988
        %v2995 = vunpack.c.l.b16 %v2292
        %v2996 = vunpack.c.l.b16 %v2293
        %v2997 = vunpack.c.l.b16 %v2294
        %v2998 = vunpack.c.l.b16 %v2295
        %v2999 = vunpack.c.l.b16 %v2296
        %v3000 = vpack.c.b16 %v2996, %v2995
        %v3001 = vpack.c.b16 %v2998, %v2997
        %v3002 = vpack.c.b16 %v2999, %v2999
        %vm3005 = vcmask 293888
        %v3007 = vsel %vm3005, %v2352, 0
        %v3010 = vsel %vm3005, %v2401, 0
        %v3013 = vsel %vm3005, %v2450, 0
        %v3016 = vsel %vm3005, %v2499, 0
        %v3019 = vsel %vm3005, %v2548, 0
        %v3022 = vsel %vm3005, %v2597, 0
        %v3025 = vsel %vm3005, %v2646, 0
        %v3028 = vsel %vm3005, %v2695, 0
        %v3031 = vsel %vm3005, %v2744, 0
        %v3034 = vsel %vm3005, %v2793, 0
        %v3037 = vsel %vm3005, %v2842, 0
        %v3040 = vsel %vm3005, %v2891, 0
        %v3043 = vsel %vm3005, %v2940, 0
        %v3046 = vsel %vm3005, %v2989, 0
        %vm3048 = vcmask 1041408
        %v3050 = vsel %vm3048, %v3002, 0
        %3052 = vmatprep.subr.bf16.mxu0 0
        %3053 = vmatpush1.bf16.msra.mxu0 %v3000
        %3054 = vmatprep.subr.bf16.mxu0 0
        %3055 = vmatpush1.bf16.msra.mxu0 %v3001
        %3056 = vmatprep.subr.bf16.mxu0 0
        %3057 = vmatpush1.bf16.msra.mxu0 %v3050
        %3058 = vmatprep.subr.bf16.mxu0 0
        %3059 = vmatpush1.bf16.msra.mxu0 0
        %3060 = vmatprep.subr.bf16.mxu0 0
        %3061 = vmatpush1.bf16.msra.mxu0 0
        %3062 = vmatprep.subr.bf16.mxu0 0
        %3063 = vmatpush1.bf16.msra.mxu0 0
        %3064 = vmatprep.subr.bf16.mxu0 0
        %3065 = vmatpush1.bf16.msra.mxu0 0
        %3066 = vmatprep.subr.bf16.mxu0 0
        %3067 = vmatpush1.bf16.msra.mxu0 0
        %3068 = vmatprep.subr.bf16.mxu0 0
        %3069 = vmatpush1.bf16.msra.mxu0 0
        %3070 = vmatprep.subr.bf16.mxu0 0
        %3071 = vmatpush1.bf16.msra.mxu0 0
        %3072 = vmatprep.subr.bf16.mxu0 0
        %3073 = vmatpush1.bf16.msra.mxu0 0
        %3074 = vmatprep.subr.bf16.mxu0 0
        %3075 = vmatpush1.bf16.msra.mxu0 0
        %3076 = vmatprep.subr.bf16.mxu0 0
        %3077 = vmatpush1.bf16.msra.mxu0 0
        %3078 = vmatprep.subr.bf16.mxu0 0
        %3079 = vmatpush1.bf16.msra.mxu0 0
        %3080 = vmatprep.subr.bf16.mxu0 0
        %3081 = vmatpush1.bf16.msra.mxu0 0
        %3082 = vmatprep.subr.bf16.mxu0 0
        %3083 = vmatpush1.bf16.msra.mxu0 0
        %3084 = vmatprep.mubr.bf16.mxu0 0
        %3085 = vmatmul.mubr.bf16.gmra.mrb[0].mxu0 %v3007
        %v3086 = vpop.f32.mrb[0].mxu0
        %v3087 = vadd.f32 %v2302, %v3086
        %v3088 = vpop.f32.mrb[0].mxu0
        %v3089 = vpop.f32.mrb[0].mxu0
        %v3090 = vadd.f32 %v2302, %v3089
        %v3091 = vpop.f32.mrb[0].mxu0
        %3092 = vmatprep.mubr.bf16.mxu0 0
        %3093 = vmatmul.mubr.bf16.gmra.mrb[0].mxu0 %v3010
        %v3094 = vpop.f32.mrb[0].mxu0
        %v3095 = vadd.f32 %v2302, %v3094
        %v3096 = vpop.f32.mrb[0].mxu0
        %v3097 = vpop.f32.mrb[0].mxu0
        %v3098 = vadd.f32 %v2302, %v3097
        %v3099 = vpop.f32.mrb[0].mxu0
        %3100 = vmatprep.mubr.bf16.mxu0 0
        %3101 = vmatmul.mubr.bf16.gmra.mrb[0].mxu0 %v3013
        %v3102 = vpop.f32.mrb[0].mxu0
        %v3103 = vadd.f32 %v2302, %v3102
        %v3104 = vpop.f32.mrb[0].mxu0
        %v3105 = vpop.f32.mrb[0].mxu0
        %v3106 = vadd.f32 %v2302, %v3105
        %v3107 = vpop.f32.mrb[0].mxu0
        %3108 = vmatprep.mubr.bf16.mxu0 0
        %3109 = vmatmul.mubr.bf16.gmra.mrb[0].mxu0 %v3016
        %v3110 = vpop.f32.mrb[0].mxu0
        %v3111 = vadd.f32 %v2302, %v3110
        %v3112 = vpop.f32.mrb[0].mxu0
        %v3113 = vpop.f32.mrb[0].mxu0
        %v3114 = vadd.f32 %v2302, %v3113
        %v3115 = vpop.f32.mrb[0].mxu0
        %3116 = vmatprep.mubr.bf16.mxu0 0
        %3117 = vmatmul.mubr.bf16.gmra.mrb[0].mxu0 %v3019
        %v3118 = vpop.f32.mrb[0].mxu0
        %v3119 = vadd.f32 %v2302, %v3118
        %v3120 = vpop.f32.mrb[0].mxu0
        %v3121 = vpop.f32.mrb[0].mxu0
        %v3122 = vadd.f32 %v2302, %v3121
        %v3123 = vpop.f32.mrb[0].mxu0
        %3124 = vmatprep.mubr.bf16.mxu0 0
        %3125 = vmatmul.mubr.bf16.gmra.mrb[0].mxu0 %v3022
        %v3126 = vpop.f32.mrb[0].mxu0
        %v3127 = vadd.f32 %v2302, %v3126
        %v3128 = vpop.f32.mrb[0].mxu0
        %v3129 = vpop.f32.mrb[0].mxu0
        %v3130 = vadd.f32 %v2302, %v3129
        %v3131 = vpop.f32.mrb[0].mxu0
        %3132 = vmatprep.mubr.bf16.mxu0 0
        %3133 = vmatmul.mubr.bf16.gmra.mrb[0].mxu0 %v3025
        %v3134 = vpop.f32.mrb[0].mxu0
        %v3135 = vadd.f32 %v2302, %v3134
        %v3136 = vpop.f32.mrb[0].mxu0
        %v3137 = vpop.f32.mrb[0].mxu0
        %v3138 = vadd.f32 %v2302, %v3137
        %v3139 = vpop.f32.mrb[0].mxu0
        %3140 = vmatprep.mubr.bf16.mxu0 0
        %3141 = vmatmul.mubr.bf16.gmra.mrb[0].mxu0 %v3028
        %v3142 = vpop.f32.mrb[0].mxu0
        %v3143 = vadd.f32 %v2302, %v3142
        %v3144 = vpop.f32.mrb[0].mxu0
        %v3145 = vpop.f32.mrb[0].mxu0
        %v3146 = vadd.f32 %v2302, %v3145
        %v3147 = vpop.f32.mrb[0].mxu0
        %3148 = vmatprep.mubr.bf16.mxu0 0
        %3149 = vmatmul.mubr.bf16.gmra.mrb[0].mxu0 %v3031
        %v3150 = vpop.f32.mrb[0].mxu0
        %v3151 = vadd.f32 %v2302, %v3150
        %v3152 = vpop.f32.mrb[0].mxu0
        %v3153 = vpop.f32.mrb[0].mxu0
        %v3154 = vadd.f32 %v2302, %v3153
        %v3155 = vpop.f32.mrb[0].mxu0
        %3156 = vmatprep.mubr.bf16.mxu0 0
        %3157 = vmatmul.mubr.bf16.gmra.mrb[0].mxu0 %v3034
        %v3158 = vpop.f32.mrb[0].mxu0
        %v3159 = vadd.f32 %v2302, %v3158
        %v3160 = vpop.f32.mrb[0].mxu0
        %v3161 = vpop.f32.mrb[0].mxu0
        %v3162 = vadd.f32 %v2302, %v3161
        %v3163 = vpop.f32.mrb[0].mxu0
        %3164 = vmatprep.mubr.bf16.mxu0 0
        %3165 = vmatmul.mubr.bf16.gmra.mrb[0].mxu0 %v3037
        %v3166 = vpop.f32.mrb[0].mxu0
        %v3167 = vadd.f32 %v2302, %v3166
        %v3168 = vpop.f32.mrb[0].mxu0
        %v3169 = vpop.f32.mrb[0].mxu0
        %v3170 = vadd.f32 %v2302, %v3169
        %v3171 = vpop.f32.mrb[0].mxu0
        %3172 = vmatprep.mubr.bf16.mxu0 0
        %3173 = vmatmul.mubr.bf16.gmra.mrb[0].mxu0 %v3040
        %v3174 = vpop.f32.mrb[0].mxu0
        %v3175 = vadd.f32 %v2302, %v3174
        %v3176 = vpop.f32.mrb[0].mxu0
        %v3177 = vpop.f32.mrb[0].mxu0
        %v3178 = vadd.f32 %v2302, %v3177
        %v3179 = vpop.f32.mrb[0].mxu0
        %3180 = vmatprep.mubr.bf16.mxu0 0
        %3181 = vmatmul.mubr.bf16.gmra.mrb[0].mxu0 %v3043
        %v3182 = vpop.f32.mrb[0].mxu0
        %v3183 = vadd.f32 %v2302, %v3182
        %v3184 = vpop.f32.mrb[0].mxu0
        %v3185 = vpop.f32.mrb[0].mxu0
        %v3186 = vadd.f32 %v2302, %v3185
        %v3187 = vpop.f32.mrb[0].mxu0
        %3188 = vmatprep.mubr.bf16.mxu0 0
        %3189 = vmatmul.mubr.bf16.gmra.mrb[0].mxu0 %v3046
        %v3190 = vpop.f32.mrb[0].mxu0
        %v3191 = vadd.f32 %v2302, %v3190
        %v3192 = vpop.f32.mrb[0].mxu0
        %v3193 = vpop.f32.mrb[0].mxu0
        %v3194 = vadd.f32 %v2302, %v3193
        %v3195 = vpop.f32.mrb[0].mxu0
        %3196 = vdwg.mxu0
        %v3197 = vmax.f32 %v3087, 0.0
        %v3198 = vmax.f32 %v3090, 0.0
        %v3199 = vmax.f32 %v3095, 0.0
        %v3200 = vmax.f32 %v3098, 0.0
        %v3201 = vmax.f32 %v3103, 0.0
        %v3202 = vmax.f32 %v3106, 0.0
        %v3203 = vmax.f32 %v3111, 0.0
        %v3204 = vmax.f32 %v3114, 0.0
        %v3205 = vmax.f32 %v3119, 0.0
        %v3206 = vmax.f32 %v3122, 0.0
        %v3207 = vmax.f32 %v3127, 0.0
        %v3208 = vmax.f32 %v3130, 0.0
        %v3209 = vmax.f32 %v3135, 0.0
        %v3210 = vmax.f32 %v3138, 0.0
        %v3211 = vmax.f32 %v3143, 0.0
        %v3212 = vmax.f32 %v3146, 0.0
        %v3213 = vmax.f32 %v3151, 0.0
        %v3214 = vmax.f32 %v3154, 0.0
        %v3215 = vmax.f32 %v3159, 0.0
        %v3216 = vmax.f32 %v3162, 0.0
        %v3217 = vmax.f32 %v3167, 0.0
        %v3218 = vmax.f32 %v3170, 0.0
        %v3219 = vmax.f32 %v3175, 0.0
        %v3220 = vmax.f32 %v3178, 0.0
        %v3221 = vmax.f32 %v3183, 0.0
        %v3222 = vmax.f32 %v3186, 0.0
        %v3223 = vmax.f32 %v3191, 0.0
        %v3224 = vmax.f32 %v3194, 0.0
        %v3225 = vpack.c.bf16 %v3198, %v3197
        %v3226 = vpack.c.bf16 %v3200, %v3199
        %v3227 = vpack.c.bf16 %v3202, %v3201
        %v3228 = vpack.c.bf16 %v3204, %v3203
        %v3229 = vpack.c.bf16 %v3206, %v3205
        %v3230 = vpack.c.bf16 %v3208, %v3207
        %v3231 = vpack.c.bf16 %v3210, %v3209
        %v3232 = vpack.c.bf16 %v3212, %v3211
        %v3233 = vpack.c.bf16 %v3214, %v3213
        %v3234 = vpack.c.bf16 %v3216, %v3215
        %v3235 = vpack.c.bf16 %v3218, %v3217
        %v3236 = vpack.c.bf16 %v3220, %v3219
        %v3237 = vpack.c.bf16 %v3222, %v3221
        %v3238 = vpack.c.bf16 %v3224, %v3223
        %v3253 = vcombine.high %v3225, %v3225
        %v3255 = vunpack.c.l.s4 1966171168
        %v3256 = vunpack.c.0.s8 %v3255
        %v3257 = vlaneseq
        %v3258 = vshrl.u32 %v3257, 7
        %v3259 = vsub.s32 %v3256, %v3258
        %v3260 = vrot.slane %v3225, %v3259
        %v3262 = vunpack.c.l.s4 1966171168
        %v3263 = vunpack.c.0.s8 %v3262
        %v3264 = vlaneseq
        %v3265 = vshrl.u32 %v3264, 7
        %v3266 = vsub.s32 %v3263, %v3265
        %v3267 = vrot.slane %v3253, %v3266
        %v3268 = vcombine.high %v3260, %v3260
        %v3269 = vcombine.high %v3267, %v3267
        %v3271 = vunpack.c.l.s4 1966171168
        %v3272 = vunpack.c.0.s8 %v3271
        %v3273 = vlaneseq
        %v3274 = vshrl.u32 %v3273, 7
        %v3275 = vsub.s32 %v3272, %v3274
        %v3276 = vrot.slane %v3260, %v3275
        %v3278 = vunpack.c.l.s4 1966171168
        %v3279 = vunpack.c.0.s8 %v3278
        %v3280 = vlaneseq
        %v3281 = vshrl.u32 %v3280, 7
        %v3282 = vsub.s32 %v3279, %v3281
        %v3283 = vrot.slane %v3267, %v3282
        %v3285 = vunpack.c.l.s4 1966171168
        %v3286 = vunpack.c.0.s8 %v3285
        %v3287 = vlaneseq
        %v3288 = vshrl.u32 %v3287, 7
        %v3289 = vsub.s32 %v3286, %v3288
        %v3290 = vrot.slane %v3268, %v3289
        %v3292 = vunpack.c.l.s4 1966171168
        %v3293 = vunpack.c.0.s8 %v3292
        %v3294 = vlaneseq
        %v3295 = vshrl.u32 %v3294, 7
        %v3296 = vsub.s32 %v3293, %v3295
        %v3297 = vrot.slane %v3269, %v3296
        %v3298 = vcombine.high %v3276, %v3276
        %v3299 = vcombine.high %v3283, %v3283
        %v3300 = vcombine.high %v3290, %v3290
        %v3301 = vcombine.high %v3297, %v3297
        %v3302 = vcombine.high %v3226, %v3226
        %v3304 = vunpack.c.l.s4 1966171168
        %v3305 = vunpack.c.0.s8 %v3304
        %v3306 = vlaneseq
        %v3307 = vshrl.u32 %v3306, 7
        %v3308 = vsub.s32 %v3305, %v3307
        %v3309 = vrot.slane %v3226, %v3308
        %v3311 = vunpack.c.l.s4 1966171168
        %v3312 = vunpack.c.0.s8 %v3311
        %v3313 = vlaneseq
        %v3314 = vshrl.u32 %v3313, 7
        %v3315 = vsub.s32 %v3312, %v3314
        %v3316 = vrot.slane %v3302, %v3315
        %v3317 = vcombine.high %v3309, %v3309
        %v3318 = vcombine.high %v3316, %v3316
        %v3320 = vunpack.c.l.s4 1966171168
        %v3321 = vunpack.c.0.s8 %v3320
        %v3322 = vlaneseq
        %v3323 = vshrl.u32 %v3322, 7
        %v3324 = vsub.s32 %v3321, %v3323
        %v3325 = vrot.slane %v3309, %v3324
        %v3327 = vunpack.c.l.s4 1966171168
        %v3328 = vunpack.c.0.s8 %v3327
        %v3329 = vlaneseq
        %v3330 = vshrl.u32 %v3329, 7
        %v3331 = vsub.s32 %v3328, %v3330
        %v3332 = vrot.slane %v3316, %v3331
        %v3334 = vunpack.c.l.s4 1966171168
        %v3335 = vunpack.c.0.s8 %v3334
        %v3336 = vlaneseq
        %v3337 = vshrl.u32 %v3336, 7
        %v3338 = vsub.s32 %v3335, %v3337
        %v3339 = vrot.slane %v3317, %v3338
        %v3341 = vunpack.c.l.s4 1966171168
        %v3342 = vunpack.c.0.s8 %v3341
        %v3343 = vlaneseq
        %v3344 = vshrl.u32 %v3343, 7
        %v3345 = vsub.s32 %v3342, %v3344
        %v3346 = vrot.slane %v3318, %v3345
        %v3347 = vcombine.high %v3325, %v3325
        %v3348 = vcombine.high %v3332, %v3332
        %v3349 = vcombine.high %v3339, %v3339
        %v3350 = vcombine.high %v3346, %v3346
        %v3351 = vcombine.high %v3227, %v3227
        %v3353 = vunpack.c.l.s4 1966171168
        %v3354 = vunpack.c.0.s8 %v3353
        %v3355 = vlaneseq
        %v3356 = vshrl.u32 %v3355, 7
        %v3357 = vsub.s32 %v3354, %v3356
        %v3358 = vrot.slane %v3227, %v3357
        %v3360 = vunpack.c.l.s4 1966171168
        %v3361 = vunpack.c.0.s8 %v3360
        %v3362 = vlaneseq
        %v3363 = vshrl.u32 %v3362, 7
        %v3364 = vsub.s32 %v3361, %v3363
        %v3365 = vrot.slane %v3351, %v3364
        %v3366 = vcombine.high %v3358, %v3358
        %v3367 = vcombine.high %v3365, %v3365
        %v3369 = vunpack.c.l.s4 1966171168
        %v3370 = vunpack.c.0.s8 %v3369
        %v3371 = vlaneseq
        %v3372 = vshrl.u32 %v3371, 7
        %v3373 = vsub.s32 %v3370, %v3372
        %v3374 = vrot.slane %v3358, %v3373
        %v3376 = vunpack.c.l.s4 1966171168
        %v3377 = vunpack.c.0.s8 %v3376
        %v3378 = vlaneseq
        %v3379 = vshrl.u32 %v3378, 7
        %v3380 = vsub.s32 %v3377, %v3379
        %v3381 = vrot.slane %v3365, %v3380
        %v3383 = vunpack.c.l.s4 1966171168
        %v3384 = vunpack.c.0.s8 %v3383
        %v3385 = vlaneseq
        %v3386 = vshrl.u32 %v3385, 7
        %v3387 = vsub.s32 %v3384, %v3386
        %v3388 = vrot.slane %v3366, %v3387
        %v3390 = vunpack.c.l.s4 1966171168
        %v3391 = vunpack.c.0.s8 %v3390
        %v3392 = vlaneseq
        %v3393 = vshrl.u32 %v3392, 7
        %v3394 = vsub.s32 %v3391, %v3393
        %v3395 = vrot.slane %v3367, %v3394
        %v3396 = vcombine.high %v3374, %v3374
        %v3397 = vcombine.high %v3381, %v3381
        %v3398 = vcombine.high %v3388, %v3388
        %v3399 = vcombine.high %v3395, %v3395
        %v3400 = vcombine.high %v3228, %v3228
        %v3402 = vunpack.c.l.s4 1966171168
        %v3403 = vunpack.c.0.s8 %v3402
        %v3404 = vlaneseq
        %v3405 = vshrl.u32 %v3404, 7
        %v3406 = vsub.s32 %v3403, %v3405
        %v3407 = vrot.slane %v3228, %v3406
        %v3409 = vunpack.c.l.s4 1966171168
        %v3410 = vunpack.c.0.s8 %v3409
        %v3411 = vlaneseq
        %v3412 = vshrl.u32 %v3411, 7
        %v3413 = vsub.s32 %v3410, %v3412
        %v3414 = vrot.slane %v3400, %v3413
        %v3415 = vcombine.high %v3407, %v3407
        %v3416 = vcombine.high %v3414, %v3414
        %v3418 = vunpack.c.l.s4 1966171168
        %v3419 = vunpack.c.0.s8 %v3418
        %v3420 = vlaneseq
        %v3421 = vshrl.u32 %v3420, 7
        %v3422 = vsub.s32 %v3419, %v3421
        %v3423 = vrot.slane %v3407, %v3422
        %v3425 = vunpack.c.l.s4 1966171168
        %v3426 = vunpack.c.0.s8 %v3425
        %v3427 = vlaneseq
        %v3428 = vshrl.u32 %v3427, 7
        %v3429 = vsub.s32 %v3426, %v3428
        %v3430 = vrot.slane %v3414, %v3429
        %v3432 = vunpack.c.l.s4 1966171168
        %v3433 = vunpack.c.0.s8 %v3432
        %v3434 = vlaneseq
        %v3435 = vshrl.u32 %v3434, 7
        %v3436 = vsub.s32 %v3433, %v3435
        %v3437 = vrot.slane %v3415, %v3436
        %v3439 = vunpack.c.l.s4 1966171168
        %v3440 = vunpack.c.0.s8 %v3439
        %v3441 = vlaneseq
        %v3442 = vshrl.u32 %v3441, 7
        %v3443 = vsub.s32 %v3440, %v3442
        %v3444 = vrot.slane %v3416, %v3443
        %v3445 = vcombine.high %v3423, %v3423
        %v3446 = vcombine.high %v3430, %v3430
        %v3447 = vcombine.high %v3437, %v3437
        %v3448 = vcombine.high %v3444, %v3444
        %v3449 = vcombine.high %v3229, %v3229
        %v3451 = vunpack.c.l.s4 1966171168
        %v3452 = vunpack.c.0.s8 %v3451
        %v3453 = vlaneseq
        %v3454 = vshrl.u32 %v3453, 7
        %v3455 = vsub.s32 %v3452, %v3454
        %v3456 = vrot.slane %v3229, %v3455
        %v3458 = vunpack.c.l.s4 1966171168
        %v3459 = vunpack.c.0.s8 %v3458
        %v3460 = vlaneseq
        %v3461 = vshrl.u32 %v3460, 7
        %v3462 = vsub.s32 %v3459, %v3461
        %v3463 = vrot.slane %v3449, %v3462
        %v3464 = vcombine.high %v3456, %v3456
        %v3465 = vcombine.high %v3463, %v3463
        %v3467 = vunpack.c.l.s4 1966171168
        %v3468 = vunpack.c.0.s8 %v3467
        %v3469 = vlaneseq
        %v3470 = vshrl.u32 %v3469, 7
        %v3471 = vsub.s32 %v3468, %v3470
        %v3472 = vrot.slane %v3456, %v3471
        %v3474 = vunpack.c.l.s4 1966171168
        %v3475 = vunpack.c.0.s8 %v3474
        %v3476 = vlaneseq
        %v3477 = vshrl.u32 %v3476, 7
        %v3478 = vsub.s32 %v3475, %v3477
        %v3479 = vrot.slane %v3463, %v3478
        %v3481 = vunpack.c.l.s4 1966171168
        %v3482 = vunpack.c.0.s8 %v3481
        %v3483 = vlaneseq
        %v3484 = vshrl.u32 %v3483, 7
        %v3485 = vsub.s32 %v3482, %v3484
        %v3486 = vrot.slane %v3464, %v3485
        %v3488 = vunpack.c.l.s4 1966171168
        %v3489 = vunpack.c.0.s8 %v3488
        %v3490 = vlaneseq
        %v3491 = vshrl.u32 %v3490, 7
        %v3492 = vsub.s32 %v3489, %v3491
        %v3493 = vrot.slane %v3465, %v3492
        %v3494 = vcombine.high %v3472, %v3472
        %v3495 = vcombine.high %v3479, %v3479
        %v3496 = vcombine.high %v3486, %v3486
        %v3497 = vcombine.high %v3493, %v3493
        %v3498 = vcombine.high %v3230, %v3230
        %v3500 = vunpack.c.l.s4 1966171168
        %v3501 = vunpack.c.0.s8 %v3500
        %v3502 = vlaneseq
        %v3503 = vshrl.u32 %v3502, 7
        %v3504 = vsub.s32 %v3501, %v3503
        %v3505 = vrot.slane %v3230, %v3504
        %v3507 = vunpack.c.l.s4 1966171168
        %v3508 = vunpack.c.0.s8 %v3507
        %v3509 = vlaneseq
        %v3510 = vshrl.u32 %v3509, 7
        %v3511 = vsub.s32 %v3508, %v3510
        %v3512 = vrot.slane %v3498, %v3511
        %v3513 = vcombine.high %v3505, %v3505
        %v3514 = vcombine.high %v3512, %v3512
        %v3516 = vunpack.c.l.s4 1966171168
        %v3517 = vunpack.c.0.s8 %v3516
        %v3518 = vlaneseq
        %v3519 = vshrl.u32 %v3518, 7
        %v3520 = vsub.s32 %v3517, %v3519
        %v3521 = vrot.slane %v3505, %v3520
        %v3523 = vunpack.c.l.s4 1966171168
        %v3524 = vunpack.c.0.s8 %v3523
        %v3525 = vlaneseq
        %v3526 = vshrl.u32 %v3525, 7
        %v3527 = vsub.s32 %v3524, %v3526
        %v3528 = vrot.slane %v3512, %v3527
        %v3530 = vunpack.c.l.s4 1966171168
        %v3531 = vunpack.c.0.s8 %v3530
        %v3532 = vlaneseq
        %v3533 = vshrl.u32 %v3532, 7
        %v3534 = vsub.s32 %v3531, %v3533
        %v3535 = vrot.slane %v3513, %v3534
        %v3537 = vunpack.c.l.s4 1966171168
        %v3538 = vunpack.c.0.s8 %v3537
        %v3539 = vlaneseq
        %v3540 = vshrl.u32 %v3539, 7
        %v3541 = vsub.s32 %v3538, %v3540
        %v3542 = vrot.slane %v3514, %v3541
        %v3543 = vcombine.high %v3521, %v3521
        %v3544 = vcombine.high %v3528, %v3528
        %v3545 = vcombine.high %v3535, %v3535
        %v3546 = vcombine.high %v3542, %v3542
        %v3547 = vcombine.high %v3231, %v3231
        %v3549 = vunpack.c.l.s4 1966171168
        %v3550 = vunpack.c.0.s8 %v3549
        %v3551 = vlaneseq
        %v3552 = vshrl.u32 %v3551, 7
        %v3553 = vsub.s32 %v3550, %v3552
        %v3554 = vrot.slane %v3231, %v3553
        %v3556 = vunpack.c.l.s4 1966171168
        %v3557 = vunpack.c.0.s8 %v3556
        %v3558 = vlaneseq
        %v3559 = vshrl.u32 %v3558, 7
        %v3560 = vsub.s32 %v3557, %v3559
        %v3561 = vrot.slane %v3547, %v3560
        %v3562 = vcombine.high %v3554, %v3554
        %v3563 = vcombine.high %v3561, %v3561
        %v3565 = vunpack.c.l.s4 1966171168
        %v3566 = vunpack.c.0.s8 %v3565
        %v3567 = vlaneseq
        %v3568 = vshrl.u32 %v3567, 7
        %v3569 = vsub.s32 %v3566, %v3568
        %v3570 = vrot.slane %v3554, %v3569
        %v3572 = vunpack.c.l.s4 1966171168
        %v3573 = vunpack.c.0.s8 %v3572
        %v3574 = vlaneseq
        %v3575 = vshrl.u32 %v3574, 7
        %v3576 = vsub.s32 %v3573, %v3575
        %v3577 = vrot.slane %v3561, %v3576
        %v3579 = vunpack.c.l.s4 1966171168
        %v3580 = vunpack.c.0.s8 %v3579
        %v3581 = vlaneseq
        %v3582 = vshrl.u32 %v3581, 7
        %v3583 = vsub.s32 %v3580, %v3582
        %v3584 = vrot.slane %v3562, %v3583
        %v3586 = vunpack.c.l.s4 1966171168
        %v3587 = vunpack.c.0.s8 %v3586
        %v3588 = vlaneseq
        %v3589 = vshrl.u32 %v3588, 7
        %v3590 = vsub.s32 %v3587, %v3589
        %v3591 = vrot.slane %v3563, %v3590
        %v3592 = vcombine.high %v3570, %v3570
        %v3593 = vcombine.high %v3577, %v3577
        %v3594 = vcombine.high %v3584, %v3584
        %v3595 = vcombine.high %v3591, %v3591
        %v3596 = vcombine.high %v3232, %v3232
        %v3598 = vunpack.c.l.s4 1966171168
        %v3599 = vunpack.c.0.s8 %v3598
        %v3600 = vlaneseq
        %v3601 = vshrl.u32 %v3600, 7
        %v3602 = vsub.s32 %v3599, %v3601
        %v3603 = vrot.slane %v3232, %v3602
        %v3605 = vunpack.c.l.s4 1966171168
        %v3606 = vunpack.c.0.s8 %v3605
        %v3607 = vlaneseq
        %v3608 = vshrl.u32 %v3607, 7
        %v3609 = vsub.s32 %v3606, %v3608
        %v3610 = vrot.slane %v3596, %v3609
        %v3611 = vcombine.high %v3603, %v3603
        %v3612 = vcombine.high %v3610, %v3610
        %v3614 = vunpack.c.l.s4 1966171168
        %v3615 = vunpack.c.0.s8 %v3614
        %v3616 = vlaneseq
        %v3617 = vshrl.u32 %v3616, 7
        %v3618 = vsub.s32 %v3615, %v3617
        %v3619 = vrot.slane %v3603, %v3618
        %v3621 = vunpack.c.l.s4 1966171168
        %v3622 = vunpack.c.0.s8 %v3621
        %v3623 = vlaneseq
        %v3624 = vshrl.u32 %v3623, 7
        %v3625 = vsub.s32 %v3622, %v3624
        %v3626 = vrot.slane %v3610, %v3625
        %v3628 = vunpack.c.l.s4 1966171168
        %v3629 = vunpack.c.0.s8 %v3628
        %v3630 = vlaneseq
        %v3631 = vshrl.u32 %v3630, 7
        %v3632 = vsub.s32 %v3629, %v3631
        %v3633 = vrot.slane %v3611, %v3632
        %v3635 = vunpack.c.l.s4 1966171168
        %v3636 = vunpack.c.0.s8 %v3635
        %v3637 = vlaneseq
        %v3638 = vshrl.u32 %v3637, 7
        %v3639 = vsub.s32 %v3636, %v3638
        %v3640 = vrot.slane %v3612, %v3639
        %v3641 = vcombine.high %v3619, %v3619
        %v3642 = vcombine.high %v3626, %v3626
        %v3643 = vcombine.high %v3633, %v3633
        %v3644 = vcombine.high %v3640, %v3640
        %v3645 = vcombine.high %v3233, %v3233
        %v3647 = vunpack.c.l.s4 1966171168
        %v3648 = vunpack.c.0.s8 %v3647
        %v3649 = vlaneseq
        %v3650 = vshrl.u32 %v3649, 7
        %v3651 = vsub.s32 %v3648, %v3650
        %v3652 = vrot.slane %v3233, %v3651
        %v3654 = vunpack.c.l.s4 1966171168
        %v3655 = vunpack.c.0.s8 %v3654
        %v3656 = vlaneseq
        %v3657 = vshrl.u32 %v3656, 7
        %v3658 = vsub.s32 %v3655, %v3657
        %v3659 = vrot.slane %v3645, %v3658
        %v3660 = vcombine.high %v3652, %v3652
        %v3661 = vcombine.high %v3659, %v3659
        %v3663 = vunpack.c.l.s4 1966171168
        %v3664 = vunpack.c.0.s8 %v3663
        %v3665 = vlaneseq
        %v3666 = vshrl.u32 %v3665, 7
        %v3667 = vsub.s32 %v3664, %v3666
        %v3668 = vrot.slane %v3652, %v3667
        %v3670 = vunpack.c.l.s4 1966171168
        %v3671 = vunpack.c.0.s8 %v3670
        %v3672 = vlaneseq
        %v3673 = vshrl.u32 %v3672, 7
        %v3674 = vsub.s32 %v3671, %v3673
        %v3675 = vrot.slane %v3659, %v3674
        %v3677 = vunpack.c.l.s4 1966171168
        %v3678 = vunpack.c.0.s8 %v3677
        %v3679 = vlaneseq
        %v3680 = vshrl.u32 %v3679, 7
        %v3681 = vsub.s32 %v3678, %v3680
        %v3682 = vrot.slane %v3660, %v3681
        %v3684 = vunpack.c.l.s4 1966171168
        %v3685 = vunpack.c.0.s8 %v3684
        %v3686 = vlaneseq
        %v3687 = vshrl.u32 %v3686, 7
        %v3688 = vsub.s32 %v3685, %v3687
        %v3689 = vrot.slane %v3661, %v3688
        %v3690 = vcombine.high %v3668, %v3668
        %v3691 = vcombine.high %v3675, %v3675
        %v3692 = vcombine.high %v3682, %v3682
        %v3693 = vcombine.high %v3689, %v3689
        %v3694 = vcombine.high %v3234, %v3234
        %v3696 = vunpack.c.l.s4 1966171168
        %v3697 = vunpack.c.0.s8 %v3696
        %v3698 = vlaneseq
        %v3699 = vshrl.u32 %v3698, 7
        %v3700 = vsub.s32 %v3697, %v3699
        %v3701 = vrot.slane %v3234, %v3700
        %v3703 = vunpack.c.l.s4 1966171168
        %v3704 = vunpack.c.0.s8 %v3703
        %v3705 = vlaneseq
        %v3706 = vshrl.u32 %v3705, 7
        %v3707 = vsub.s32 %v3704, %v3706
        %v3708 = vrot.slane %v3694, %v3707
        %v3709 = vcombine.high %v3701, %v3701
        %v3710 = vcombine.high %v3708, %v3708
        %v3712 = vunpack.c.l.s4 1966171168
        %v3713 = vunpack.c.0.s8 %v3712
        %v3714 = vlaneseq
        %v3715 = vshrl.u32 %v3714, 7
        %v3716 = vsub.s32 %v3713, %v3715
        %v3717 = vrot.slane %v3701, %v3716
        %v3719 = vunpack.c.l.s4 1966171168
        %v3720 = vunpack.c.0.s8 %v3719
        %v3721 = vlaneseq
        %v3722 = vshrl.u32 %v3721, 7
        %v3723 = vsub.s32 %v3720, %v3722
        %v3724 = vrot.slane %v3708, %v3723
        %v3726 = vunpack.c.l.s4 1966171168
        %v3727 = vunpack.c.0.s8 %v3726
        %v3728 = vlaneseq
        %v3729 = vshrl.u32 %v3728, 7
        %v3730 = vsub.s32 %v3727, %v3729
        %v3731 = vrot.slane %v3709, %v3730
        %v3733 = vunpack.c.l.s4 1966171168
        %v3734 = vunpack.c.0.s8 %v3733
        %v3735 = vlaneseq
        %v3736 = vshrl.u32 %v3735, 7
        %v3737 = vsub.s32 %v3734, %v3736
        %v3738 = vrot.slane %v3710, %v3737
        %v3739 = vcombine.high %v3717, %v3717
        %v3740 = vcombine.high %v3724, %v3724
        %v3741 = vcombine.high %v3731, %v3731
        %v3742 = vcombine.high %v3738, %v3738
        %v3743 = vcombine.high %v3235, %v3235
        %v3745 = vunpack.c.l.s4 1966171168
        %v3746 = vunpack.c.0.s8 %v3745
        %v3747 = vlaneseq
        %v3748 = vshrl.u32 %v3747, 7
        %v3749 = vsub.s32 %v3746, %v3748
        %v3750 = vrot.slane %v3235, %v3749
        %v3752 = vunpack.c.l.s4 1966171168
        %v3753 = vunpack.c.0.s8 %v3752
        %v3754 = vlaneseq
        %v3755 = vshrl.u32 %v3754, 7
        %v3756 = vsub.s32 %v3753, %v3755
        %v3757 = vrot.slane %v3743, %v3756
        %v3758 = vcombine.high %v3750, %v3750
        %v3759 = vcombine.high %v3757, %v3757
        %v3761 = vunpack.c.l.s4 1966171168
        %v3762 = vunpack.c.0.s8 %v3761
        %v3763 = vlaneseq
        %v3764 = vshrl.u32 %v3763, 7
        %v3765 = vsub.s32 %v3762, %v3764
        %v3766 = vrot.slane %v3750, %v3765
        %v3768 = vunpack.c.l.s4 1966171168
        %v3769 = vunpack.c.0.s8 %v3768
        %v3770 = vlaneseq
        %v3771 = vshrl.u32 %v3770, 7
        %v3772 = vsub.s32 %v3769, %v3771
        %v3773 = vrot.slane %v3757, %v3772
        %v3775 = vunpack.c.l.s4 1966171168
        %v3776 = vunpack.c.0.s8 %v3775
        %v3777 = vlaneseq
        %v3778 = vshrl.u32 %v3777, 7
        %v3779 = vsub.s32 %v3776, %v3778
        %v3780 = vrot.slane %v3758, %v3779
        %v3782 = vunpack.c.l.s4 1966171168
        %v3783 = vunpack.c.0.s8 %v3782
        %v3784 = vlaneseq
        %v3785 = vshrl.u32 %v3784, 7
        %v3786 = vsub.s32 %v3783, %v3785
        %v3787 = vrot.slane %v3759, %v3786
        %v3788 = vcombine.high %v3766, %v3766
        %v3789 = vcombine.high %v3773, %v3773
        %v3790 = vcombine.high %v3780, %v3780
        %v3791 = vcombine.high %v3787, %v3787
        %v3792 = vcombine.high %v3236, %v3236
        %v3794 = vunpack.c.l.s4 1966171168
        %v3795 = vunpack.c.0.s8 %v3794
        %v3796 = vlaneseq
        %v3797 = vshrl.u32 %v3796, 7
        %v3798 = vsub.s32 %v3795, %v3797
        %v3799 = vrot.slane %v3236, %v3798
        %v3801 = vunpack.c.l.s4 1966171168
        %v3802 = vunpack.c.0.s8 %v3801
        %v3803 = vlaneseq
        %v3804 = vshrl.u32 %v3803, 7
        %v3805 = vsub.s32 %v3802, %v3804
        %v3806 = vrot.slane %v3792, %v3805
        %v3807 = vcombine.high %v3799, %v3799
        %v3808 = vcombine.high %v3806, %v3806
        %v3810 = vunpack.c.l.s4 1966171168
        %v3811 = vunpack.c.0.s8 %v3810
        %v3812 = vlaneseq
        %v3813 = vshrl.u32 %v3812, 7
        %v3814 = vsub.s32 %v3811, %v3813
        %v3815 = vrot.slane %v3799, %v3814
        %v3817 = vunpack.c.l.s4 1966171168
        %v3818 = vunpack.c.0.s8 %v3817
        %v3819 = vlaneseq
        %v3820 = vshrl.u32 %v3819, 7
        %v3821 = vsub.s32 %v3818, %v3820
        %v3822 = vrot.slane %v3806, %v3821
        %v3824 = vunpack.c.l.s4 1966171168
        %v3825 = vunpack.c.0.s8 %v3824
        %v3826 = vlaneseq
        %v3827 = vshrl.u32 %v3826, 7
        %v3828 = vsub.s32 %v3825, %v3827
        %v3829 = vrot.slane %v3807, %v3828
        %v3831 = vunpack.c.l.s4 1966171168
        %v3832 = vunpack.c.0.s8 %v3831
        %v3833 = vlaneseq
        %v3834 = vshrl.u32 %v3833, 7
        %v3835 = vsub.s32 %v3832, %v3834
        %v3836 = vrot.slane %v3808, %v3835
        %v3837 = vcombine.high %v3815, %v3815
        %v3838 = vcombine.high %v3822, %v3822
        %v3839 = vcombine.high %v3829, %v3829
        %v3840 = vcombine.high %v3836, %v3836
        %v3841 = vcombine.high %v3237, %v3237
        %v3843 = vunpack.c.l.s4 1966171168
        %v3844 = vunpack.c.0.s8 %v3843
        %v3845 = vlaneseq
        %v3846 = vshrl.u32 %v3845, 7
        %v3847 = vsub.s32 %v3844, %v3846
        %v3848 = vrot.slane %v3237, %v3847
        %v3850 = vunpack.c.l.s4 1966171168
        %v3851 = vunpack.c.0.s8 %v3850
        %v3852 = vlaneseq
        %v3853 = vshrl.u32 %v3852, 7
        %v3854 = vsub.s32 %v3851, %v3853
        %v3855 = vrot.slane %v3841, %v3854
        %v3856 = vcombine.high %v3848, %v3848
        %v3857 = vcombine.high %v3855, %v3855
        %v3859 = vunpack.c.l.s4 1966171168
        %v3860 = vunpack.c.0.s8 %v3859
        %v3861 = vlaneseq
        %v3862 = vshrl.u32 %v3861, 7
        %v3863 = vsub.s32 %v3860, %v3862
        %v3864 = vrot.slane %v3848, %v3863
        %v3866 = vunpack.c.l.s4 1966171168
        %v3867 = vunpack.c.0.s8 %v3866
        %v3868 = vlaneseq
        %v3869 = vshrl.u32 %v3868, 7
        %v3870 = vsub.s32 %v3867, %v3869
        %v3871 = vrot.slane %v3855, %v3870
        %v3873 = vunpack.c.l.s4 1966171168
        %v3874 = vunpack.c.0.s8 %v3873
        %v3875 = vlaneseq
        %v3876 = vshrl.u32 %v3875, 7
        %v3877 = vsub.s32 %v3874, %v3876
        %v3878 = vrot.slane %v3856, %v3877
        %v3880 = vunpack.c.l.s4 1966171168
        %v3881 = vunpack.c.0.s8 %v3880
        %v3882 = vlaneseq
        %v3883 = vshrl.u32 %v3882, 7
        %v3884 = vsub.s32 %v3881, %v3883
        %v3885 = vrot.slane %v3857, %v3884
        %v3886 = vcombine.high %v3864, %v3864
        %v3887 = vcombine.high %v3871, %v3871
        %v3888 = vcombine.high %v3878, %v3878
        %v3889 = vcombine.high %v3885, %v3885
        %v3890 = vcombine.high %v3238, %v3238
        %v3892 = vunpack.c.l.s4 1966171168
        %v3893 = vunpack.c.0.s8 %v3892
        %v3894 = vlaneseq
        %v3895 = vshrl.u32 %v3894, 7
        %v3896 = vsub.s32 %v3893, %v3895
        %v3897 = vrot.slane %v3238, %v3896
        %v3899 = vunpack.c.l.s4 1966171168
        %v3900 = vunpack.c.0.s8 %v3899
        %v3901 = vlaneseq
        %v3902 = vshrl.u32 %v3901, 7
        %v3903 = vsub.s32 %v3900, %v3902
        %v3904 = vrot.slane %v3890, %v3903
        %v3905 = vcombine.high %v3897, %v3897
        %v3906 = vcombine.high %v3904, %v3904
        %v3908 = vunpack.c.l.s4 1966171168
        %v3909 = vunpack.c.0.s8 %v3908
        %v3910 = vlaneseq
        %v3911 = vshrl.u32 %v3910, 7
        %v3912 = vsub.s32 %v3909, %v3911
        %v3913 = vrot.slane %v3897, %v3912
        %v3915 = vunpack.c.l.s4 1966171168
        %v3916 = vunpack.c.0.s8 %v3915
        %v3917 = vlaneseq
        %v3918 = vshrl.u32 %v3917, 7
        %v3919 = vsub.s32 %v3916, %v3918
        %v3920 = vrot.slane %v3904, %v3919
        %v3922 = vunpack.c.l.s4 1966171168
        %v3923 = vunpack.c.0.s8 %v3922
        %v3924 = vlaneseq
        %v3925 = vshrl.u32 %v3924, 7
        %v3926 = vsub.s32 %v3923, %v3925
        %v3927 = vrot.slane %v3905, %v3926
        %v3929 = vunpack.c.l.s4 1966171168
        %v3930 = vunpack.c.0.s8 %v3929
        %v3931 = vlaneseq
        %v3932 = vshrl.u32 %v3931, 7
        %v3933 = vsub.s32 %v3930, %v3932
        %v3934 = vrot.slane %v3906, %v3933
        %v3935 = vcombine.high %v3913, %v3913
        %v3936 = vcombine.high %v3920, %v3920
        %v3937 = vcombine.high %v3927, %v3927
        %v3938 = vcombine.high %v3934, %v3934
        %v3939 = vcombine.low %v3276, %v3290
        %v3940 = vcombine.low %v3298, %v3300
        %v3941 = vcombine.low %v3283, %v3297
        %v3943 = vunpack.c.l.s4 1966171168
        %v3944 = vunpack.c.0.s8 %v3943
        %v3945 = vlaneseq
        %v3946 = vshrl.u32 %v3945, 7
        %v3947 = vsub.s32 %v3944, %v3946
        %v3948 = vrot.slane %v3939, %v3947
        %v3950 = vunpack.c.l.s4 1966171168
        %v3951 = vunpack.c.0.s8 %v3950
        %v3952 = vlaneseq
        %v3953 = vshrl.u32 %v3952, 7
        %v3954 = vsub.s32 %v3951, %v3953
        %v3955 = vrot.slane %v3940, %v3954
        %v3957 = vunpack.c.l.s4 1966171168
        %v3958 = vunpack.c.0.s8 %v3957
        %v3959 = vlaneseq
        %v3960 = vshrl.u32 %v3959, 7
        %v3961 = vsub.s32 %v3958, %v3960
        %v3962 = vrot.slane %v3941, %v3961
        %v3964 = vunpack.c.l.s4 1966171168
        %v3965 = vunpack.c.0.s8 %v3964
        %v3966 = vlaneseq
        %v3967 = vshrl.u32 %v3966, 7
        %v3968 = vsub.s32 %v3965, %v3967
        %v3969 = vrot.slane %v3299, %v3968
        %v3970 = vcombine.low %v3948, %v3955
        %v3971 = vcombine.low %v3962, %v3969
        %v3973 = vunpack.c.l.s4 1966171168
        %v3974 = vunpack.c.0.s8 %v3973
        %v3975 = vlaneseq
        %v3976 = vshrl.u32 %v3975, 7
        %v3977 = vsub.s32 %v3974, %v3976
        %v3978 = vrot.slane %v3970, %v3977
        %v3980 = vunpack.c.l.s4 1966171168
        %v3981 = vunpack.c.0.s8 %v3980
        %v3982 = vlaneseq
        %v3983 = vshrl.u32 %v3982, 7
        %v3984 = vsub.s32 %v3981, %v3983
        %v3985 = vrot.slane %v3971, %v3984
        %v3986 = vcombine.low %v3978, %v3985
        %v3987 = vcombine.low %v3301, %v3325
        %v3988 = vcombine.low %v3339, %v3347
        %v3989 = vcombine.low %v3349, %v3332
        %v3991 = vunpack.c.l.s4 1966171168
        %v3992 = vunpack.c.0.s8 %v3991
        %v3993 = vlaneseq
        %v3994 = vshrl.u32 %v3993, 7
        %v3995 = vsub.s32 %v3992, %v3994
        %v3996 = vrot.slane %v3987, %v3995
        %v3998 = vunpack.c.l.s4 1966171168
        %v3999 = vunpack.c.0.s8 %v3998
        %v4000 = vlaneseq
        %v4001 = vshrl.u32 %v4000, 7
        %v4002 = vsub.s32 %v3999, %v4001
        %v4003 = vrot.slane %v3988, %v4002
        %v4005 = vunpack.c.l.s4 1966171168
        %v4006 = vunpack.c.0.s8 %v4005
        %v4007 = vlaneseq
        %v4008 = vshrl.u32 %v4007, 7
        %v4009 = vsub.s32 %v4006, %v4008
        %v4010 = vrot.slane %v3989, %v4009
        %v4012 = vunpack.c.l.s4 1966171168
        %v4013 = vunpack.c.0.s8 %v4012
        %v4014 = vlaneseq
        %v4015 = vshrl.u32 %v4014, 7
        %v4016 = vsub.s32 %v4013, %v4015
        %v4017 = vrot.slane %v3346, %v4016
        %v4018 = vcombine.low %v3996, %v4003
        %v4019 = vcombine.low %v4010, %v4017
        %v4021 = vunpack.c.l.s4 1966171168
        %v4022 = vunpack.c.0.s8 %v4021
        %v4023 = vlaneseq
        %v4024 = vshrl.u32 %v4023, 7
        %v4025 = vsub.s32 %v4022, %v4024
        %v4026 = vrot.slane %v4018, %v4025
        %v4028 = vunpack.c.l.s4 1966171168
        %v4029 = vunpack.c.0.s8 %v4028
        %v4030 = vlaneseq
        %v4031 = vshrl.u32 %v4030, 7
        %v4032 = vsub.s32 %v4029, %v4031
        %v4033 = vrot.slane %v4019, %v4032
        %v4034 = vcombine.low %v4026, %v4033
        %v4035 = vcombine.low %v3348, %v3350
        %v4036 = vcombine.low %v3374, %v3388
        %v4037 = vcombine.low %v3396, %v3398
        %v4039 = vunpack.c.l.s4 1966171168
        %v4040 = vunpack.c.0.s8 %v4039
        %v4041 = vlaneseq
        %v4042 = vshrl.u32 %v4041, 7
        %v4043 = vsub.s32 %v4040, %v4042
        %v4044 = vrot.slane %v4035, %v4043
        %v4046 = vunpack.c.l.s4 1966171168
        %v4047 = vunpack.c.0.s8 %v4046
        %v4048 = vlaneseq
        %v4049 = vshrl.u32 %v4048, 7
        %v4050 = vsub.s32 %v4047, %v4049
        %v4051 = vrot.slane %v4036, %v4050
        %v4053 = vunpack.c.l.s4 1966171168
        %v4054 = vunpack.c.0.s8 %v4053
        %v4055 = vlaneseq
        %v4056 = vshrl.u32 %v4055, 7
        %v4057 = vsub.s32 %v4054, %v4056
        %v4058 = vrot.slane %v4037, %v4057
        %v4060 = vunpack.c.l.s4 1966171168
        %v4061 = vunpack.c.0.s8 %v4060
        %v4062 = vlaneseq
        %v4063 = vshrl.u32 %v4062, 7
        %v4064 = vsub.s32 %v4061, %v4063
        %v4065 = vrot.slane %v3381, %v4064
        %v4066 = vcombine.low %v4044, %v4051
        %v4067 = vcombine.low %v4058, %v4065
        %v4069 = vunpack.c.l.s4 1966171168
        %v4070 = vunpack.c.0.s8 %v4069
        %v4071 = vlaneseq
        %v4072 = vshrl.u32 %v4071, 7
        %v4073 = vsub.s32 %v4070, %v4072
        %v4074 = vrot.slane %v4066, %v4073
        %v4076 = vunpack.c.l.s4 1966171168
        %v4077 = vunpack.c.0.s8 %v4076
        %v4078 = vlaneseq
        %v4079 = vshrl.u32 %v4078, 7
        %v4080 = vsub.s32 %v4077, %v4079
        %v4081 = vrot.slane %v4067, %v4080
        %v4082 = vcombine.low %v4074, %v4081
        %v4083 = vcombine.low %v3395, %v3397
        %v4084 = vcombine.low %v3399, %v3423
        %v4085 = vcombine.low %v3437, %v3445
        %v4087 = vunpack.c.l.s4 1966171168
        %v4088 = vunpack.c.0.s8 %v4087
        %v4089 = vlaneseq
        %v4090 = vshrl.u32 %v4089, 7
        %v4091 = vsub.s32 %v4088, %v4090
        %v4092 = vrot.slane %v4083, %v4091
        %v4094 = vunpack.c.l.s4 1966171168
        %v4095 = vunpack.c.0.s8 %v4094
        %v4096 = vlaneseq
        %v4097 = vshrl.u32 %v4096, 7
        %v4098 = vsub.s32 %v4095, %v4097
        %v4099 = vrot.slane %v4084, %v4098
        %v4101 = vunpack.c.l.s4 1966171168
        %v4102 = vunpack.c.0.s8 %v4101
        %v4103 = vlaneseq
        %v4104 = vshrl.u32 %v4103, 7
        %v4105 = vsub.s32 %v4102, %v4104
        %v4106 = vrot.slane %v4085, %v4105
        %v4108 = vunpack.c.l.s4 1966171168
        %v4109 = vunpack.c.0.s8 %v4108
        %v4110 = vlaneseq
        %v4111 = vshrl.u32 %v4110, 7
        %v4112 = vsub.s32 %v4109, %v4111
        %v4113 = vrot.slane %v3447, %v4112
        %v4114 = vcombine.low %v4092, %v4099
        %v4115 = vcombine.low %v4106, %v4113
        %v4117 = vunpack.c.l.s4 1966171168
        %v4118 = vunpack.c.0.s8 %v4117
        %v4119 = vlaneseq
        %v4120 = vshrl.u32 %v4119, 7
        %v4121 = vsub.s32 %v4118, %v4120
        %v4122 = vrot.slane %v4114, %v4121
        %v4124 = vunpack.c.l.s4 1966171168
        %v4125 = vunpack.c.0.s8 %v4124
        %v4126 = vlaneseq
        %v4127 = vshrl.u32 %v4126, 7
        %v4128 = vsub.s32 %v4125, %v4127
        %v4129 = vrot.slane %v4115, %v4128
        %v4130 = vcombine.low %v4122, %v4129
        %v4131 = vcombine.low %v3430, %v3444
        %v4132 = vcombine.low %v3446, %v3448
        %v4133 = vcombine.low %v3472, %v3486
        %v4135 = vunpack.c.l.s4 1966171168
        %v4136 = vunpack.c.0.s8 %v4135
        %v4137 = vlaneseq
        %v4138 = vshrl.u32 %v4137, 7
        %v4139 = vsub.s32 %v4136, %v4138
        %v4140 = vrot.slane %v4131, %v4139
        %v4142 = vunpack.c.l.s4 1966171168
        %v4143 = vunpack.c.0.s8 %v4142
        %v4144 = vlaneseq
        %v4145 = vshrl.u32 %v4144, 7
        %v4146 = vsub.s32 %v4143, %v4145
        %v4147 = vrot.slane %v4132, %v4146
        %v4149 = vunpack.c.l.s4 1966171168
        %v4150 = vunpack.c.0.s8 %v4149
        %v4151 = vlaneseq
        %v4152 = vshrl.u32 %v4151, 7
        %v4153 = vsub.s32 %v4150, %v4152
        %v4154 = vrot.slane %v4133, %v4153
        %v4156 = vunpack.c.l.s4 1966171168
        %v4157 = vunpack.c.0.s8 %v4156
        %v4158 = vlaneseq
        %v4159 = vshrl.u32 %v4158, 7
        %v4160 = vsub.s32 %v4157, %v4159
        %v4161 = vrot.slane %v3494, %v4160
        %v4162 = vcombine.low %v4140, %v4147
        %v4163 = vcombine.low %v4154, %v4161
        %v4165 = vunpack.c.l.s4 1966171168
        %v4166 = vunpack.c.0.s8 %v4165
        %v4167 = vlaneseq
        %v4168 = vshrl.u32 %v4167, 7
        %v4169 = vsub.s32 %v4166, %v4168
        %v4170 = vrot.slane %v4162, %v4169
        %v4172 = vunpack.c.l.s4 1966171168
        %v4173 = vunpack.c.0.s8 %v4172
        %v4174 = vlaneseq
        %v4175 = vshrl.u32 %v4174, 7
        %v4176 = vsub.s32 %v4173, %v4175
        %v4177 = vrot.slane %v4163, %v4176
        %v4178 = vcombine.low %v4170, %v4177
        %v4179 = vcombine.low %v3496, %v3479
        %v4180 = vcombine.low %v3493, %v3495
        %v4181 = vcombine.low %v3497, %v3521
        %v4183 = vunpack.c.l.s4 1966171168
        %v4184 = vunpack.c.0.s8 %v4183
        %v4185 = vlaneseq
        %v4186 = vshrl.u32 %v4185, 7
        %v4187 = vsub.s32 %v4184, %v4186
        %v4188 = vrot.slane %v4179, %v4187
        %v4190 = vunpack.c.l.s4 1966171168
        %v4191 = vunpack.c.0.s8 %v4190
        %v4192 = vlaneseq
        %v4193 = vshrl.u32 %v4192, 7
        %v4194 = vsub.s32 %v4191, %v4193
        %v4195 = vrot.slane %v4180, %v4194
        %v4197 = vunpack.c.l.s4 1966171168
        %v4198 = vunpack.c.0.s8 %v4197
        %v4199 = vlaneseq
        %v4200 = vshrl.u32 %v4199, 7
        %v4201 = vsub.s32 %v4198, %v4200
        %v4202 = vrot.slane %v4181, %v4201
        %v4204 = vunpack.c.l.s4 1966171168
        %v4205 = vunpack.c.0.s8 %v4204
        %v4206 = vlaneseq
        %v4207 = vshrl.u32 %v4206, 7
        %v4208 = vsub.s32 %v4205, %v4207
        %v4209 = vrot.slane %v3535, %v4208
        %v4210 = vcombine.low %v4188, %v4195
        %v4211 = vcombine.low %v4202, %v4209
        %v4213 = vunpack.c.l.s4 1966171168
        %v4214 = vunpack.c.0.s8 %v4213
        %v4215 = vlaneseq
        %v4216 = vshrl.u32 %v4215, 7
        %v4217 = vsub.s32 %v4214, %v4216
        %v4218 = vrot.slane %v4210, %v4217
        %v4220 = vunpack.c.l.s4 1966171168
        %v4221 = vunpack.c.0.s8 %v4220
        %v4222 = vlaneseq
        %v4223 = vshrl.u32 %v4222, 7
        %v4224 = vsub.s32 %v4221, %v4223
        %v4225 = vrot.slane %v4211, %v4224
        %v4226 = vcombine.low %v4218, %v4225
        %v4227 = vcombine.low %v3543, %v3545
        %v4228 = vcombine.low %v3528, %v3542
        %v4229 = vcombine.low %v3544, %v3546
        %v4231 = vunpack.c.l.s4 1966171168
        %v4232 = vunpack.c.0.s8 %v4231
        %v4233 = vlaneseq
        %v4234 = vshrl.u32 %v4233, 7
        %v4235 = vsub.s32 %v4232, %v4234
        %v4236 = vrot.slane %v4227, %v4235
        %v4238 = vunpack.c.l.s4 1966171168
        %v4239 = vunpack.c.0.s8 %v4238
        %v4240 = vlaneseq
        %v4241 = vshrl.u32 %v4240, 7
        %v4242 = vsub.s32 %v4239, %v4241
        %v4243 = vrot.slane %v4228, %v4242
        %v4245 = vunpack.c.l.s4 1966171168
        %v4246 = vunpack.c.0.s8 %v4245
        %v4247 = vlaneseq
        %v4248 = vshrl.u32 %v4247, 7
        %v4249 = vsub.s32 %v4246, %v4248
        %v4250 = vrot.slane %v4229, %v4249
        %v4252 = vunpack.c.l.s4 1966171168
        %v4253 = vunpack.c.0.s8 %v4252
        %v4254 = vlaneseq
        %v4255 = vshrl.u32 %v4254, 7
        %v4256 = vsub.s32 %v4253, %v4255
        %v4257 = vrot.slane %v3570, %v4256
        %v4258 = vcombine.low %v4236, %v4243
        %v4259 = vcombine.low %v4250, %v4257
        %v4261 = vunpack.c.l.s4 1966171168
        %v4262 = vunpack.c.0.s8 %v4261
        %v4263 = vlaneseq
        %v4264 = vshrl.u32 %v4263, 7
        %v4265 = vsub.s32 %v4262, %v4264
        %v4266 = vrot.slane %v4258, %v4265
        %v4268 = vunpack.c.l.s4 1966171168
        %v4269 = vunpack.c.0.s8 %v4268
        %v4270 = vlaneseq
        %v4271 = vshrl.u32 %v4270, 7
        %v4272 = vsub.s32 %v4269, %v4271
        %v4273 = vrot.slane %v4259, %v4272
        %v4274 = vcombine.low %v4266, %v4273
        %v4275 = vcombine.low %v3584, %v3592
        %v4276 = vcombine.low %v3594, %v3577
        %v4277 = vcombine.low %v3591, %v3593
        %v4279 = vunpack.c.l.s4 1966171168
        %v4280 = vunpack.c.0.s8 %v4279
        %v4281 = vlaneseq
        %v4282 = vshrl.u32 %v4281, 7
        %v4283 = vsub.s32 %v4280, %v4282
        %v4284 = vrot.slane %v4275, %v4283
        %v4286 = vunpack.c.l.s4 1966171168
        %v4287 = vunpack.c.0.s8 %v4286
        %v4288 = vlaneseq
        %v4289 = vshrl.u32 %v4288, 7
        %v4290 = vsub.s32 %v4287, %v4289
        %v4291 = vrot.slane %v4276, %v4290
        %v4293 = vunpack.c.l.s4 1966171168
        %v4294 = vunpack.c.0.s8 %v4293
        %v4295 = vlaneseq
        %v4296 = vshrl.u32 %v4295, 7
        %v4297 = vsub.s32 %v4294, %v4296
        %v4298 = vrot.slane %v4277, %v4297
        %v4300 = vunpack.c.l.s4 1966171168
        %v4301 = vunpack.c.0.s8 %v4300
        %v4302 = vlaneseq
        %v4303 = vshrl.u32 %v4302, 7
        %v4304 = vsub.s32 %v4301, %v4303
        %v4305 = vrot.slane %v3595, %v4304
        %v4306 = vcombine.low %v4284, %v4291
        %v4307 = vcombine.low %v4298, %v4305
        %v4309 = vunpack.c.l.s4 1966171168
        %v4310 = vunpack.c.0.s8 %v4309
        %v4311 = vlaneseq
        %v4312 = vshrl.u32 %v4311, 7
        %v4313 = vsub.s32 %v4310, %v4312
        %v4314 = vrot.slane %v4306, %v4313
        %v4316 = vunpack.c.l.s4 1966171168
        %v4317 = vunpack.c.0.s8 %v4316
        %v4318 = vlaneseq
        %v4319 = vshrl.u32 %v4318, 7
        %v4320 = vsub.s32 %v4317, %v4319
        %v4321 = vrot.slane %v4307, %v4320
        %v4322 = vcombine.low %v4314, %v4321
        %v4323 = vcombine.low %v3619, %v3633
        %v4324 = vcombine.low %v3641, %v3643
        %v4325 = vcombine.low %v3626, %v3640
        %v4327 = vunpack.c.l.s4 1966171168
        %v4328 = vunpack.c.0.s8 %v4327
        %v4329 = vlaneseq
        %v4330 = vshrl.u32 %v4329, 7
        %v4331 = vsub.s32 %v4328, %v4330
        %v4332 = vrot.slane %v4323, %v4331
        %v4334 = vunpack.c.l.s4 1966171168
        %v4335 = vunpack.c.0.s8 %v4334
        %v4336 = vlaneseq
        %v4337 = vshrl.u32 %v4336, 7
        %v4338 = vsub.s32 %v4335, %v4337
        %v4339 = vrot.slane %v4324, %v4338
        %v4341 = vunpack.c.l.s4 1966171168
        %v4342 = vunpack.c.0.s8 %v4341
        %v4343 = vlaneseq
        %v4344 = vshrl.u32 %v4343, 7
        %v4345 = vsub.s32 %v4342, %v4344
        %v4346 = vrot.slane %v4325, %v4345
        %v4348 = vunpack.c.l.s4 1966171168
        %v4349 = vunpack.c.0.s8 %v4348
        %v4350 = vlaneseq
        %v4351 = vshrl.u32 %v4350, 7
        %v4352 = vsub.s32 %v4349, %v4351
        %v4353 = vrot.slane %v3642, %v4352
        %v4354 = vcombine.low %v4332, %v4339
        %v4355 = vcombine.low %v4346, %v4353
        %v4357 = vunpack.c.l.s4 1966171168
        %v4358 = vunpack.c.0.s8 %v4357
        %v4359 = vlaneseq
        %v4360 = vshrl.u32 %v4359, 7
        %v4361 = vsub.s32 %v4358, %v4360
        %v4362 = vrot.slane %v4354, %v4361
        %v4364 = vunpack.c.l.s4 1966171168
        %v4365 = vunpack.c.0.s8 %v4364
        %v4366 = vlaneseq
        %v4367 = vshrl.u32 %v4366, 7
        %v4368 = vsub.s32 %v4365, %v4367
        %v4369 = vrot.slane %v4355, %v4368
        %v4370 = vcombine.low %v4362, %v4369
        %v4371 = vcombine.low %v3644, %v3668
        %v4372 = vcombine.low %v3682, %v3690
        %v4373 = vcombine.low %v3692, %v3675
        %v4375 = vunpack.c.l.s4 1966171168
        %v4376 = vunpack.c.0.s8 %v4375
        %v4377 = vlaneseq
        %v4378 = vshrl.u32 %v4377, 7
        %v4379 = vsub.s32 %v4376, %v4378
        %v4380 = vrot.slane %v4371, %v4379
        %v4382 = vunpack.c.l.s4 1966171168
        %v4383 = vunpack.c.0.s8 %v4382
        %v4384 = vlaneseq
        %v4385 = vshrl.u32 %v4384, 7
        %v4386 = vsub.s32 %v4383, %v4385
        %v4387 = vrot.slane %v4372, %v4386
        %v4389 = vunpack.c.l.s4 1966171168
        %v4390 = vunpack.c.0.s8 %v4389
        %v4391 = vlaneseq
        %v4392 = vshrl.u32 %v4391, 7
        %v4393 = vsub.s32 %v4390, %v4392
        %v4394 = vrot.slane %v4373, %v4393
        %v4396 = vunpack.c.l.s4 1966171168
        %v4397 = vunpack.c.0.s8 %v4396
        %v4398 = vlaneseq
        %v4399 = vshrl.u32 %v4398, 7
        %v4400 = vsub.s32 %v4397, %v4399
        %v4401 = vrot.slane %v3689, %v4400
        %v4402 = vcombine.low %v4380, %v4387
        %v4403 = vcombine.low %v4394, %v4401
        %v4405 = vunpack.c.l.s4 1966171168
        %v4406 = vunpack.c.0.s8 %v4405
        %v4407 = vlaneseq
        %v4408 = vshrl.u32 %v4407, 7
        %v4409 = vsub.s32 %v4406, %v4408
        %v4410 = vrot.slane %v4402, %v4409
        %v4412 = vunpack.c.l.s4 1966171168
        %v4413 = vunpack.c.0.s8 %v4412
        %v4414 = vlaneseq
        %v4415 = vshrl.u32 %v4414, 7
        %v4416 = vsub.s32 %v4413, %v4415
        %v4417 = vrot.slane %v4403, %v4416
        %v4418 = vcombine.low %v4410, %v4417
        %v4419 = vcombine.low %v3691, %v3693
        %v4420 = vcombine.low %v3717, %v3731
        %v4421 = vcombine.low %v3739, %v3741
        %v4423 = vunpack.c.l.s4 1966171168
        %v4424 = vunpack.c.0.s8 %v4423
        %v4425 = vlaneseq
        %v4426 = vshrl.u32 %v4425, 7
        %v4427 = vsub.s32 %v4424, %v4426
        %v4428 = vrot.slane %v4419, %v4427
        %v4430 = vunpack.c.l.s4 1966171168
        %v4431 = vunpack.c.0.s8 %v4430
        %v4432 = vlaneseq
        %v4433 = vshrl.u32 %v4432, 7
        %v4434 = vsub.s32 %v4431, %v4433
        %v4435 = vrot.slane %v4420, %v4434
        %v4437 = vunpack.c.l.s4 1966171168
        %v4438 = vunpack.c.0.s8 %v4437
        %v4439 = vlaneseq
        %v4440 = vshrl.u32 %v4439, 7
        %v4441 = vsub.s32 %v4438, %v4440
        %v4442 = vrot.slane %v4421, %v4441
        %v4444 = vunpack.c.l.s4 1966171168
        %v4445 = vunpack.c.0.s8 %v4444
        %v4446 = vlaneseq
        %v4447 = vshrl.u32 %v4446, 7
        %v4448 = vsub.s32 %v4445, %v4447
        %v4449 = vrot.slane %v3724, %v4448
        %v4450 = vcombine.low %v4428, %v4435
        %v4451 = vcombine.low %v4442, %v4449
        %v4453 = vunpack.c.l.s4 1966171168
        %v4454 = vunpack.c.0.s8 %v4453
        %v4455 = vlaneseq
        %v4456 = vshrl.u32 %v4455, 7
        %v4457 = vsub.s32 %v4454, %v4456
        %v4458 = vrot.slane %v4450, %v4457
        %v4460 = vunpack.c.l.s4 1966171168
        %v4461 = vunpack.c.0.s8 %v4460
        %v4462 = vlaneseq
        %v4463 = vshrl.u32 %v4462, 7
        %v4464 = vsub.s32 %v4461, %v4463
        %v4465 = vrot.slane %v4451, %v4464
        %v4466 = vcombine.low %v4458, %v4465
        %v4467 = vcombine.low %v3738, %v3740
        %v4468 = vcombine.low %v3742, %v3766
        %v4469 = vcombine.low %v3780, %v3788
        %v4471 = vunpack.c.l.s4 1966171168
        %v4472 = vunpack.c.0.s8 %v4471
        %v4473 = vlaneseq
        %v4474 = vshrl.u32 %v4473, 7
        %v4475 = vsub.s32 %v4472, %v4474
        %v4476 = vrot.slane %v4467, %v4475
        %v4478 = vunpack.c.l.s4 1966171168
        %v4479 = vunpack.c.0.s8 %v4478
        %v4480 = vlaneseq
        %v4481 = vshrl.u32 %v4480, 7
        %v4482 = vsub.s32 %v4479, %v4481
        %v4483 = vrot.slane %v4468, %v4482
        %v4485 = vunpack.c.l.s4 1966171168
        %v4486 = vunpack.c.0.s8 %v4485
        %v4487 = vlaneseq
        %v4488 = vshrl.u32 %v4487, 7
        %v4489 = vsub.s32 %v4486, %v4488
        %v4490 = vrot.slane %v4469, %v4489
        %v4492 = vunpack.c.l.s4 1966171168
        %v4493 = vunpack.c.0.s8 %v4492
        %v4494 = vlaneseq
        %v4495 = vshrl.u32 %v4494, 7
        %v4496 = vsub.s32 %v4493, %v4495
        %v4497 = vrot.slane %v3790, %v4496
        %v4498 = vcombine.low %v4476, %v4483
        %v4499 = vcombine.low %v4490, %v4497
        %v4501 = vunpack.c.l.s4 1966171168
        %v4502 = vunpack.c.0.s8 %v4501
        %v4503 = vlaneseq
        %v4504 = vshrl.u32 %v4503, 7
        %v4505 = vsub.s32 %v4502, %v4504
        %v4506 = vrot.slane %v4498, %v4505
        %v4508 = vunpack.c.l.s4 1966171168
        %v4509 = vunpack.c.0.s8 %v4508
        %v4510 = vlaneseq
        %v4511 = vshrl.u32 %v4510, 7
        %v4512 = vsub.s32 %v4509, %v4511
        %v4513 = vrot.slane %v4499, %v4512
        %v4514 = vcombine.low %v4506, %v4513
        %v4515 = vcombine.low %v3773, %v3787
        %v4516 = vcombine.low %v3789, %v3791
        %v4517 = vcombine.low %v3815, %v3829
        %v4519 = vunpack.c.l.s4 1966171168
        %v4520 = vunpack.c.0.s8 %v4519
        %v4521 = vlaneseq
        %v4522 = vshrl.u32 %v4521, 7
        %v4523 = vsub.s32 %v4520, %v4522
        %v4524 = vrot.slane %v4515, %v4523
        %v4526 = vunpack.c.l.s4 1966171168
        %v4527 = vunpack.c.0.s8 %v4526
        %v4528 = vlaneseq
        %v4529 = vshrl.u32 %v4528, 7
        %v4530 = vsub.s32 %v4527, %v4529
        %v4531 = vrot.slane %v4516, %v4530
        %v4533 = vunpack.c.l.s4 1966171168
        %v4534 = vunpack.c.0.s8 %v4533
        %v4535 = vlaneseq
        %v4536 = vshrl.u32 %v4535, 7
        %v4537 = vsub.s32 %v4534, %v4536
        %v4538 = vrot.slane %v4517, %v4537
        %v4540 = vunpack.c.l.s4 1966171168
        %v4541 = vunpack.c.0.s8 %v4540
        %v4542 = vlaneseq
        %v4543 = vshrl.u32 %v4542, 7
        %v4544 = vsub.s32 %v4541, %v4543
        %v4545 = vrot.slane %v3837, %v4544
        %v4546 = vcombine.low %v4524, %v4531
        %v4547 = vcombine.low %v4538, %v4545
        %v4549 = vunpack.c.l.s4 1966171168
        %v4550 = vunpack.c.0.s8 %v4549
        %v4551 = vlaneseq
        %v4552 = vshrl.u32 %v4551, 7
        %v4553 = vsub.s32 %v4550, %v4552
        %v4554 = vrot.slane %v4546, %v4553
        %v4556 = vunpack.c.l.s4 1966171168
        %v4557 = vunpack.c.0.s8 %v4556
        %v4558 = vlaneseq
        %v4559 = vshrl.u32 %v4558, 7
        %v4560 = vsub.s32 %v4557, %v4559
        %v4561 = vrot.slane %v4547, %v4560
        %v4562 = vcombine.low %v4554, %v4561
        %v4563 = vcombine.low %v3839, %v3822
        %v4564 = vcombine.low %v3836, %v3838
        %v4565 = vcombine.low %v3840, %v3864
        %v4567 = vunpack.c.l.s4 1966171168
        %v4568 = vunpack.c.0.s8 %v4567
        %v4569 = vlaneseq
        %v4570 = vshrl.u32 %v4569, 7
        %v4571 = vsub.s32 %v4568, %v4570
        %v4572 = vrot.slane %v4563, %v4571
        %v4574 = vunpack.c.l.s4 1966171168
        %v4575 = vunpack.c.0.s8 %v4574
        %v4576 = vlaneseq
        %v4577 = vshrl.u32 %v4576, 7
        %v4578 = vsub.s32 %v4575, %v4577
        %v4579 = vrot.slane %v4564, %v4578
        %v4581 = vunpack.c.l.s4 1966171168
        %v4582 = vunpack.c.0.s8 %v4581
        %v4583 = vlaneseq
        %v4584 = vshrl.u32 %v4583, 7
        %v4585 = vsub.s32 %v4582, %v4584
        %v4586 = vrot.slane %v4565, %v4585
        %v4588 = vunpack.c.l.s4 1966171168
        %v4589 = vunpack.c.0.s8 %v4588
        %v4590 = vlaneseq
        %v4591 = vshrl.u32 %v4590, 7
        %v4592 = vsub.s32 %v4589, %v4591
        %v4593 = vrot.slane %v3878, %v4592
        %v4594 = vcombine.low %v4572, %v4579
        %v4595 = vcombine.low %v4586, %v4593
        %v4597 = vunpack.c.l.s4 1966171168
        %v4598 = vunpack.c.0.s8 %v4597
        %v4599 = vlaneseq
        %v4600 = vshrl.u32 %v4599, 7
        %v4601 = vsub.s32 %v4598, %v4600
        %v4602 = vrot.slane %v4594, %v4601
        %v4604 = vunpack.c.l.s4 1966171168
        %v4605 = vunpack.c.0.s8 %v4604
        %v4606 = vlaneseq
        %v4607 = vshrl.u32 %v4606, 7
        %v4608 = vsub.s32 %v4605, %v4607
        %v4609 = vrot.slane %v4595, %v4608
        %v4610 = vcombine.low %v4602, %v4609
        %v4611 = vcombine.low %v3886, %v3888
        %v4612 = vcombine.low %v3871, %v3885
        %v4613 = vcombine.low %v3887, %v3889
        %v4615 = vunpack.c.l.s4 1966171168
        %v4616 = vunpack.c.0.s8 %v4615
        %v4617 = vlaneseq
        %v4618 = vshrl.u32 %v4617, 7
        %v4619 = vsub.s32 %v4616, %v4618
        %v4620 = vrot.slane %v4611, %v4619
        %v4622 = vunpack.c.l.s4 1966171168
        %v4623 = vunpack.c.0.s8 %v4622
        %v4624 = vlaneseq
        %v4625 = vshrl.u32 %v4624, 7
        %v4626 = vsub.s32 %v4623, %v4625
        %v4627 = vrot.slane %v4612, %v4626
        %v4629 = vunpack.c.l.s4 1966171168
        %v4630 = vunpack.c.0.s8 %v4629
        %v4631 = vlaneseq
        %v4632 = vshrl.u32 %v4631, 7
        %v4633 = vsub.s32 %v4630, %v4632
        %v4634 = vrot.slane %v4613, %v4633
        %v4636 = vunpack.c.l.s4 1966171168
        %v4637 = vunpack.c.0.s8 %v4636
        %v4638 = vlaneseq
        %v4639 = vshrl.u32 %v4638, 7
        %v4640 = vsub.s32 %v4637, %v4639
        %v4641 = vrot.slane %v3913, %v4640
        %v4642 = vcombine.low %v4620, %v4627
        %v4643 = vcombine.low %v4634, %v4641
        %v4645 = vunpack.c.l.s4 1966171168
        %v4646 = vunpack.c.0.s8 %v4645
        %v4647 = vlaneseq
        %v4648 = vshrl.u32 %v4647, 7
        %v4649 = vsub.s32 %v4646, %v4648
        %v4650 = vrot.slane %v4642, %v4649
        %v4652 = vunpack.c.l.s4 1966171168
        %v4653 = vunpack.c.0.s8 %v4652
        %v4654 = vlaneseq
        %v4655 = vshrl.u32 %v4654, 7
        %v4656 = vsub.s32 %v4653, %v4655
        %v4657 = vrot.slane %v4643, %v4656
        %v4658 = vcombine.low %v4650, %v4657
        %v4659 = vcombine.low %v3927, %v3935
        %v4660 = vcombine.low %v3937, %v3920
        %v4661 = vcombine.low %v3934, %v3936
        %v4663 = vunpack.c.l.s4 1966171168
        %v4664 = vunpack.c.0.s8 %v4663
        %v4665 = vlaneseq
        %v4666 = vshrl.u32 %v4665, 7
        %v4667 = vsub.s32 %v4664, %v4666
        %v4668 = vrot.slane %v4659, %v4667
        %v4670 = vunpack.c.l.s4 1966171168
        %v4671 = vunpack.c.0.s8 %v4670
        %v4672 = vlaneseq
        %v4673 = vshrl.u32 %v4672, 7
        %v4674 = vsub.s32 %v4671, %v4673
        %v4675 = vrot.slane %v4660, %v4674
        %v4677 = vunpack.c.l.s4 1966171168
        %v4678 = vunpack.c.0.s8 %v4677
        %v4679 = vlaneseq
        %v4680 = vshrl.u32 %v4679, 7
        %v4681 = vsub.s32 %v4678, %v4680
        %v4682 = vrot.slane %v4661, %v4681
        %v4684 = vunpack.c.l.s4 1966171168
        %v4685 = vunpack.c.0.s8 %v4684
        %v4686 = vlaneseq
        %v4687 = vshrl.u32 %v4686, 7
        %v4688 = vsub.s32 %v4685, %v4687
        %v4689 = vrot.slane %v3938, %v4688
        %v4690 = vcombine.low %v4668, %v4675
        %v4691 = vcombine.low %v4682, %v4689
        %v4693 = vunpack.c.l.s4 1966171168
        %v4694 = vunpack.c.0.s8 %v4693
        %v4695 = vlaneseq
        %v4696 = vshrl.u32 %v4695, 7
        %v4697 = vsub.s32 %v4694, %v4696
        %v4698 = vrot.slane %v4690, %v4697
        %v4700 = vunpack.c.l.s4 1966171168
        %v4701 = vunpack.c.0.s8 %v4700
        %v4702 = vlaneseq
        %v4703 = vshrl.u32 %v4702, 7
        %v4704 = vsub.s32 %v4701, %v4703
        %v4705 = vrot.slane %v4691, %v4704
        %v4706 = vcombine.low %v4698, %v4705
        %v4708 = vshrl.u32 %v3986, 16
        %v4710 = vshll.u32 %v3986, 16
        %v4712 = vrot.slane %v4710, 1
        %v4713 = vor.u32 %v4708, %v4712
        %v4715 = vshrl.u32 %v4034, 16
        %v4717 = vshll.u32 %v4034, 16
        %v4719 = vrot.slane %v4717, 1
        %v4720 = vor.u32 %v4715, %v4719
        %v4722 = vshrl.u32 %v4082, 16
        %v4724 = vshll.u32 %v4082, 16
        %v4726 = vrot.slane %v4724, 1
        %v4727 = vor.u32 %v4722, %v4726
        %v4729 = vshrl.u32 %v4130, 16
        %v4731 = vshll.u32 %v4130, 16
        %v4733 = vrot.slane %v4731, 1
        %v4734 = vor.u32 %v4729, %v4733
        %v4736 = vshrl.u32 %v4178, 16
        %v4738 = vshll.u32 %v4178, 16
        %v4740 = vrot.slane %v4738, 1
        %v4741 = vor.u32 %v4736, %v4740
        %v4743 = vshrl.u32 %v4226, 16
        %v4745 = vshll.u32 %v4226, 16
        %v4747 = vrot.slane %v4745, 1
        %v4748 = vor.u32 %v4743, %v4747
        %v4750 = vshrl.u32 %v4274, 16
        %v4752 = vshll.u32 %v4274, 16
        %v4754 = vrot.slane %v4752, 1
        %v4755 = vor.u32 %v4750, %v4754
        %v4757 = vshrl.u32 %v4322, 16
        %v4759 = vshll.u32 %v4322, 16
        %v4761 = vrot.slane %v4759, 1
        %v4762 = vor.u32 %v4757, %v4761
        %v4764 = vshrl.u32 %v4370, 16
        %v4766 = vshll.u32 %v4370, 16
        %v4768 = vrot.slane %v4766, 1
        %v4769 = vor.u32 %v4764, %v4768
        %v4771 = vshrl.u32 %v4418, 16
        %v4773 = vshll.u32 %v4418, 16
        %v4775 = vrot.slane %v4773, 1
        %v4776 = vor.u32 %v4771, %v4775
        %v4778 = vshrl.u32 %v4466, 16
        %v4780 = vshll.u32 %v4466, 16
        %v4782 = vrot.slane %v4780, 1
        %v4783 = vor.u32 %v4778, %v4782
        %v4785 = vshrl.u32 %v4514, 16
        %v4787 = vshll.u32 %v4514, 16
        %v4789 = vrot.slane %v4787, 1
        %v4790 = vor.u32 %v4785, %v4789
        %v4792 = vshrl.u32 %v4562, 16
        %v4794 = vshll.u32 %v4562, 16
        %v4796 = vrot.slane %v4794, 1
        %v4797 = vor.u32 %v4792, %v4796
        %v4799 = vshrl.u32 %v4610, 16
        %v4801 = vshll.u32 %v4610, 16
        %v4803 = vrot.slane %v4801, 1
        %v4804 = vor.u32 %v4799, %v4803
        %v4806 = vshrl.u32 %v4658, 16
        %v4808 = vshll.u32 %v4658, 16
        %v4810 = vrot.slane %v4808, 1
        %v4811 = vor.u32 %v4806, %v4810
        %4812 = vrot.lane.b32.xlu0 %v4713, 4
        %v4813 = vpop.permute.xlu0 %4812
        %4814 = vrot.lane.b32.xlu0 %v4720, 4
        %v4815 = vpop.permute.xlu0 %4814
        %4816 = vrot.lane.b32.xlu0 %v4727, 4
        %v4817 = vpop.permute.xlu0 %4816
        %4818 = vrot.lane.b32.xlu0 %v4734, 4
        %v4819 = vpop.permute.xlu0 %4818
        %4820 = vrot.lane.b32.xlu0 %v4741, 4
        %v4821 = vpop.permute.xlu0 %4820
        %4822 = vrot.lane.b32.xlu0 %v4748, 4
        %v4823 = vpop.permute.xlu0 %4822
        %4824 = vrot.lane.b32.xlu0 %v4755, 4
        %v4825 = vpop.permute.xlu0 %4824
        %4826 = vrot.lane.b32.xlu0 %v4762, 4
        %v4827 = vpop.permute.xlu0 %4826
        %4828 = vrot.lane.b32.xlu0 %v4769, 4
        %v4829 = vpop.permute.xlu0 %4828
        %4830 = vrot.lane.b32.xlu0 %v4776, 4
        %v4831 = vpop.permute.xlu0 %4830
        %4832 = vrot.lane.b32.xlu0 %v4783, 4
        %v4833 = vpop.permute.xlu0 %4832
        %4834 = vrot.lane.b32.xlu0 %v4790, 4
        %v4835 = vpop.permute.xlu0 %4834
        %4836 = vrot.lane.b32.xlu0 %v4797, 4
        %v4837 = vpop.permute.xlu0 %4836
        %4838 = vrot.lane.b32.xlu0 %v4804, 4
        %v4839 = vpop.permute.xlu0 %4838
        %4840 = vrot.lane.b32.xlu0 %v4811, 4
        %v4841 = vpop.permute.xlu0 %4840
        %v4842 = vrot.slane %v3986, 1
        %v4843 = vrot.slane %v4034, 1
        %v4844 = vrot.slane %v4082, 1
        %v4845 = vrot.slane %v4130, 1
        %v4846 = vrot.slane %v4178, 1
        %v4847 = vrot.slane %v4226, 1
        %v4848 = vrot.slane %v4274, 1
        %v4849 = vrot.slane %v4322, 1
        %v4850 = vrot.slane %v4370, 1
        %v4851 = vrot.slane %v4418, 1
        %v4852 = vrot.slane %v4466, 1
        %v4853 = vrot.slane %v4514, 1
        %v4854 = vrot.slane %v4562, 1
        %v4855 = vrot.slane %v4610, 1
        %v4856 = vrot.slane %v4658, 1
        %4857 = vrot.lane.b32.xlu0 %v4842, 8
        %v4858 = vpop.permute.xlu0 %4857
        %4859 = vrot.lane.b32.xlu0 %v4843, 8
        %v4860 = vpop.permute.xlu0 %4859
        %4861 = vrot.lane.b32.xlu0 %v4844, 8
        %v4862 = vpop.permute.xlu0 %4861
        %4863 = vrot.lane.b32.xlu0 %v4845, 8
        %v4864 = vpop.permute.xlu0 %4863
        %4865 = vrot.lane.b32.xlu0 %v4846, 8
        %v4866 = vpop.permute.xlu0 %4865
        %4867 = vrot.lane.b32.xlu0 %v4847, 8
        %v4868 = vpop.permute.xlu0 %4867
        %4869 = vrot.lane.b32.xlu0 %v4848, 8
        %v4870 = vpop.permute.xlu0 %4869
        %4871 = vrot.lane.b32.xlu0 %v4849, 8
        %v4872 = vpop.permute.xlu0 %4871
        %4873 = vrot.lane.b32.xlu0 %v4850, 8
        %v4874 = vpop.permute.xlu0 %4873
        %4875 = vrot.lane.b32.xlu0 %v4851, 8
        %v4876 = vpop.permute.xlu0 %4875
        %4877 = vrot.lane.b32.xlu0 %v4852, 8
        %v4878 = vpop.permute.xlu0 %4877
        %4879 = vrot.lane.b32.xlu0 %v4853, 8
        %v4880 = vpop.permute.xlu0 %4879
        %4881 = vrot.lane.b32.xlu0 %v4854, 8
        %v4882 = vpop.permute.xlu0 %4881
        %4883 = vrot.lane.b32.xlu0 %v4855, 8
        %v4884 = vpop.permute.xlu0 %4883
        %4885 = vrot.lane.b32.xlu0 %v4856, 8
        %v4886 = vpop.permute.xlu0 %4885
        %4887 = vrot.lane.b32.xlu0 %v3986, 12
        %v4888 = vpop.permute.xlu0 %4887
        %4889 = vrot.lane.b32.xlu0 %v4034, 12
        %v4890 = vpop.permute.xlu0 %4889
        %4891 = vrot.lane.b32.xlu0 %v4082, 12
        %v4892 = vpop.permute.xlu0 %4891
        %4893 = vrot.lane.b32.xlu0 %v4130, 12
        %v4894 = vpop.permute.xlu0 %4893
        %4895 = vrot.lane.b32.xlu0 %v4178, 12
        %v4896 = vpop.permute.xlu0 %4895
        %4897 = vrot.lane.b32.xlu0 %v4226, 12
        %v4898 = vpop.permute.xlu0 %4897
        %4899 = vrot.lane.b32.xlu0 %v4274, 12
        %v4900 = vpop.permute.xlu0 %4899
        %4901 = vrot.lane.b32.xlu0 %v4322, 12
        %v4902 = vpop.permute.xlu0 %4901
        %4903 = vrot.lane.b32.xlu0 %v4370, 12
        %v4904 = vpop.permute.xlu0 %4903
        %4905 = vrot.lane.b32.xlu0 %v4418, 12
        %v4906 = vpop.permute.xlu0 %4905
        %4907 = vrot.lane.b32.xlu0 %v4466, 12
        %v4908 = vpop.permute.xlu0 %4907
        %4909 = vrot.lane.b32.xlu0 %v4514, 12
        %v4910 = vpop.permute.xlu0 %4909
        %4911 = vrot.lane.b32.xlu0 %v4562, 12
        %v4912 = vpop.permute.xlu0 %4911
        %4913 = vrot.lane.b32.xlu0 %v4610, 12
        %v4914 = vpop.permute.xlu0 %4913
        %4915 = vrot.lane.b32.xlu0 %v4658, 12
        %v4916 = vpop.permute.xlu0 %4915
        %4917 = vrot.lane.b32.xlu0 %v4706, 12
        %v4918 = vpop.permute.xlu0 %4917
        %v4920 = vshrl.u32 %v4706, 16
        %v4922 = vshll.u32 %v4706, 16
        %v4924 = vrot.slane %v4922, 1
        %v4925 = vor.u32 %v4920, %v4924
        %4926 = vrot.lane.b32.xlu0 %v4713, 16
        %v4927 = vpop.permute.xlu0 %4926
        %4928 = vrot.lane.b32.xlu0 %v4720, 16
        %v4929 = vpop.permute.xlu0 %4928
        %4930 = vrot.lane.b32.xlu0 %v4727, 16
        %v4931 = vpop.permute.xlu0 %4930
        %4932 = vrot.lane.b32.xlu0 %v4734, 16
        %v4933 = vpop.permute.xlu0 %4932
        %4934 = vrot.lane.b32.xlu0 %v4741, 16
        %v4935 = vpop.permute.xlu0 %4934
        %4936 = vrot.lane.b32.xlu0 %v4748, 16
        %v4937 = vpop.permute.xlu0 %4936
        %4938 = vrot.lane.b32.xlu0 %v4755, 16
        %v4939 = vpop.permute.xlu0 %4938
        %4940 = vrot.lane.b32.xlu0 %v4762, 16
        %v4941 = vpop.permute.xlu0 %4940
        %4942 = vrot.lane.b32.xlu0 %v4769, 16
        %v4943 = vpop.permute.xlu0 %4942
        %4944 = vrot.lane.b32.xlu0 %v4776, 16
        %v4945 = vpop.permute.xlu0 %4944
        %4946 = vrot.lane.b32.xlu0 %v4783, 16
        %v4947 = vpop.permute.xlu0 %4946
        %4948 = vrot.lane.b32.xlu0 %v4790, 16
        %v4949 = vpop.permute.xlu0 %4948
        %4950 = vrot.lane.b32.xlu0 %v4797, 16
        %v4951 = vpop.permute.xlu0 %4950
        %4952 = vrot.lane.b32.xlu0 %v4804, 16
        %v4953 = vpop.permute.xlu0 %4952
        %4954 = vrot.lane.b32.xlu0 %v4811, 16
        %v4955 = vpop.permute.xlu0 %4954
        %4956 = vrot.lane.b32.xlu0 %v4925, 16
        %v4957 = vpop.permute.xlu0 %4956
        %v4958 = vrot.slane %v4706, 1
        %4959 = vrot.lane.b32.xlu0 %v4842, 20
        %v4960 = vpop.permute.xlu0 %4959
        %4961 = vrot.lane.b32.xlu0 %v4843, 20
        %v4962 = vpop.permute.xlu0 %4961
        %4963 = vrot.lane.b32.xlu0 %v4844, 20
        %v4964 = vpop.permute.xlu0 %4963
        %4965 = vrot.lane.b32.xlu0 %v4845, 20
        %v4966 = vpop.permute.xlu0 %4965
        %4967 = vrot.lane.b32.xlu0 %v4846, 20
        %v4968 = vpop.permute.xlu0 %4967
        %4969 = vrot.lane.b32.xlu0 %v4847, 20
        %v4970 = vpop.permute.xlu0 %4969
        %4971 = vrot.lane.b32.xlu0 %v4848, 20
        %v4972 = vpop.permute.xlu0 %4971
        %4973 = vrot.lane.b32.xlu0 %v4849, 20
        %v4974 = vpop.permute.xlu0 %4973
        %4975 = vrot.lane.b32.xlu0 %v4850, 20
        %v4976 = vpop.permute.xlu0 %4975
        %4977 = vrot.lane.b32.xlu0 %v4851, 20
        %v4978 = vpop.permute.xlu0 %4977
        %4979 = vrot.lane.b32.xlu0 %v4852, 20
        %v4980 = vpop.permute.xlu0 %4979
        %4981 = vrot.lane.b32.xlu0 %v4853, 20
        %v4982 = vpop.permute.xlu0 %4981
        %4983 = vrot.lane.b32.xlu0 %v4854, 20
        %v4984 = vpop.permute.xlu0 %4983
        %4985 = vrot.lane.b32.xlu0 %v4855, 20
        %v4986 = vpop.permute.xlu0 %4985
        %4987 = vrot.lane.b32.xlu0 %v4856, 20
        %v4988 = vpop.permute.xlu0 %4987
        %4989 = vrot.lane.b32.xlu0 %v4958, 20
        %v4990 = vpop.permute.xlu0 %4989
        %4991 = vrot.lane.b32.xlu0 %v4034, 24
        %v4992 = vpop.permute.xlu0 %4991
        %4993 = vrot.lane.b32.xlu0 %v4082, 24
        %v4994 = vpop.permute.xlu0 %4993
        %4995 = vrot.lane.b32.xlu0 %v4130, 24
        %v4996 = vpop.permute.xlu0 %4995
        %4997 = vrot.lane.b32.xlu0 %v4178, 24
        %v4998 = vpop.permute.xlu0 %4997
        %4999 = vrot.lane.b32.xlu0 %v4226, 24
        %v5000 = vpop.permute.xlu0 %4999
        %5001 = vrot.lane.b32.xlu0 %v4274, 24
        %v5002 = vpop.permute.xlu0 %5001
        %5003 = vrot.lane.b32.xlu0 %v4322, 24
        %v5004 = vpop.permute.xlu0 %5003
        %5005 = vrot.lane.b32.xlu0 %v4370, 24
        %v5006 = vpop.permute.xlu0 %5005
        %5007 = vrot.lane.b32.xlu0 %v4418, 24
        %v5008 = vpop.permute.xlu0 %5007
        %5009 = vrot.lane.b32.xlu0 %v4466, 24
        %v5010 = vpop.permute.xlu0 %5009
        %5011 = vrot.lane.b32.xlu0 %v4514, 24
        %v5012 = vpop.permute.xlu0 %5011
        %5013 = vrot.lane.b32.xlu0 %v4562, 24
        %v5014 = vpop.permute.xlu0 %5013
        %5015 = vrot.lane.b32.xlu0 %v4610, 24
        %v5016 = vpop.permute.xlu0 %5015
        %5017 = vrot.lane.b32.xlu0 %v4658, 24
        %v5018 = vpop.permute.xlu0 %5017
        %5019 = vrot.lane.b32.xlu0 %v4706, 24
        %v5020 = vpop.permute.xlu0 %5019
        %5021 = vrot.lane.b32.xlu0 %v4720, 28
        %v5022 = vpop.permute.xlu0 %5021
        %5023 = vrot.lane.b32.xlu0 %v4727, 28
        %v5024 = vpop.permute.xlu0 %5023
        %5025 = vrot.lane.b32.xlu0 %v4734, 28
        %v5026 = vpop.permute.xlu0 %5025
        %5027 = vrot.lane.b32.xlu0 %v4741, 28
        %v5028 = vpop.permute.xlu0 %5027
        %5029 = vrot.lane.b32.xlu0 %v4748, 28
        %v5030 = vpop.permute.xlu0 %5029
        %5031 = vrot.lane.b32.xlu0 %v4755, 28
        %v5032 = vpop.permute.xlu0 %5031
        %5033 = vrot.lane.b32.xlu0 %v4762, 28
        %v5034 = vpop.permute.xlu0 %5033
        %5035 = vrot.lane.b32.xlu0 %v4769, 28
        %v5036 = vpop.permute.xlu0 %5035
        %5037 = vrot.lane.b32.xlu0 %v4776, 28
        %v5038 = vpop.permute.xlu0 %5037
        %5039 = vrot.lane.b32.xlu0 %v4783, 28
        %v5040 = vpop.permute.xlu0 %5039
        %5041 = vrot.lane.b32.xlu0 %v4790, 28
        %v5042 = vpop.permute.xlu0 %5041
        %5043 = vrot.lane.b32.xlu0 %v4797, 28
        %v5044 = vpop.permute.xlu0 %5043
        %5045 = vrot.lane.b32.xlu0 %v4804, 28
        %v5046 = vpop.permute.xlu0 %5045
        %5047 = vrot.lane.b32.xlu0 %v4811, 28
        %v5048 = vpop.permute.xlu0 %5047
        %5049 = vrot.lane.b32.xlu0 %v4925, 28
        %v5050 = vpop.permute.xlu0 %5049
        %5051 = vrot.lane.b32.xlu0 %v4843, 32
        %v5052 = vpop.permute.xlu0 %5051
        %5053 = vrot.lane.b32.xlu0 %v4844, 32
        %v5054 = vpop.permute.xlu0 %5053
        %5055 = vrot.lane.b32.xlu0 %v4845, 32
        %v5056 = vpop.permute.xlu0 %5055
        %5057 = vrot.lane.b32.xlu0 %v4846, 32
        %v5058 = vpop.permute.xlu0 %5057
        %5059 = vrot.lane.b32.xlu0 %v4847, 32
        %v5060 = vpop.permute.xlu0 %5059
        %5061 = vrot.lane.b32.xlu0 %v4848, 32
        %v5062 = vpop.permute.xlu0 %5061
        %5063 = vrot.lane.b32.xlu0 %v4849, 32
        %v5064 = vpop.permute.xlu0 %5063
        %5065 = vrot.lane.b32.xlu0 %v4850, 32
        %v5066 = vpop.permute.xlu0 %5065
        %5067 = vrot.lane.b32.xlu0 %v4851, 32
        %v5068 = vpop.permute.xlu0 %5067
        %5069 = vrot.lane.b32.xlu0 %v4852, 32
        %v5070 = vpop.permute.xlu0 %5069
        %5071 = vrot.lane.b32.xlu0 %v4853, 32
        %v5072 = vpop.permute.xlu0 %5071
        %5073 = vrot.lane.b32.xlu0 %v4854, 32
        %v5074 = vpop.permute.xlu0 %5073
        %5075 = vrot.lane.b32.xlu0 %v4855, 32
        %v5076 = vpop.permute.xlu0 %5075
        %5077 = vrot.lane.b32.xlu0 %v4856, 32
        %v5078 = vpop.permute.xlu0 %5077
        %5079 = vrot.lane.b32.xlu0 %v4958, 32
        %v5080 = vpop.permute.xlu0 %5079
        %v5082 = vsel %vm1244, %v3986, %v4813
        %v5084 = vsel %vm1244, %v4034, %v4815
        %v5086 = vsel %vm1244, %v4082, %v4817
        %v5088 = vsel %vm1244, %v4130, %v4819
        %v5090 = vsel %vm1244, %v4178, %v4821
        %v5092 = vsel %vm1244, %v4226, %v4823
        %v5094 = vsel %vm1244, %v4274, %v4825
        %v5096 = vsel %vm1244, %v4322, %v4827
        %v5098 = vsel %vm1244, %v4370, %v4829
        %v5100 = vsel %vm1244, %v4418, %v4831
        %v5102 = vsel %vm1244, %v4466, %v4833
        %v5104 = vsel %vm1244, %v4514, %v4835
        %v5106 = vsel %vm1244, %v4562, %v4837
        %v5108 = vsel %vm1244, %v4610, %v4839
        %v5110 = vsel %vm1244, %v4658, %v4841
        %v5112 = vsel %vm1277, %v5082, %v4858
        %v5114 = vsel %vm1277, %v5084, %v4860
        %v5116 = vsel %vm1277, %v5086, %v4862
        %v5118 = vsel %vm1277, %v5088, %v4864
        %v5120 = vsel %vm1277, %v5090, %v4866
        %v5122 = vsel %vm1277, %v5092, %v4868
        %v5124 = vsel %vm1277, %v5094, %v4870
        %v5126 = vsel %vm1277, %v5096, %v4872
        %v5128 = vsel %vm1277, %v5098, %v4874
        %v5130 = vsel %vm1277, %v5100, %v4876
        %v5132 = vsel %vm1277, %v5102, %v4878
        %v5134 = vsel %vm1277, %v5104, %v4880
        %v5136 = vsel %vm1277, %v5106, %v4882
        %v5138 = vsel %vm1277, %v5108, %v4884
        %v5140 = vsel %vm1277, %v5110, %v4886
        %v5142 = vsel %vm1310, %v1279, %v4888
        %v5144 = vsel %vm1310, %v5112, %v4890
        %v5146 = vsel %vm1310, %v5114, %v4892
        %v5148 = vsel %vm1310, %v5116, %v4894
        %v5150 = vsel %vm1310, %v5118, %v4896
        %v5152 = vsel %vm1310, %v5120, %v4898
        %v5154 = vsel %vm1310, %v5122, %v4900
        %v5156 = vsel %vm1310, %v5124, %v4902
        %v5158 = vsel %vm1310, %v5126, %v4904
        %v5160 = vsel %vm1310, %v5128, %v4906
        %v5162 = vsel %vm1310, %v5130, %v4908
        %v5164 = vsel %vm1310, %v5132, %v4910
        %v5166 = vsel %vm1310, %v5134, %v4912
        %v5168 = vsel %vm1310, %v5136, %v4914
        %v5170 = vsel %vm1310, %v5138, %v4916
        %v5172 = vsel %vm1310, %v5140, %v4918
        %v5174 = vsel %vm1343, %v5142, %v4927
        %v5176 = vsel %vm1343, %v5144, %v4929
        %v5178 = vsel %vm1343, %v5146, %v4931
        %v5180 = vsel %vm1343, %v5148, %v4933
        %v5182 = vsel %vm1343, %v5150, %v4935
        %v5184 = vsel %vm1343, %v5152, %v4937
        %v5186 = vsel %vm1343, %v5154, %v4939
        %v5188 = vsel %vm1343, %v5156, %v4941
        %v5190 = vsel %vm1343, %v5158, %v4943
        %v5192 = vsel %vm1343, %v5160, %v4945
        %v5194 = vsel %vm1343, %v5162, %v4947
        %v5196 = vsel %vm1343, %v5164, %v4949
        %v5198 = vsel %vm1343, %v5166, %v4951
        %v5200 = vsel %vm1343, %v5168, %v4953
        %v5202 = vsel %vm1343, %v5170, %v4955
        %v5204 = vsel %vm1343, %v5172, %v4957
        %v5206 = vsel %vm1376, %v5174, %v4960
        %v5208 = vsel %vm1376, %v5176, %v4962
        %v5210 = vsel %vm1376, %v5178, %v4964
        %v5212 = vsel %vm1376, %v5180, %v4966
        %v5214 = vsel %vm1376, %v5182, %v4968
        %v5216 = vsel %vm1376, %v5184, %v4970
        %v5218 = vsel %vm1376, %v5186, %v4972
        %v5220 = vsel %vm1376, %v5188, %v4974
        %v5222 = vsel %vm1376, %v5190, %v4976
        %v5224 = vsel %vm1376, %v5192, %v4978
        %v5226 = vsel %vm1376, %v5194, %v4980
        %v5228 = vsel %vm1376, %v5196, %v4982
        %v5230 = vsel %vm1376, %v5198, %v4984
        %v5232 = vsel %vm1376, %v5200, %v4986
        %v5234 = vsel %vm1376, %v5202, %v4988
        %v5236 = vsel %vm1376, %v5204, %v4990
        %v5238 = vsel %vm1409, %v5206, %v4992
        %v5240 = vsel %vm1409, %v5208, %v4994
        %v5242 = vsel %vm1409, %v5210, %v4996
        %v5244 = vsel %vm1409, %v5212, %v4998
        %v5246 = vsel %vm1409, %v5214, %v5000
        %v5248 = vsel %vm1409, %v5216, %v5002
        %v5250 = vsel %vm1409, %v5218, %v5004
        %v5252 = vsel %vm1409, %v5220, %v5006
        %v5254 = vsel %vm1409, %v5222, %v5008
        %v5256 = vsel %vm1409, %v5224, %v5010
        %v5258 = vsel %vm1409, %v5226, %v5012
        %v5260 = vsel %vm1409, %v5228, %v5014
        %v5262 = vsel %vm1409, %v5230, %v5016
        %v5264 = vsel %vm1409, %v5232, %v5018
        %v5266 = vsel %vm1409, %v5234, %v5020
        %v5267 = vsel %vm1409, %v5236, %v1179
        %v5269 = vsel %vm1442, %v5238, %v5022
        %v5271 = vsel %vm1442, %v5240, %v5024
        %v5273 = vsel %vm1442, %v5242, %v5026
        %v5275 = vsel %vm1442, %v5244, %v5028
        %v5277 = vsel %vm1442, %v5246, %v5030
        %v5279 = vsel %vm1442, %v5248, %v5032
        %v5281 = vsel %vm1442, %v5250, %v5034
        %v5283 = vsel %vm1442, %v5252, %v5036
        %v5285 = vsel %vm1442, %v5254, %v5038
        %v5287 = vsel %vm1442, %v5256, %v5040
        %v5289 = vsel %vm1442, %v5258, %v5042
        %v5291 = vsel %vm1442, %v5260, %v5044
        %v5293 = vsel %vm1442, %v5262, %v5046
        %v5295 = vsel %vm1442, %v5264, %v5048
        %v5297 = vsel %vm1442, %v5266, %v5050
        %v5298 = vsel %vm1442, %v5267, %v1211
        %v5300 = vsel %vm1475, %v5269, %v5052
        %v5302 = vsel %vm1475, %v5271, %v5054
        %v5304 = vsel %vm1475, %v5273, %v5056
        %v5306 = vsel %vm1475, %v5275, %v5058
        %v5308 = vsel %vm1475, %v5277, %v5060
        %v5310 = vsel %vm1475, %v5279, %v5062
        %v5312 = vsel %vm1475, %v5281, %v5064
        %v5314 = vsel %vm1475, %v5283, %v5066
        %v5316 = vsel %vm1475, %v5285, %v5068
        %v5318 = vsel %vm1475, %v5287, %v5070
        %v5320 = vsel %vm1475, %v5289, %v5072
        %v5322 = vsel %vm1475, %v5291, %v5074
        %v5324 = vsel %vm1475, %v5293, %v5076
        %v5326 = vsel %vm1475, %v5295, %v5078
        %v5328 = vsel %vm1475, %v5297, %v5080
        %v5329 = vsel %vm1475, %v5298, %v1243
        %v5346 = vcombine.high %v5300, %v5300
        %v5348 = vunpack.c.l.s4 1983009808
        %v5349 = vunpack.c.0.s8 %v5348
        %v5350 = vlaneseq
        %v5351 = vshrl.u32 %v5350, 7
        %v5352 = vsub.s32 %v5349, %v5351
        %v5353 = vrot.slane %v5300, %v5352
        %v5355 = vunpack.c.l.s4 1983009808
        %v5356 = vunpack.c.0.s8 %v5355
        %v5357 = vlaneseq
        %v5358 = vshrl.u32 %v5357, 7
        %v5359 = vsub.s32 %v5356, %v5358
        %v5360 = vrot.slane %v5346, %v5359
        %v5361 = vcombine.high %v5353, %v5353
        %v5362 = vcombine.high %v5302, %v5302
        %v5364 = vunpack.c.l.s4 1983009808
        %v5365 = vunpack.c.0.s8 %v5364
        %v5366 = vlaneseq
        %v5367 = vshrl.u32 %v5366, 7
        %v5368 = vsub.s32 %v5365, %v5367
        %v5369 = vrot.slane %v5302, %v5368
        %v5371 = vunpack.c.l.s4 1983009808
        %v5372 = vunpack.c.0.s8 %v5371
        %v5373 = vlaneseq
        %v5374 = vshrl.u32 %v5373, 7
        %v5375 = vsub.s32 %v5372, %v5374
        %v5376 = vrot.slane %v5362, %v5375
        %v5377 = vcombine.high %v5369, %v5369
        %v5378 = vcombine.high %v5304, %v5304
        %v5380 = vunpack.c.l.s4 1983009808
        %v5381 = vunpack.c.0.s8 %v5380
        %v5382 = vlaneseq
        %v5383 = vshrl.u32 %v5382, 7
        %v5384 = vsub.s32 %v5381, %v5383
        %v5385 = vrot.slane %v5304, %v5384
        %v5387 = vunpack.c.l.s4 1983009808
        %v5388 = vunpack.c.0.s8 %v5387
        %v5389 = vlaneseq
        %v5390 = vshrl.u32 %v5389, 7
        %v5391 = vsub.s32 %v5388, %v5390
        %v5392 = vrot.slane %v5378, %v5391
        %v5393 = vcombine.high %v5385, %v5385
        %v5394 = vcombine.high %v5306, %v5306
        %v5396 = vunpack.c.l.s4 1983009808
        %v5397 = vunpack.c.0.s8 %v5396
        %v5398 = vlaneseq
        %v5399 = vshrl.u32 %v5398, 7
        %v5400 = vsub.s32 %v5397, %v5399
        %v5401 = vrot.slane %v5306, %v5400
        %v5403 = vunpack.c.l.s4 1983009808
        %v5404 = vunpack.c.0.s8 %v5403
        %v5405 = vlaneseq
        %v5406 = vshrl.u32 %v5405, 7
        %v5407 = vsub.s32 %v5404, %v5406
        %v5408 = vrot.slane %v5394, %v5407
        %v5409 = vcombine.high %v5401, %v5401
        %v5410 = vcombine.high %v5308, %v5308
        %v5412 = vunpack.c.l.s4 1983009808
        %v5413 = vunpack.c.0.s8 %v5412
        %v5414 = vlaneseq
        %v5415 = vshrl.u32 %v5414, 7
        %v5416 = vsub.s32 %v5413, %v5415
        %v5417 = vrot.slane %v5308, %v5416
        %v5419 = vunpack.c.l.s4 1983009808
        %v5420 = vunpack.c.0.s8 %v5419
        %v5421 = vlaneseq
        %v5422 = vshrl.u32 %v5421, 7
        %v5423 = vsub.s32 %v5420, %v5422
        %v5424 = vrot.slane %v5410, %v5423
        %v5425 = vcombine.high %v5417, %v5417
        %v5426 = vcombine.high %v5310, %v5310
        %v5428 = vunpack.c.l.s4 1983009808
        %v5429 = vunpack.c.0.s8 %v5428
        %v5430 = vlaneseq
        %v5431 = vshrl.u32 %v5430, 7
        %v5432 = vsub.s32 %v5429, %v5431
        %v5433 = vrot.slane %v5310, %v5432
        %v5435 = vunpack.c.l.s4 1983009808
        %v5436 = vunpack.c.0.s8 %v5435
        %v5437 = vlaneseq
        %v5438 = vshrl.u32 %v5437, 7
        %v5439 = vsub.s32 %v5436, %v5438
        %v5440 = vrot.slane %v5426, %v5439
        %v5441 = vcombine.high %v5433, %v5433
        %v5442 = vcombine.high %v5312, %v5312
        %v5444 = vunpack.c.l.s4 1983009808
        %v5445 = vunpack.c.0.s8 %v5444
        %v5446 = vlaneseq
        %v5447 = vshrl.u32 %v5446, 7
        %v5448 = vsub.s32 %v5445, %v5447
        %v5449 = vrot.slane %v5312, %v5448
        %v5451 = vunpack.c.l.s4 1983009808
        %v5452 = vunpack.c.0.s8 %v5451
        %v5453 = vlaneseq
        %v5454 = vshrl.u32 %v5453, 7
        %v5455 = vsub.s32 %v5452, %v5454
        %v5456 = vrot.slane %v5442, %v5455
        %v5457 = vcombine.high %v5449, %v5449
        %v5458 = vcombine.high %v5314, %v5314
        %v5460 = vunpack.c.l.s4 1983009808
        %v5461 = vunpack.c.0.s8 %v5460
        %v5462 = vlaneseq
        %v5463 = vshrl.u32 %v5462, 7
        %v5464 = vsub.s32 %v5461, %v5463
        %v5465 = vrot.slane %v5314, %v5464
        %v5467 = vunpack.c.l.s4 1983009808
        %v5468 = vunpack.c.0.s8 %v5467
        %v5469 = vlaneseq
        %v5470 = vshrl.u32 %v5469, 7
        %v5471 = vsub.s32 %v5468, %v5470
        %v5472 = vrot.slane %v5458, %v5471
        %v5473 = vcombine.high %v5465, %v5465
        %v5474 = vcombine.high %v5316, %v5316
        %v5476 = vunpack.c.l.s4 1983009808
        %v5477 = vunpack.c.0.s8 %v5476
        %v5478 = vlaneseq
        %v5479 = vshrl.u32 %v5478, 7
        %v5480 = vsub.s32 %v5477, %v5479
        %v5481 = vrot.slane %v5316, %v5480
        %v5483 = vunpack.c.l.s4 1983009808
        %v5484 = vunpack.c.0.s8 %v5483
        %v5485 = vlaneseq
        %v5486 = vshrl.u32 %v5485, 7
        %v5487 = vsub.s32 %v5484, %v5486
        %v5488 = vrot.slane %v5474, %v5487
        %v5489 = vcombine.high %v5481, %v5481
        %v5490 = vcombine.high %v5318, %v5318
        %v5492 = vunpack.c.l.s4 1983009808
        %v5493 = vunpack.c.0.s8 %v5492
        %v5494 = vlaneseq
        %v5495 = vshrl.u32 %v5494, 7
        %v5496 = vsub.s32 %v5493, %v5495
        %v5497 = vrot.slane %v5318, %v5496
        %v5499 = vunpack.c.l.s4 1983009808
        %v5500 = vunpack.c.0.s8 %v5499
        %v5501 = vlaneseq
        %v5502 = vshrl.u32 %v5501, 7
        %v5503 = vsub.s32 %v5500, %v5502
        %v5504 = vrot.slane %v5490, %v5503
        %v5505 = vcombine.high %v5497, %v5497
        %v5506 = vcombine.high %v5320, %v5320
        %v5508 = vunpack.c.l.s4 1983009808
        %v5509 = vunpack.c.0.s8 %v5508
        %v5510 = vlaneseq
        %v5511 = vshrl.u32 %v5510, 7
        %v5512 = vsub.s32 %v5509, %v5511
        %v5513 = vrot.slane %v5320, %v5512
        %v5515 = vunpack.c.l.s4 1983009808
        %v5516 = vunpack.c.0.s8 %v5515
        %v5517 = vlaneseq
        %v5518 = vshrl.u32 %v5517, 7
        %v5519 = vsub.s32 %v5516, %v5518
        %v5520 = vrot.slane %v5506, %v5519
        %v5521 = vcombine.high %v5513, %v5513
        %v5522 = vcombine.high %v5322, %v5322
        %v5524 = vunpack.c.l.s4 1983009808
        %v5525 = vunpack.c.0.s8 %v5524
        %v5526 = vlaneseq
        %v5527 = vshrl.u32 %v5526, 7
        %v5528 = vsub.s32 %v5525, %v5527
        %v5529 = vrot.slane %v5322, %v5528
        %v5531 = vunpack.c.l.s4 1983009808
        %v5532 = vunpack.c.0.s8 %v5531
        %v5533 = vlaneseq
        %v5534 = vshrl.u32 %v5533, 7
        %v5535 = vsub.s32 %v5532, %v5534
        %v5536 = vrot.slane %v5522, %v5535
        %v5537 = vcombine.high %v5529, %v5529
        %v5538 = vcombine.high %v5324, %v5324
        %v5540 = vunpack.c.l.s4 1983009808
        %v5541 = vunpack.c.0.s8 %v5540
        %v5542 = vlaneseq
        %v5543 = vshrl.u32 %v5542, 7
        %v5544 = vsub.s32 %v5541, %v5543
        %v5545 = vrot.slane %v5324, %v5544
        %v5547 = vunpack.c.l.s4 1983009808
        %v5548 = vunpack.c.0.s8 %v5547
        %v5549 = vlaneseq
        %v5550 = vshrl.u32 %v5549, 7
        %v5551 = vsub.s32 %v5548, %v5550
        %v5552 = vrot.slane %v5538, %v5551
        %v5553 = vcombine.high %v5545, %v5545
        %v5554 = vcombine.high %v5326, %v5326
        %v5556 = vunpack.c.l.s4 1983009808
        %v5557 = vunpack.c.0.s8 %v5556
        %v5558 = vlaneseq
        %v5559 = vshrl.u32 %v5558, 7
        %v5560 = vsub.s32 %v5557, %v5559
        %v5561 = vrot.slane %v5326, %v5560
        %v5563 = vunpack.c.l.s4 1983009808
        %v5564 = vunpack.c.0.s8 %v5563
        %v5565 = vlaneseq
        %v5566 = vshrl.u32 %v5565, 7
        %v5567 = vsub.s32 %v5564, %v5566
        %v5568 = vrot.slane %v5554, %v5567
        %v5569 = vcombine.high %v5561, %v5561
        %v5570 = vcombine.high %v5328, %v5328
        %v5572 = vunpack.c.l.s4 1983009808
        %v5573 = vunpack.c.0.s8 %v5572
        %v5574 = vlaneseq
        %v5575 = vshrl.u32 %v5574, 7
        %v5576 = vsub.s32 %v5573, %v5575
        %v5577 = vrot.slane %v5328, %v5576
        %v5579 = vunpack.c.l.s4 1983009808
        %v5580 = vunpack.c.0.s8 %v5579
        %v5581 = vlaneseq
        %v5582 = vshrl.u32 %v5581, 7
        %v5583 = vsub.s32 %v5580, %v5582
        %v5584 = vrot.slane %v5570, %v5583
        %v5585 = vcombine.high %v5577, %v5577
        %v5586 = vcombine.high %v5329, %v5329
        %v5588 = vunpack.c.l.s4 1983009808
        %v5589 = vunpack.c.0.s8 %v5588
        %v5590 = vlaneseq
        %v5591 = vshrl.u32 %v5590, 7
        %v5592 = vsub.s32 %v5589, %v5591
        %v5593 = vrot.slane %v5329, %v5592
        %v5595 = vunpack.c.l.s4 1983009808
        %v5596 = vunpack.c.0.s8 %v5595
        %v5597 = vlaneseq
        %v5598 = vshrl.u32 %v5597, 7
        %v5599 = vsub.s32 %v5596, %v5598
        %v5600 = vrot.slane %v5586, %v5599
        %v5601 = vcombine.high %v5593, %v5593
        %v5602 = vld [vmem:[%s3] sm:$0xf]
        %v5603 = vld [vmem:[%s3 + $0x4] sm:$0xf]
        %v5604 = vld [vmem:[%s3 + $0x8] sm:$0xf]
        %v5605 = vld [vmem:[%s3 + $0xc] sm:$0xf]
        %v5606 = vld [vmem:[%s3 + $0x10] sm:$0x3]
        %v5607 = vld [vmem:[%s4] sm:$0x1]
        %v5609 = vlaneseq
        %v5610 = vshrl.u32 %v5609, 7
        %v5611 = vsub.s32 0, %v5610
        %v5612 = vrot.slane %v5607, %v5611
        %v5614 = vcombine.low %v5353, %v5361
        %v5615 = vcombine.low %v5360, %v5369
        %v5617 = vunpack.c.l.s4 1983009808
        %v5618 = vunpack.c.0.s8 %v5617
        %v5619 = vlaneseq
        %v5620 = vshrl.u32 %v5619, 7
        %v5621 = vsub.s32 %v5618, %v5620
        %v5622 = vrot.slane %v5614, %v5621
        %v5624 = vunpack.c.l.s4 1983009808
        %v5625 = vunpack.c.0.s8 %v5624
        %v5626 = vlaneseq
        %v5627 = vshrl.u32 %v5626, 7
        %v5628 = vsub.s32 %v5625, %v5627
        %v5629 = vrot.slane %v5615, %v5628
        %v5630 = vcombine.low %v5622, %v5629
        %v5631 = vcombine.low %v5377, %v5376
        %v5632 = vcombine.low %v5385, %v5393
        %v5634 = vunpack.c.l.s4 1983009808
        %v5635 = vunpack.c.0.s8 %v5634
        %v5636 = vlaneseq
        %v5637 = vshrl.u32 %v5636, 7
        %v5638 = vsub.s32 %v5635, %v5637
        %v5639 = vrot.slane %v5631, %v5638
        %v5641 = vunpack.c.l.s4 1983009808
        %v5642 = vunpack.c.0.s8 %v5641
        %v5643 = vlaneseq
        %v5644 = vshrl.u32 %v5643, 7
        %v5645 = vsub.s32 %v5642, %v5644
        %v5646 = vrot.slane %v5632, %v5645
        %v5647 = vcombine.low %v5639, %v5646
        %v5648 = vcombine.low %v5392, %v5401
        %v5649 = vcombine.low %v5409, %v5408
        %v5651 = vunpack.c.l.s4 1983009808
        %v5652 = vunpack.c.0.s8 %v5651
        %v5653 = vlaneseq
        %v5654 = vshrl.u32 %v5653, 7
        %v5655 = vsub.s32 %v5652, %v5654
        %v5656 = vrot.slane %v5648, %v5655
        %v5658 = vunpack.c.l.s4 1983009808
        %v5659 = vunpack.c.0.s8 %v5658
        %v5660 = vlaneseq
        %v5661 = vshrl.u32 %v5660, 7
        %v5662 = vsub.s32 %v5659, %v5661
        %v5663 = vrot.slane %v5649, %v5662
        %v5664 = vcombine.low %v5656, %v5663
        %v5665 = vcombine.low %v5417, %v5425
        %v5666 = vcombine.low %v5424, %v5433
        %v5668 = vunpack.c.l.s4 1983009808
        %v5669 = vunpack.c.0.s8 %v5668
        %v5670 = vlaneseq
        %v5671 = vshrl.u32 %v5670, 7
        %v5672 = vsub.s32 %v5669, %v5671
        %v5673 = vrot.slane %v5665, %v5672
        %v5675 = vunpack.c.l.s4 1983009808
        %v5676 = vunpack.c.0.s8 %v5675
        %v5677 = vlaneseq
        %v5678 = vshrl.u32 %v5677, 7
        %v5679 = vsub.s32 %v5676, %v5678
        %v5680 = vrot.slane %v5666, %v5679
        %v5681 = vcombine.low %v5673, %v5680
        %v5682 = vcombine.low %v5441, %v5440
        %v5683 = vcombine.low %v5449, %v5457
        %v5685 = vunpack.c.l.s4 1983009808
        %v5686 = vunpack.c.0.s8 %v5685
        %v5687 = vlaneseq
        %v5688 = vshrl.u32 %v5687, 7
        %v5689 = vsub.s32 %v5686, %v5688
        %v5690 = vrot.slane %v5682, %v5689
        %v5692 = vunpack.c.l.s4 1983009808
        %v5693 = vunpack.c.0.s8 %v5692
        %v5694 = vlaneseq
        %v5695 = vshrl.u32 %v5694, 7
        %v5696 = vsub.s32 %v5693, %v5695
        %v5697 = vrot.slane %v5683, %v5696
        %v5698 = vcombine.low %v5690, %v5697
        %v5699 = vcombine.low %v5456, %v5465
        %v5700 = vcombine.low %v5473, %v5472
        %v5702 = vunpack.c.l.s4 1983009808
        %v5703 = vunpack.c.0.s8 %v5702
        %v5704 = vlaneseq
        %v5705 = vshrl.u32 %v5704, 7
        %v5706 = vsub.s32 %v5703, %v5705
        %v5707 = vrot.slane %v5699, %v5706
        %v5709 = vunpack.c.l.s4 1983009808
        %v5710 = vunpack.c.0.s8 %v5709
        %v5711 = vlaneseq
        %v5712 = vshrl.u32 %v5711, 7
        %v5713 = vsub.s32 %v5710, %v5712
        %v5714 = vrot.slane %v5700, %v5713
        %v5715 = vcombine.low %v5707, %v5714
        %v5716 = vcombine.low %v5481, %v5489
        %v5717 = vcombine.low %v5488, %v5497
        %v5719 = vunpack.c.l.s4 1983009808
        %v5720 = vunpack.c.0.s8 %v5719
        %v5721 = vlaneseq
        %v5722 = vshrl.u32 %v5721, 7
        %v5723 = vsub.s32 %v5720, %v5722
        %v5724 = vrot.slane %v5716, %v5723
        %v5726 = vunpack.c.l.s4 1983009808
        %v5727 = vunpack.c.0.s8 %v5726
        %v5728 = vlaneseq
        %v5729 = vshrl.u32 %v5728, 7
        %v5730 = vsub.s32 %v5727, %v5729
        %v5731 = vrot.slane %v5717, %v5730
        %v5732 = vcombine.low %v5724, %v5731
        %v5733 = vcombine.low %v5505, %v5504
        %v5734 = vcombine.low %v5513, %v5521
        %v5736 = vunpack.c.l.s4 1983009808
        %v5737 = vunpack.c.0.s8 %v5736
        %v5738 = vlaneseq
        %v5739 = vshrl.u32 %v5738, 7
        %v5740 = vsub.s32 %v5737, %v5739
        %v5741 = vrot.slane %v5733, %v5740
        %v5743 = vunpack.c.l.s4 1983009808
        %v5744 = vunpack.c.0.s8 %v5743
        %v5745 = vlaneseq
        %v5746 = vshrl.u32 %v5745, 7
        %v5747 = vsub.s32 %v5744, %v5746
        %v5748 = vrot.slane %v5734, %v5747
        %v5749 = vcombine.low %v5741, %v5748
        %v5750 = vcombine.low %v5520, %v5529
        %v5751 = vcombine.low %v5537, %v5536
        %v5753 = vunpack.c.l.s4 1983009808
        %v5754 = vunpack.c.0.s8 %v5753
        %v5755 = vlaneseq
        %v5756 = vshrl.u32 %v5755, 7
        %v5757 = vsub.s32 %v5754, %v5756
        %v5758 = vrot.slane %v5750, %v5757
        %v5760 = vunpack.c.l.s4 1983009808
        %v5761 = vunpack.c.0.s8 %v5760
        %v5762 = vlaneseq
        %v5763 = vshrl.u32 %v5762, 7
        %v5764 = vsub.s32 %v5761, %v5763
        %v5765 = vrot.slane %v5751, %v5764
        %v5766 = vcombine.low %v5758, %v5765
        %v5767 = vcombine.low %v5545, %v5553
        %v5768 = vcombine.low %v5552, %v5561
        %v5770 = vunpack.c.l.s4 1983009808
        %v5771 = vunpack.c.0.s8 %v5770
        %v5772 = vlaneseq
        %v5773 = vshrl.u32 %v5772, 7
        %v5774 = vsub.s32 %v5771, %v5773
        %v5775 = vrot.slane %v5767, %v5774
        %v5777 = vunpack.c.l.s4 1983009808
        %v5778 = vunpack.c.0.s8 %v5777
        %v5779 = vlaneseq
        %v5780 = vshrl.u32 %v5779, 7
        %v5781 = vsub.s32 %v5778, %v5780
        %v5782 = vrot.slane %v5768, %v5781
        %v5783 = vcombine.low %v5775, %v5782
        %v5784 = vcombine.low %v5569, %v5568
        %v5785 = vcombine.low %v5577, %v5585
        %v5787 = vunpack.c.l.s4 1983009808
        %v5788 = vunpack.c.0.s8 %v5787
        %v5789 = vlaneseq
        %v5790 = vshrl.u32 %v5789, 7
        %v5791 = vsub.s32 %v5788, %v5790
        %v5792 = vrot.slane %v5784, %v5791
        %v5794 = vunpack.c.l.s4 1983009808
        %v5795 = vunpack.c.0.s8 %v5794
        %v5796 = vlaneseq
        %v5797 = vshrl.u32 %v5796, 7
        %v5798 = vsub.s32 %v5795, %v5797
        %v5799 = vrot.slane %v5785, %v5798
        %v5800 = vcombine.low %v5792, %v5799
        %v5801 = vcombine.low %v5584, %v5593
        %v5802 = vcombine.low %v5601, %v5600
        %v5804 = vunpack.c.l.s4 1983009808
        %v5805 = vunpack.c.0.s8 %v5804
        %v5806 = vlaneseq
        %v5807 = vshrl.u32 %v5806, 7
        %v5808 = vsub.s32 %v5805, %v5807
        %v5809 = vrot.slane %v5801, %v5808
        %v5811 = vunpack.c.l.s4 1983009808
        %v5812 = vunpack.c.0.s8 %v5811
        %v5813 = vlaneseq
        %v5814 = vshrl.u32 %v5813, 7
        %v5815 = vsub.s32 %v5812, %v5814
        %v5816 = vrot.slane %v5802, %v5815
        %v5817 = vcombine.low %v5809, %v5816
        %v5823 = vunpack.c.l.b16 %v5602
        %v5824 = vunpack.c.l.b16 %v5603
        %v5825 = vunpack.c.l.b16 %v5604
        %v5826 = vunpack.c.l.b16 %v5605
        %v5827 = vunpack.c.l.b16 %v5606
        %v5828 = vpack.c.b16 %v5824, %v5823
        %v5829 = vpack.c.b16 %v5826, %v5825
        %v5830 = vpack.c.b16 %v5827, %v5827
        %v5834 = vsel %vm3005, %v5630, 0
        %v5837 = vsel %vm3005, %v5647, 0
        %v5840 = vsel %vm3005, %v5664, 0
        %v5843 = vsel %vm3005, %v5681, 0
        %v5846 = vsel %vm3005, %v5698, 0
        %v5849 = vsel %vm3005, %v5715, 0
        %v5852 = vsel %vm3005, %v5732, 0
        %v5855 = vsel %vm3005, %v5749, 0
        %v5858 = vsel %vm3005, %v5766, 0
        %v5861 = vsel %vm3005, %v5783, 0
        %v5864 = vsel %vm3005, %v5800, 0
        %v5867 = vsel %vm3005, %v5817, 0
        %v5870 = vsel %vm3048, %v5830, 0
        %5872 = vmatprep.subr.bf16.mxu0 0
        %5873 = vmatpush1.bf16.msra.mxu0 %v5828
        %5874 = vmatprep.subr.bf16.mxu0 0
        %5875 = vmatpush1.bf16.msra.mxu0 %v5829
        %5876 = vmatprep.subr.bf16.mxu0 0
        %5877 = vmatpush1.bf16.msra.mxu0 %v5870
        %5878 = vmatprep.subr.bf16.mxu0 0
        %5879 = vmatpush1.bf16.msra.mxu0 0
        %5880 = vmatprep.subr.bf16.mxu0 0
        %5881 = vmatpush1.bf16.msra.mxu0 0
        %5882 = vmatprep.subr.bf16.mxu0 0
        %5883 = vmatpush1.bf16.msra.mxu0 0
        %5884 = vmatprep.subr.bf16.mxu0 0
        %5885 = vmatpush1.bf16.msra.mxu0 0
        %5886 = vmatprep.subr.bf16.mxu0 0
        %5887 = vmatpush1.bf16.msra.mxu0 0
        %5888 = vmatprep.subr.bf16.mxu0 0
        %5889 = vmatpush1.bf16.msra.mxu0 0
        %5890 = vmatprep.subr.bf16.mxu0 0
        %5891 = vmatpush1.bf16.msra.mxu0 0
        %5892 = vmatprep.subr.bf16.mxu0 0
        %5893 = vmatpush1.bf16.msra.mxu0 0
        %5894 = vmatprep.subr.bf16.mxu0 0
        %5895 = vmatpush1.bf16.msra.mxu0 0
        %5896 = vmatprep.subr.bf16.mxu0 0
        %5897 = vmatpush1.bf16.msra.mxu0 0
        %5898 = vmatprep.subr.bf16.mxu0 0
        %5899 = vmatpush1.bf16.msra.mxu0 0
        %5900 = vmatprep.subr.bf16.mxu0 0
        %5901 = vmatpush1.bf16.msra.mxu0 0
        %5902 = vmatprep.subr.bf16.mxu0 0
        %5903 = vmatpush1.bf16.msra.mxu0 0
        %5904 = vmatprep.mubr.bf16.mxu0 0
        %5905 = vmatmul.mubr.bf16.gmra.mrb[0].mxu0 %v5834
        %v5906 = vpop.f32.mrb[0].mxu0
        %v5907 = vadd.f32 %v5612, %v5906
        %v5908 = vpop.f32.mrb[0].mxu0
        %v5909 = vpop.f32.mrb[0].mxu0
        %v5910 = vadd.f32 %v5612, %v5909
        %v5911 = vpop.f32.mrb[0].mxu0
        %5912 = vmatprep.mubr.bf16.mxu0 0
        %5913 = vmatmul.mubr.bf16.gmra.mrb[0].mxu0 %v5837
        %v5914 = vpop.f32.mrb[0].mxu0
        %v5915 = vadd.f32 %v5612, %v5914
        %v5916 = vpop.f32.mrb[0].mxu0
        %v5917 = vpop.f32.mrb[0].mxu0
        %v5918 = vadd.f32 %v5612, %v5917
        %v5919 = vpop.f32.mrb[0].mxu0
        %5920 = vmatprep.mubr.bf16.mxu0 0
        %5921 = vmatmul.mubr.bf16.gmra.mrb[0].mxu0 %v5840
        %v5922 = vpop.f32.mrb[0].mxu0
        %v5923 = vadd.f32 %v5612, %v5922
        %v5924 = vpop.f32.mrb[0].mxu0
        %v5925 = vpop.f32.mrb[0].mxu0
        %v5926 = vadd.f32 %v5612, %v5925
        %v5927 = vpop.f32.mrb[0].mxu0
        %5928 = vmatprep.mubr.bf16.mxu0 0
        %5929 = vmatmul.mubr.bf16.gmra.mrb[0].mxu0 %v5843
        %v5930 = vpop.f32.mrb[0].mxu0
        %v5931 = vadd.f32 %v5612, %v5930
        %v5932 = vpop.f32.mrb[0].mxu0
        %v5933 = vpop.f32.mrb[0].mxu0
        %v5934 = vadd.f32 %v5612, %v5933
        %v5935 = vpop.f32.mrb[0].mxu0
        %5936 = vmatprep.mubr.bf16.mxu0 0
        %5937 = vmatmul.mubr.bf16.gmra.mrb[0].mxu0 %v5846
        %v5938 = vpop.f32.mrb[0].mxu0
        %v5939 = vadd.f32 %v5612, %v5938
        %v5940 = vpop.f32.mrb[0].mxu0
        %v5941 = vpop.f32.mrb[0].mxu0
        %v5942 = vadd.f32 %v5612, %v5941
        %v5943 = vpop.f32.mrb[0].mxu0
        %5944 = vmatprep.mubr.bf16.mxu0 0
        %5945 = vmatmul.mubr.bf16.gmra.mrb[0].mxu0 %v5849
        %v5946 = vpop.f32.mrb[0].mxu0
        %v5947 = vadd.f32 %v5612, %v5946
        %v5948 = vpop.f32.mrb[0].mxu0
        %v5949 = vpop.f32.mrb[0].mxu0
        %v5950 = vadd.f32 %v5612, %v5949
        %v5951 = vpop.f32.mrb[0].mxu0
        %5952 = vmatprep.mubr.bf16.mxu0 0
        %5953 = vmatmul.mubr.bf16.gmra.mrb[0].mxu0 %v5852
        %v5954 = vpop.f32.mrb[0].mxu0
        %v5955 = vadd.f32 %v5612, %v5954
        %v5956 = vpop.f32.mrb[0].mxu0
        %v5957 = vpop.f32.mrb[0].mxu0
        %v5958 = vadd.f32 %v5612, %v5957
        %v5959 = vpop.f32.mrb[0].mxu0
        %5960 = vmatprep.mubr.bf16.mxu0 0
        %5961 = vmatmul.mubr.bf16.gmra.mrb[0].mxu0 %v5855
        %v5962 = vpop.f32.mrb[0].mxu0
        %v5963 = vadd.f32 %v5612, %v5962
        %v5964 = vpop.f32.mrb[0].mxu0
        %v5965 = vpop.f32.mrb[0].mxu0
        %v5966 = vadd.f32 %v5612, %v5965
        %v5967 = vpop.f32.mrb[0].mxu0
        %5968 = vmatprep.mubr.bf16.mxu0 0
        %5969 = vmatmul.mubr.bf16.gmra.mrb[0].mxu0 %v5858
        %v5970 = vpop.f32.mrb[0].mxu0
        %v5971 = vadd.f32 %v5612, %v5970
        %v5972 = vpop.f32.mrb[0].mxu0
        %v5973 = vpop.f32.mrb[0].mxu0
        %v5974 = vadd.f32 %v5612, %v5973
        %v5975 = vpop.f32.mrb[0].mxu0
        %5976 = vmatprep.mubr.bf16.mxu0 0
        %5977 = vmatmul.mubr.bf16.gmra.mrb[0].mxu0 %v5861
        %v5978 = vpop.f32.mrb[0].mxu0
        %v5979 = vadd.f32 %v5612, %v5978
        %v5980 = vpop.f32.mrb[0].mxu0
        %v5981 = vpop.f32.mrb[0].mxu0
        %v5982 = vadd.f32 %v5612, %v5981
        %v5983 = vpop.f32.mrb[0].mxu0
        %5984 = vmatprep.mubr.bf16.mxu0 0
        %5985 = vmatmul.mubr.bf16.gmra.mrb[0].mxu0 %v5864
        %v5986 = vpop.f32.mrb[0].mxu0
        %v5987 = vadd.f32 %v5612, %v5986
        %v5988 = vpop.f32.mrb[0].mxu0
        %v5989 = vpop.f32.mrb[0].mxu0
        %v5990 = vadd.f32 %v5612, %v5989
        %v5991 = vpop.f32.mrb[0].mxu0
        %5992 = vmatprep.mubr.bf16.mxu0 0
        %5993 = vmatmul.mubr.bf16.gmra.mrb[0].mxu0 %v5867
        %v5994 = vpop.f32.mrb[0].mxu0
        %v5995 = vadd.f32 %v5612, %v5994
        %v5996 = vpop.f32.mrb[0].mxu0
        %v5997 = vpop.f32.mrb[0].mxu0
        %v5998 = vadd.f32 %v5612, %v5997
        %v5999 = vpop.f32.mrb[0].mxu0
        %6000 = vdwg.mxu0
        %6001 = vxpose.xlu0.b32.start [1/16] %v5907, 128
        %6002 = vxpose.xlu0.b32.cont [2/16] %v5910, 128
        %6003 = vxpose.xlu0.b32.cont [3/16] %v5915, 128
        %6004 = vxpose.xlu0.b32.cont [4/16] %v5918, 128
        %6005 = vxpose.xlu0.b32.cont [5/16] %v5923, 128
        %6006 = vxpose.xlu0.b32.cont [6/16] %v5926, 128
        %6007 = vxpose.xlu0.b32.cont [7/16] %v5931, 128
        %6008 = vxpose.xlu0.b32.cont [8/16] %v5934, 128
        %6009 = vxpose.xlu0.b32.cont [9/16] %v5939, 128
        %6010 = vxpose.xlu0.b32.cont [10/16] %v5942, 128
        %6011 = vxpose.xlu0.b32.cont [11/16] %v5947, 128
        %6012 = vxpose.xlu0.b32.cont [12/16] %v5950, 128
        %6013 = vxpose.xlu0.b32.cont [13/16] %v5955, 128
        %6014 = vxpose.xlu0.b32.cont [14/16] %v5958, 128
        %6015 = vxpose.xlu0.b32.cont [15/16] %v5963, 128
        %6016 = vxpose.xlu0.b32.end [16/16] %v5966, 128
        %v6017 = vpop.trf.xlu0
        %v6018 = vpop.trf.xlu0
        %v6019 = vpop.trf.xlu0
        %v6020 = vpop.trf.xlu0
        %v6021 = vpop.trf.xlu0
        %v6022 = vpop.trf.xlu0
        %v6023 = vpop.trf.xlu0
        %v6024 = vpop.trf.xlu0
        %v6025 = vpop.trf.xlu0
        %v6026 = vpop.trf.xlu0
        %v6027 = vpop.trf.xlu0
        %v6028 = vpop.trf.xlu0
        %v6029 = vpop.trf.xlu0
        %v6030 = vpop.trf.xlu0
        %v6031 = vpop.trf.xlu0
        %v6032 = vpop.trf.xlu0
        %6033 = vxpose.xlu0.b32.start [1/16] %v5971, 128
        %6034 = vxpose.xlu0.b32.cont [2/16] %v5974, 128
        %6035 = vxpose.xlu0.b32.cont [3/16] %v5979, 128
        %6036 = vxpose.xlu0.b32.cont [4/16] %v5982, 128
        %6037 = vxpose.xlu0.b32.cont [5/16] %v5987, 128
        %6038 = vxpose.xlu0.b32.cont [6/16] %v5990, 128
        %6039 = vxpose.xlu0.b32.cont [7/16] %v5995, 128
        %6040 = vxpose.xlu0.b32.cont [8/16] %v5998, 128
        %6041 = vxpose.xlu0.b32.cont [9/16] 0.0, 128
        %6042 = vxpose.xlu0.b32.cont [10/16] 0.0, 128
        %6043 = vxpose.xlu0.b32.cont [11/16] 0.0, 128
        %6044 = vxpose.xlu0.b32.cont [12/16] 0.0, 128
        %6045 = vxpose.xlu0.b32.cont [13/16] 0.0, 128
        %6046 = vxpose.xlu0.b32.cont [14/16] 0.0, 128
        %6047 = vxpose.xlu0.b32.cont [15/16] 0.0, 128
        %6048 = vxpose.xlu0.b32.end [16/16] 0.0, 128
        %v6049 = vpop.trf.xlu0
        %v6050 = vpop.trf.xlu0
        %v6051 = vpop.trf.xlu0
        %v6052 = vpop.trf.xlu0
        %v6053 = vpop.trf.xlu0
        %v6054 = vpop.trf.xlu0
        %v6055 = vpop.trf.xlu0
        %v6056 = vpop.trf.xlu0
        %v6057 = vpop.trf.xlu0
        %v6058 = vpop.trf.xlu0
        %v6059 = vpop.trf.xlu0
        %v6060 = vpop.trf.xlu0
        %v6061 = vpop.trf.xlu0
        %v6062 = vpop.trf.xlu0
        %v6063 = vpop.trf.xlu0
        %v6064 = vpop.trf.xlu0
        %6065 = vst [vmem:[%s242] sm:$0xff] %v6017
        %vm6066 = vcmask 523264
        %6067 = vst.msk [vmem:[%s242 + $0x8] sm:$0xff] %vm6066, %v6049
        %s6068 = sand.u32 %s140, 1
        %s6069 = scalar_lea.sflag [#allocation4], %s6068
        %s6070 = sand.u32 %s140, 1
        %s6071 = smul.addr %s6070, 16
        %s6072 = scalar_lea.vmem [#allocation5], %s6071
        // Predicated region
        $region45: #{tpu_custom_call.1} parent=39 // pred_check
          %p6073 = pneg %p150
        $region46: #{tpu_custom_call.1} parent=39 // pred_check_branch
          %6075 = sbr.rel (%p6073) target = $region48
        $region47: #{tpu_custom_call.1} parent=39 // pred_region
          %s6077 = ssub.s32 256, 256
          %6078 = vsyncadd %s6069, %s6077
          %s6079 = smul.addr %s22, 2
          %s6080 = smul.addr %s6079, 128
          %s6081 = scalar_lea.hbm %s5, %s6080
          %s6083 = sshll.u32 %s6072, 4
          %s6084 = int_to_ptr.vmem [resolvable:$true] %s6083
          %6086 = dma.vmem_to_hbm [thread:$0]  %s6084, 256, %s6081, %s6069
        $region48: #{tpu_custom_call.1} parent=39 // pred_fallthru
          _
      $region40: #{tpu_custom_call.1} parent=5 // pred_fallthru
        _
      %p6087 = scmp.le.s32.totalorder 2, %s17
      // Predicated region
      $region49: #{tpu_custom_call.1} parent=5 // pred_check
        %p6088 = pneg %p6087
      $region50: #{tpu_custom_call.1} parent=5 // pred_check_branch
        %6090 = sbr.rel (%p6088) target = $region52
      $region51: #{tpu_custom_call.1} parent=5 // pred_region
        %s6091 = ssub.s32 %s17, 2
        // Predicated region
        $region53: #{tpu_custom_call.1} parent=51 // pred_check
          %p6092 = pneg %p156
        $region54: #{tpu_custom_call.1} parent=51 // pred_check_branch
          %6094 = sbr.rel (%p6092) target = $region56
        $region55: #{tpu_custom_call.1} parent=51 // pred_region
          %s6095 = sand.u32 %s141, 1
          %s6096 = scalar_lea.sflag [#allocation4], %s6095
          %s6097 = sand.u32 %s141, 1
          %s6098 = smul.addr %s6097, 16
          %s6099 = scalar_lea.vmem [#allocation5], %s6098
          %6100 = dma.done %s6096, 256
        $region56: #{tpu_custom_call.1} parent=51 // pred_fallthru
          _
      $region52: #{tpu_custom_call.1} parent=5 // pred_fallthru
        _
    $region6: #{tpu_custom_call.1} parent=1 // loop_footer
      %s21 = sadd.s32 1, %s17
    $region7: #{tpu_custom_call.1} parent=1 // loop_footer_branch
      %16 = sbr.rel target = $region3
    $region8: #{tpu_custom_call.1} parent=1 // loop_exit
      _
    %6101 = vsyncpa [#allocation3], 1
    %s6102 = scalar_lea.sflag [#allocation3], 1
    %6103 = vsyncpa %s6102, 1
    %6104 = vsyncpa [#allocation4], 1
    %s6105 = scalar_lea.sflag [#allocation4], 1
    %6106 = vsyncpa %s6105, 1

</llo_original>
